<compile_context>
chip_gen: v7x
topology: tpu7x:2x2x1
jax: 0.10.0
libtpu: 0.0.40
codegen_flags: <defaults>
</compile_context>

<pallas_src>
import jax
import jax.numpy as jnp
from jax import lax
from jax.experimental import pallas as pl
from jax.experimental.pallas import tpu as pltpu

IN_DIM = 28 * 28          # 784
F_PAD = 896               # 7 * 128  (lane-dense feature axis)
CODE_SIZE = 2
BATCH = 16                # example batch
BLOCK_B = 8               # batch tile per grid step (multiple of 8 sublanes)


def _round_up(x, m):
    return ((x + m - 1) // m) * m


def autoencoder_kernel(x_ref, w1_ref, b1_ref, w2_ref, b2_ref, w3_ref, b3_ref,
                       o_ref):
    x = x_ref[...]                                        # (TB, F_PAD)

    # Encoder: tanh(x @ W1^T + b1).  W1 is stored lane-dense as
    # (CODE_SIZE, F_PAD); contract both operands over their lane axis.
    h = jnp.tanh(
        lax.dot_general(x, w1_ref[...],
                        dimension_numbers=(((1,), (1,)), ((), ())),
                        preferred_element_type=jnp.float32)
        + b1_ref[...])                                    # (TB, CODE_SIZE)

    # Decoder layer 1: relu(h @ W2 + b2)   (TB, 2) @ (2, F_PAD)
    d1 = jnp.maximum(
        jnp.dot(h, w2_ref[...], preferred_element_type=jnp.float32)
        + b2_ref[...], 0.0)                               # (TB, F_PAD)

    # Decoder layer 2: relu(d1 @ W3 + b3)  (TB, F_PAD) @ (F_PAD, F_PAD)
    d2 = jnp.maximum(
        jnp.dot(d1, w3_ref[...], preferred_element_type=jnp.float32)
        + b3_ref[...], 0.0)                               # (TB, F_PAD)

    o_ref[...] = d2.astype(o_ref.dtype)


def autoencoder_forward(x, w1, b1, w2_t, b2, w3_t, b3, *, block_b=128):
    """x: (B, 784); w1: (2, 784) torch layout; w2_t: (2, 784); w3_t: (784, 784);
    biases: (1, out).  Returns (B, 784)."""
    B = x.shape[0]
    pad_f = F_PAD - IN_DIM

    # ---- wrapper-side zero padding to the lane-dense 896 feature axis ----
    xp = jnp.pad(x, ((0, 0), (0, pad_f)))                        # (B, 896)
    w1p = jnp.pad(w1, ((0, 0), (0, pad_f)))                      # (2, 896)
    w2p = jnp.pad(w2_t, ((0, 0), (0, pad_f)))                    # (2, 896)
    b2p = jnp.pad(b2, ((0, 0), (0, pad_f)))                      # (1, 896)
    w3p = jnp.pad(w3_t, ((0, pad_f), (0, pad_f)))                # (896, 896)
    b3p = jnp.pad(b3, ((0, 0), (0, pad_f)))                      # (1, 896)

    # ---- batch tiling: pad batch to a multiple of the batch tile ----
    tb = min(block_b, _round_up(B, 8))
    Bp = _round_up(B, tb)
    if Bp != B:
        xp = jnp.pad(xp, ((0, Bp - B), (0, 0)))
    grid = (Bp // tb,)

    # Weights/biases: constant block index -> loaded once, resident in VMEM
    # across all batch tiles.
    resident = lambda shape: pl.BlockSpec(shape, lambda i: (0, 0))
    x_spec = pl.BlockSpec((tb, F_PAD), lambda i: (i, 0))
    out_spec = pl.BlockSpec((tb, F_PAD), lambda i: (i, 0))

    # Advisory cost estimate so XLA schedules the W3 fetch sensibly.
    flops = int(2 * Bp * F_PAD * CODE_SIZE
                + 2 * Bp * CODE_SIZE * F_PAD
                + 2 * Bp * F_PAD * F_PAD)
    bytes_accessed = int(4 * (xp.size + w1p.size + b1.size + w2p.size
                              + b2p.size + w3p.size + b3p.size + Bp * F_PAD))
    cost = pl.CostEstimate(flops=flops,
                           transcendentals=int(Bp * CODE_SIZE),
                           bytes_accessed=bytes_accessed)

    out_padded = pl.pallas_call(
        autoencoder_kernel,
        out_shape=jax.ShapeDtypeStruct((Bp, F_PAD), jnp.float32),
        grid=grid,
        in_specs=[
            x_spec,                              # x tile (streams with batch)
            resident((CODE_SIZE, F_PAD)),        # W1 (torch layout, lane-dense)
            resident((1, CODE_SIZE)),            # b1
            resident((CODE_SIZE, F_PAD)),        # W2^T
            resident((1, F_PAD)),                # b2
            resident((F_PAD, F_PAD)),            # W3^T  (the big one)
            resident((1, F_PAD)),                # b3
        ],
        out_specs=out_spec,
        compiler_params=pltpu.CompilerParams(
            dimension_semantics=("parallel",)),  # megacore split on v7x
        cost_estimate=cost,
    )(xp, w1p, b1, w2p, b2p, w3p, b3p)

    return out_padded[:B, :IN_DIM]


def init_params(key):
    """Deterministic init mirroring nn.Linear's U(-1/sqrt(fan_in), 1/sqrt(fan_in))."""
    ks = jax.random.split(key, 6)

    def linear(kw, kb, fan_in, fan_out, transpose):
        bound = 1.0 / jnp.sqrt(fan_in)
        if transpose:   # stored as [in, out] (torch weight.T) for decoder layers
            w = jax.random.uniform(kw, (fan_in, fan_out), jnp.float32,
                                   -bound, bound)
        else:           # stored in natural torch layout [out, in] (encoder)
            w = jax.random.uniform(kw, (fan_out, fan_in), jnp.float32,
                                   -bound, bound)
        b = jax.random.uniform(kb, (1, fan_out), jnp.float32, -bound, bound)
        return w, b

    w1, b1 = linear(ks[0], ks[1], IN_DIM, CODE_SIZE, transpose=False)   # enc_l1
    w2_t, b2 = linear(ks[2], ks[3], CODE_SIZE, IN_DIM, transpose=True)  # dec_l1
    w3_t, b3 = linear(ks[4], ks[5], IN_DIM, IN_DIM, transpose=True)     # dec_l2
    return w1, b1, w2_t, b2, w3_t, b3


def reference_forward(x, w1, b1, w2_t, b2, w3_t, b3):
    h = jnp.tanh(x @ w1.T + b1)
    d1 = jax.nn.relu(h @ w2_t + b2)
    d2 = jax.nn.relu(d1 @ w3_t + b3)
    return d2


if __name__ == "__main__":
    key = jax.random.PRNGKey(0)
    k_x, k_p = jax.random.split(key)
    x = jax.random.normal(k_x, (BATCH, IN_DIM), dtype=jnp.float32)
    params = init_params(k_p)

    out = autoencoder_forward(x, *params, block_b=BLOCK_B)
    out = jax.block_until_ready(out)

    ref = reference_forward(x, *params)
    assert out.shape == (BATCH, IN_DIM)
    assert jnp.allclose(out, ref, atol=1e-4, rtol=1e-4), "mismatch vs reference"
    print("KERNEL_OK")
</pallas_src>

<mosaic_0001>
module attributes {stable_mosaic.version = 11 : i64} {
  func.func @autoencoder_kernel(%arg0: i32, %arg1: memref<8x896xf32, #tpu.memory_space<vmem>>, %arg2: memref<2x896xf32, #tpu.memory_space<vmem>>, %arg3: memref<1x2xf32, #tpu.memory_space<vmem>>, %arg4: memref<2x896xf32, #tpu.memory_space<vmem>>, %arg5: memref<1x896xf32, #tpu.memory_space<vmem>>, %arg6: memref<896x896xf32, #tpu.memory_space<vmem>>, %arg7: memref<1x896xf32, #tpu.memory_space<vmem>>, %arg8: memref<8x896xf32, #tpu.memory_space<vmem>>) attributes {dimension_semantics = [#tpu.dimension_semantics<parallel>], iteration_bounds = array<i64: 2>, scalar_prefetch = 0 : i64, scratch_operands = 0 : i64, tpu.core_type = #tpu.core_type<tc>, window_params = [{transform_indices = @transform_0, window_bounds = array<i64: 8, 896>}, {pipeline_mode = #tpu.pipeline_mode<synchronous>, transform_indices = @transform_1, window_bounds = array<i64: 2, 896>}, {pipeline_mode = #tpu.pipeline_mode<synchronous>, transform_indices = @transform_2, window_bounds = array<i64: 1, 2>}, {pipeline_mode = #tpu.pipeline_mode<synchronous>, transform_indices = @transform_3, window_bounds = array<i64: 2, 896>}, {pipeline_mode = #tpu.pipeline_mode<synchronous>, transform_indices = @transform_4, window_bounds = array<i64: 1, 896>}, {pipeline_mode = #tpu.pipeline_mode<synchronous>, transform_indices = @transform_5, window_bounds = array<i64: 896, 896>}, {pipeline_mode = #tpu.pipeline_mode<synchronous>, transform_indices = @transform_6, window_bounds = array<i64: 1, 896>}, {transform_indices = @transform_7, window_bounds = array<i64: 8, 896>}]} {
    %c0 = arith.constant 0 : index
    %c0_0 = arith.constant 0 : index
    %0 = vector.load %arg1[%c0, %c0_0] : memref<8x896xf32, #tpu.memory_space<vmem>>, vector<8x896xf32>
    %c0_1 = arith.constant 0 : index
    %c0_2 = arith.constant 0 : index
    %1 = vector.load %arg2[%c0_1, %c0_2] : memref<2x896xf32, #tpu.memory_space<vmem>>, vector<2x896xf32>
    %cst = arith.constant dense<0.000000e+00> : vector<8x2xf32>
    %2 = tpu.matmul %0, %1, %cst {dimension_numbers = #tpu.dot_dimension_numbers<[1], [1], [0], [0], [0, 0, 1, 0], [], []>} : vector<8x896xf32>, vector<2x896xf32>, vector<8x2xf32> -> vector<8x2xf32>
    %c0_3 = arith.constant 0 : index
    %c0_4 = arith.constant 0 : index
    %3 = vector.load %arg3[%c0_3, %c0_4] : memref<1x2xf32, #tpu.memory_space<vmem>>, vector<1x2xf32>
    %4 = vector.broadcast %3 : vector<1x2xf32> to vector<8x2xf32>
    %5 = arith.addf %2, %4 : vector<8x2xf32>
    %6 = math.tanh %5 : vector<8x2xf32>
    %c0_5 = arith.constant 0 : index
    %c0_6 = arith.constant 0 : index
    %7 = vector.load %arg4[%c0_5, %c0_6] : memref<2x896xf32, #tpu.memory_space<vmem>>, vector<2x896xf32>
    %cst_7 = arith.constant dense<0.000000e+00> : vector<8x896xf32>
    %8 = tpu.matmul %6, %7, %cst_7 {dimension_numbers = #tpu.dot_dimension_numbers<[1], [0], [0], [1], [0, 0, 1, 1], [], []>} : vector<8x2xf32>, vector<2x896xf32>, vector<8x896xf32> -> vector<8x896xf32>
    %c0_8 = arith.constant 0 : index
    %c0_9 = arith.constant 0 : index
    %9 = vector.load %arg5[%c0_8, %c0_9] : memref<1x896xf32, #tpu.memory_space<vmem>>, vector<1x896xf32>
    %10 = vector.broadcast %9 : vector<1x896xf32> to vector<8x896xf32>
    %11 = arith.addf %8, %10 : vector<8x896xf32>
    %cst_10 = arith.constant 0.000000e+00 : f32
    %12 = vector.broadcast %cst_10 : f32 to vector<8x896xf32>
    %13 = arith.maximumf %11, %12 : vector<8x896xf32>
    %c0_11 = arith.constant 0 : index
    %c0_12 = arith.constant 0 : index
    %14 = vector.load %arg6[%c0_11, %c0_12] : memref<896x896xf32, #tpu.memory_space<vmem>>, vector<896x896xf32>
    %cst_13 = arith.constant dense<0.000000e+00> : vector<8x896xf32>
    %15 = tpu.matmul %13, %14, %cst_13 {dimension_numbers = #tpu.dot_dimension_numbers<[1], [0], [0], [1], [0, 0, 1, 1], [], []>} : vector<8x896xf32>, vector<896x896xf32>, vector<8x896xf32> -> vector<8x896xf32>
    %c0_14 = arith.constant 0 : index
    %c0_15 = arith.constant 0 : index
    %16 = vector.load %arg7[%c0_14, %c0_15] : memref<1x896xf32, #tpu.memory_space<vmem>>, vector<1x896xf32>
    %17 = vector.broadcast %16 : vector<1x896xf32> to vector<8x896xf32>
    %18 = arith.addf %15, %17 : vector<8x896xf32>
    %cst_16 = arith.constant 0.000000e+00 : f32
    %19 = vector.broadcast %cst_16 : f32 to vector<8x896xf32>
    %20 = arith.maximumf %18, %19 : vector<8x896xf32>
    %c0_17 = arith.constant 0 : index
    %c0_18 = arith.constant 0 : index
    %21 = vector.load %arg8[%c0_17, %c0_18] : memref<8x896xf32, #tpu.memory_space<vmem>>, vector<8x896xf32>
    tpu.vector_store %arg8[%c0_17, %c0_18], %20 {strides = array<i32>} : memref<8x896xf32, #tpu.memory_space<vmem>>, vector<8x896xf32>,
    return
  }
  func.func @transform_0(%arg0: i32) -> (i32, i32) {
    %c0_i32 = arith.constant 0 : i32
    %c0_i32_0 = arith.constant 0 : i32
    return %arg0, %c0_i32 : i32, i32
  }
  func.func @transform_1(%arg0: i32) -> (i32, i32) {
    %c0_i32 = arith.constant 0 : i32
    %c0_i32_0 = arith.constant 0 : i32
    %c0_i32_1 = arith.constant 0 : i32
    return %c0_i32, %c0_i32_0 : i32, i32
  }
  func.func @transform_2(%arg0: i32) -> (i32, i32) {
    %c0_i32 = arith.constant 0 : i32
    %c0_i32_0 = arith.constant 0 : i32
    %c0_i32_1 = arith.constant 0 : i32
    return %c0_i32, %c0_i32_0 : i32, i32
  }
  func.func @transform_3(%arg0: i32) -> (i32, i32) {
    %c0_i32 = arith.constant 0 : i32
    %c0_i32_0 = arith.constant 0 : i32
    %c0_i32_1 = arith.constant 0 : i32
    return %c0_i32, %c0_i32_0 : i32, i32
  }
  func.func @transform_4(%arg0: i32) -> (i32, i32) {
    %c0_i32 = arith.constant 0 : i32
    %c0_i32_0 = arith.constant 0 : i32
    %c0_i32_1 = arith.constant 0 : i32
    return %c0_i32, %c0_i32_0 : i32, i32
  }
  func.func @transform_5(%arg0: i32) -> (i32, i32) {
    %c0_i32 = arith.constant 0 : i32
    %c0_i32_0 = arith.constant 0 : i32
    %c0_i32_1 = arith.constant 0 : i32
    return %c0_i32, %c0_i32_0 : i32, i32
  }
  func.func @transform_6(%arg0: i32) -> (i32, i32) {
    %c0_i32 = arith.constant 0 : i32
    %c0_i32_0 = arith.constant 0 : i32
    %c0_i32_1 = arith.constant 0 : i32
    return %c0_i32, %c0_i32_0 : i32, i32
  }
  func.func @transform_7(%arg0: i32) -> (i32, i32) {
    %c0_i32 = arith.constant 0 : i32
    %c0_i32_0 = arith.constant 0 : i32
    return %arg0, %c0_i32 : i32, i32
  }
}

</mosaic_0001>

<llo_original>
// kernel: tpu_custom_call.1
$region0: #{tpu_custom_call.1}
  #allocation0 [shape = 'u32[]', space=smem, size = 0x4, offset = 0x4, fixed_abs, tag = 'smem constant byte address 0x4 - core index']
  #allocation1 [shape = 'u32[144,128]{1,0:T(1,128)}', space=vmem, size = 0x12000, scoped, tag = 'internal scratch']
  %s0 = inlined_call_operand.hbm [shape: f32[16,896], index: 0, kind: input, shape index: {}]
  %s1 = inlined_call_operand.hbm [shape: f32[2,896], index: 1, kind: input, shape index: {}]
  %s2 = inlined_call_operand.hbm [shape: f32[1,2], index: 2, kind: input, shape index: {}]
  %s3 = inlined_call_operand.hbm [shape: f32[2,896], index: 3, kind: input, shape index: {}]
  %s4 = inlined_call_operand.hbm [shape: f32[1,896], index: 4, kind: input, shape index: {}]
  %s5 = inlined_call_operand.hbm [shape: f32[896,896], index: 5, kind: input, shape index: {}]
  %s6 = inlined_call_operand.hbm [shape: f32[1,896], index: 6, kind: input, shape index: {}]
  %s7 = inlined_call_operand.hbm [shape: f32[16,896], index: 7, kind: output, shape index: {}]
  %s8 = sld [smem:[#allocation0]]
  $region89: #{tpu_custom_call.1} parent=0
    _
  %s10 = ssub.s32 1, %s8
  %s11 = scalar_select 0, %s10, %s8
  $region1: #{tpu_custom_call.1} parent=0
    #allocation2 [shape = 'u8[57344]{0}', space=vmem, size = 0xe000, scoped, tag = 'input window, operand 0']
    #allocation3 [shape = 's32[2]{0}', space=sflag, size = 0x8, scoped, tag = 'scoped memory for tpu_custom_call.1']
    #allocation4 [shape = 's32[2]{0}', space=sflag, size = 0x8, scoped, tag = 'scoped memory for tpu_custom_call.1']
    #allocation5 [shape = 'u8[7168]{0}', space=vmem, size = 0x1c00, scoped, tag = 'input window, operand 1, single buffered']
    #allocation6 [shape = 's32[1]{0}', space=sflag, size = 0x4, scoped, tag = 'scoped memory for tpu_custom_call.1']
    #allocation7 [shape = 'u8[512]{0}', space=vmem, size = 0x400, scoped, tag = 'input window, operand 2, single buffered']
    #allocation8 [shape = 'u8[7168]{0}', space=vmem, size = 0x1c00, scoped, tag = 'input window, operand 3, single buffered']
    #allocation9 [shape = 's32[1]{0}', space=sflag, size = 0x4, scoped, tag = 'scoped memory for tpu_custom_call.1']
    #allocation10 [shape = 'u8[3584]{0}', space=vmem, size = 0x1000, scoped, tag = 'input window, operand 4, single buffered']
    #allocation11 [shape = 'u8[3211264]{0}', space=vmem, size = 0x310000, scoped, tag = 'input window, operand 5, single buffered']
    #allocation12 [shape = 's32[1]{0}', space=sflag, size = 0x4, scoped, tag = 'scoped memory for tpu_custom_call.1']
    #allocation13 [shape = 'u8[3584]{0}', space=vmem, size = 0x1000, scoped, tag = 'input window, operand 6, single buffered']
    #allocation14 [shape = 'u8[57344]{0}', space=vmem, size = 0xe000, scoped, tag = 'output window, operand 0']
    %12 = vsyncpa [#allocation3], 0
    %s13 = scalar_lea.sflag [#allocation3], 1
    %14 = vsyncpa %s13, 0
    %15 = vsyncpa [#allocation6], 0
    %16 = vsyncpa [#allocation9], 0
    %17 = vsyncpa [#allocation12], 0
    %18 = vsyncpa [#allocation4], 0
    %s19 = scalar_lea.sflag [#allocation4], 1
    %20 = vsyncpa %s19, 0
    loop: start=0, step=1, limit=4
    $region2: #{tpu_custom_call.1} parent=1 // loop_pre_header
      _
    $region3: #{tpu_custom_call.1} parent=1 // loop_header
      %s22 = sphi 0, %s26
      %p23 = scmp.ge.s32.totalorder %s22, 4
      %s32 = sphi 0, %s34
      %s35 = sphi 0, %s32
      %s36 = sphi 0, %s35
      %s52 = sphi 0, %s36
      %s56 = sphi 0, %s56
      %s58 = sphi 0, %s56
      %s59 = sphi 0, %s58
      %s73 = sphi 0, %s59
      %s77 = sphi 0, %s77
      %s79 = sphi 0, %s77
      %s80 = sphi 0, %s79
      %s94 = sphi 0, %s80
      %s98 = sphi 0, %s98
      %s100 = sphi 0, %s98
      %s101 = sphi 0, %s100
      %s115 = sphi 0, %s101
      %s119 = sphi 0, %s119
      %s121 = sphi 0, %s119
      %s122 = sphi 0, %s121
      %s136 = sphi 0, %s122
      %s140 = sphi 0, %s140
      %s142 = sphi 0, %s140
      %s143 = sphi 0, %s142
      %s157 = sphi 0, %s143
      %s161 = sphi 0, %s161
      %s163 = sphi 0, %s161
      %s164 = sphi 0, %s163
      %s178 = sphi 0, %s164
      %s184 = sphi 0, %s186
      %s187 = sphi 0, %s184
      %s188 = sphi 0, %s187
      %s204 = sphi 0, %s188
    $region4: #{tpu_custom_call.1} parent=1 // loop_header_branch
      %25 = sbr.rel (%p23) target = $region8
    $region5: #{tpu_custom_call.1} parent=1 // loop_body
      %s27 = ssub.s32 %s22, 1
      %s28 = ssub.s32 %s22, 2
      %s29 = sadd.s32 %s22, 1
      %s30 = ssub.s32 %s22, %s29
      %p31 = scmp.eq.s32.totalorder %s30, 0
      %s33 = sadd.s32 %s32, 1
      %s34 = scalar_select %p31, %s32, %s33
      %p37 = pneg %p31
      %p38 = scmp.eq.s32.totalorder %s22, 1
      %p39 = por %p37, %p38
      %p40 = scmp.ne.s32.totalorder %s32, %s35
      %p41 = scmp.eq.s32.totalorder %s22, 0
      %p42 = por %p40, %p41
      %p43 = scmp.ne.s32.totalorder %s32, %s35
      %p44 = scmp.eq.s32.totalorder %s27, 1
      %p45 = por %p43, %p44
      %p46 = scmp.ne.s32.totalorder %s35, %s36
      %p47 = scmp.eq.s32.totalorder %s27, 0
      %p48 = por %p46, %p47
      %p49 = scmp.ne.s32.totalorder %s35, %s36
      %p50 = scmp.eq.s32.totalorder %s28, 1
      %p51 = por %p49, %p50
      %p53 = scmp.ne.s32.totalorder %s36, %s52
      %p54 = scmp.eq.s32.totalorder %s28, 0
      %p55 = por %p53, %p54
      %s57 = sadd.s32 %s56, 1
      %p60 = scmp.eq.s32.totalorder %s22, 1
      %p61 = scmp.ne.s32.totalorder %s56, %s58
      %p62 = scmp.eq.s32.totalorder %s22, 0
      %p63 = por %p61, %p62
      %p64 = scmp.ne.s32.totalorder %s56, %s58
      %p65 = scmp.eq.s32.totalorder %s27, 1
      %p66 = por %p64, %p65
      %p67 = scmp.ne.s32.totalorder %s58, %s59
      %p68 = scmp.eq.s32.totalorder %s27, 0
      %p69 = por %p67, %p68
      %p70 = scmp.ne.s32.totalorder %s58, %s59
      %p71 = scmp.eq.s32.totalorder %s28, 1
      %p72 = por %p70, %p71
      %p74 = scmp.ne.s32.totalorder %s59, %s73
      %p75 = scmp.eq.s32.totalorder %s28, 0
      %p76 = por %p74, %p75
      %s78 = sadd.s32 %s77, 1
      %p81 = scmp.eq.s32.totalorder %s22, 1
      %p82 = scmp.ne.s32.totalorder %s77, %s79
      %p83 = scmp.eq.s32.totalorder %s22, 0
      %p84 = por %p82, %p83
      %p85 = scmp.ne.s32.totalorder %s77, %s79
      %p86 = scmp.eq.s32.totalorder %s27, 1
      %p87 = por %p85, %p86
      %p88 = scmp.ne.s32.totalorder %s79, %s80
      %p89 = scmp.eq.s32.totalorder %s27, 0
      %p90 = por %p88, %p89
      %p91 = scmp.ne.s32.totalorder %s79, %s80
      %p92 = scmp.eq.s32.totalorder %s28, 1
      %p93 = por %p91, %p92
      %p95 = scmp.ne.s32.totalorder %s80, %s94
      %p96 = scmp.eq.s32.totalorder %s28, 0
      %p97 = por %p95, %p96
      %s99 = sadd.s32 %s98, 1
      %p102 = scmp.eq.s32.totalorder %s22, 1
      %p103 = scmp.ne.s32.totalorder %s98, %s100
      %p104 = scmp.eq.s32.totalorder %s22, 0
      %p105 = por %p103, %p104
      %p106 = scmp.ne.s32.totalorder %s98, %s100
      %p107 = scmp.eq.s32.totalorder %s27, 1
      %p108 = por %p106, %p107
      %p109 = scmp.ne.s32.totalorder %s100, %s101
      %p110 = scmp.eq.s32.totalorder %s27, 0
      %p111 = por %p109, %p110
      %p112 = scmp.ne.s32.totalorder %s100, %s101
      %p113 = scmp.eq.s32.totalorder %s28, 1
      %p114 = por %p112, %p113
      %p116 = scmp.ne.s32.totalorder %s101, %s115
      %p117 = scmp.eq.s32.totalorder %s28, 0
      %p118 = por %p116, %p117
      %s120 = sadd.s32 %s119, 1
      %p123 = scmp.eq.s32.totalorder %s22, 1
      %p124 = scmp.ne.s32.totalorder %s119, %s121
      %p125 = scmp.eq.s32.totalorder %s22, 0
      %p126 = por %p124, %p125
      %p127 = scmp.ne.s32.totalorder %s119, %s121
      %p128 = scmp.eq.s32.totalorder %s27, 1
      %p129 = por %p127, %p128
      %p130 = scmp.ne.s32.totalorder %s121, %s122
      %p131 = scmp.eq.s32.totalorder %s27, 0
      %p132 = por %p130, %p131
      %p133 = scmp.ne.s32.totalorder %s121, %s122
      %p134 = scmp.eq.s32.totalorder %s28, 1
      %p135 = por %p133, %p134
      %p137 = scmp.ne.s32.totalorder %s122, %s136
      %p138 = scmp.eq.s32.totalorder %s28, 0
      %p139 = por %p137, %p138
      %s141 = sadd.s32 %s140, 1
      %p144 = scmp.eq.s32.totalorder %s22, 1
      %p145 = scmp.ne.s32.totalorder %s140, %s142
      %p146 = scmp.eq.s32.totalorder %s22, 0
      %p147 = por %p145, %p146
      %p148 = scmp.ne.s32.totalorder %s140, %s142
      %p149 = scmp.eq.s32.totalorder %s27, 1
      %p150 = por %p148, %p149
      %p151 = scmp.ne.s32.totalorder %s142, %s143
      %p152 = scmp.eq.s32.totalorder %s27, 0
      %p153 = por %p151, %p152
      %p154 = scmp.ne.s32.totalorder %s142, %s143
      %p155 = scmp.eq.s32.totalorder %s28, 1
      %p156 = por %p154, %p155
      %p158 = scmp.ne.s32.totalorder %s143, %s157
      %p159 = scmp.eq.s32.totalorder %s28, 0
      %p160 = por %p158, %p159
      %s162 = sadd.s32 %s161, 1
      %p165 = scmp.eq.s32.totalorder %s22, 1
      %p166 = scmp.ne.s32.totalorder %s161, %s163
      %p167 = scmp.eq.s32.totalorder %s22, 0
      %p168 = por %p166, %p167
      %p169 = scmp.ne.s32.totalorder %s161, %s163
      %p170 = scmp.eq.s32.totalorder %s27, 1
      %p171 = por %p169, %p170
      %p172 = scmp.ne.s32.totalorder %s163, %s164
      %p173 = scmp.eq.s32.totalorder %s27, 0
      %p174 = por %p172, %p173
      %p175 = scmp.ne.s32.totalorder %s163, %s164
      %p176 = scmp.eq.s32.totalorder %s28, 1
      %p177 = por %p175, %p176
      %p179 = scmp.ne.s32.totalorder %s164, %s178
      %p180 = scmp.eq.s32.totalorder %s28, 0
      %p181 = por %p179, %p180
      %s182 = ssub.s32 %s22, %s29
      %p183 = scmp.eq.s32.totalorder %s182, 0
      %s185 = sadd.s32 %s184, 1
      %s186 = scalar_select %p183, %s184, %s185
      %p189 = pneg %p183
      %p190 = scmp.eq.s32.totalorder %s22, 1
      %p191 = por %p189, %p190
      %p192 = scmp.ne.s32.totalorder %s184, %s187
      %p193 = scmp.eq.s32.totalorder %s22, 0
      %p194 = por %p192, %p193
      %p195 = scmp.ne.s32.totalorder %s184, %s187
      %p196 = scmp.eq.s32.totalorder %s27, 1
      %p197 = por %p195, %p196
      %p198 = scmp.ne.s32.totalorder %s187, %s188
      %p199 = scmp.eq.s32.totalorder %s27, 0
      %p200 = por %p198, %p199
      %p201 = scmp.ne.s32.totalorder %s187, %s188
      %p202 = scmp.eq.s32.totalorder %s28, 1
      %p203 = por %p201, %p202
      %p205 = scmp.ne.s32.totalorder %s188, %s204
      %p206 = scmp.eq.s32.totalorder %s28, 0
      %p207 = por %p205, %p206
      %p208 = scmp.le.s32.totalorder 1, %s22
      %p209 = scmp.lt.s32.totalorder %s22, 3
      %p210 = pnand %p208, %p209
      %p211 = pneg %p210
      // Predicated region
      $region9: #{tpu_custom_call.1} parent=5 // pred_check
        _
      $region10: #{tpu_custom_call.1} parent=5 // pred_check_branch
        %213 = sbr.rel (%p210) target = $region12
      $region11: #{tpu_custom_call.1} parent=5 // pred_region
        %s214 = ssub.s32 %s22, 1
        // Predicated region
        $region13: #{tpu_custom_call.1} parent=11 // pred_check
          %p215 = pneg %p69
        $region14: #{tpu_custom_call.1} parent=11 // pred_check_branch
          %217 = sbr.rel (%p215) target = $region16
        $region15: #{tpu_custom_call.1} parent=11 // pred_region
          %s219 = ssub.s32 224, 224
          %220 = vsyncadd [#allocation6], %s219
          %s222 = sshll.u32 [#allocation5], 4
          %s223 = int_to_ptr.vmem [resolvable:$true] %s222
          %225 = dma.hbm_to_vmem [thread:$0]  %s1, 224, %s223, [#allocation6]
        $region16: #{tpu_custom_call.1} parent=11 // pred_fallthru
          _
        // Predicated region
        $region17: #{tpu_custom_call.1} parent=11 // pred_check
          %p226 = pneg %p90
        $region18: #{tpu_custom_call.1} parent=11 // pred_check_branch
          %228 = sbr.rel (%p226) target = $region20
        $region19: #{tpu_custom_call.1} parent=11 // pred_region
          %s230 = ssub.s32 16, 16
          %231 = vsyncadd [#allocation6], %s230
          %s233 = sshll.u32 [#allocation7], 4
          %s234 = int_to_ptr.vmem [resolvable:$true] %s233
          %236 = dma.hbm_to_vmem [thread:$0]  %s2, 16, %s234, [#allocation6]
        $region20: #{tpu_custom_call.1} parent=11 // pred_fallthru
          _
        // Predicated region
        $region21: #{tpu_custom_call.1} parent=11 // pred_check
          %p237 = pneg %p111
        $region22: #{tpu_custom_call.1} parent=11 // pred_check_branch
          %239 = sbr.rel (%p237) target = $region24
        $region23: #{tpu_custom_call.1} parent=11 // pred_region
          %s241 = ssub.s32 224, 224
          %242 = vsyncadd [#allocation9], %s241
          %s244 = sshll.u32 [#allocation8], 4
          %s245 = int_to_ptr.vmem [resolvable:$true] %s244
          %247 = dma.hbm_to_vmem [thread:$0]  %s3, 224, %s245, [#allocation9]
        $region24: #{tpu_custom_call.1} parent=11 // pred_fallthru
          _
        // Predicated region
        $region25: #{tpu_custom_call.1} parent=11 // pred_check
          %p248 = pneg %p132
        $region26: #{tpu_custom_call.1} parent=11 // pred_check_branch
          %250 = sbr.rel (%p248) target = $region28
        $region27: #{tpu_custom_call.1} parent=11 // pred_region
          %s252 = ssub.s32 112, 112
          %253 = vsyncadd [#allocation9], %s252
          %s255 = sshll.u32 [#allocation10], 4
          %s256 = int_to_ptr.vmem [resolvable:$true] %s255
          %258 = dma.hbm_to_vmem [thread:$0]  %s4, 112, %s256, [#allocation9]
        $region28: #{tpu_custom_call.1} parent=11 // pred_fallthru
          _
        // Predicated region
        $region29: #{tpu_custom_call.1} parent=11 // pred_check
          %p259 = pneg %p153
        $region30: #{tpu_custom_call.1} parent=11 // pred_check_branch
          %261 = sbr.rel (%p259) target = $region32
        $region31: #{tpu_custom_call.1} parent=11 // pred_region
          %s263 = ssub.s32 100352, 100352
          %264 = vsyncadd [#allocation12], %s263
          %s265 = sshll.u32 [#allocation11], 4
          %s266 = int_to_ptr.vmem [resolvable:$true] %s265
          %271 = dma.hbm_to_vmem [thread:$0]  %s5, 100352, %s266, [#allocation12], 896, 896, 56
        $region32: #{tpu_custom_call.1} parent=11 // pred_fallthru
          _
        // Predicated region
        $region33: #{tpu_custom_call.1} parent=11 // pred_check
          %p272 = pneg %p174
        $region34: #{tpu_custom_call.1} parent=11 // pred_check_branch
          %274 = sbr.rel (%p272) target = $region36
        $region35: #{tpu_custom_call.1} parent=11 // pred_region
          %s276 = ssub.s32 112, 112
          %277 = vsyncadd [#allocation12], %s276
          %s279 = sshll.u32 [#allocation13], 4
          %s280 = int_to_ptr.vmem [resolvable:$true] %s279
          %282 = dma.hbm_to_vmem [thread:$0]  %s6, 112, %s280, [#allocation12]
        $region36: #{tpu_custom_call.1} parent=11 // pred_fallthru
          _
      $region12: #{tpu_custom_call.1} parent=5 // pred_fallthru
        _
      %p283 = scmp.lt.s32.totalorder %s22, 2
      // Predicated region
      $region37: #{tpu_custom_call.1} parent=5 // pred_check
        %p284 = pneg %p283
      $region38: #{tpu_custom_call.1} parent=5 // pred_check_branch
        %286 = sbr.rel (%p284) target = $region40
      $region39: #{tpu_custom_call.1} parent=5 // pred_region
        // Predicated region
        $region41: #{tpu_custom_call.1} parent=39 // pred_check
          %p287 = pneg %p42
        $region42: #{tpu_custom_call.1} parent=39 // pred_check_branch
          %289 = sbr.rel (%p287) target = $region44
        $region43: #{tpu_custom_call.1} parent=39 // pred_region
          %s290 = sand.u32 %s32, 1
          %s291 = scalar_lea.sflag [#allocation3], %s290
          %s292 = sand.u32 %s32, 1
          %s293 = smul.addr %s292, 56
          %s294 = scalar_lea.vmem [#allocation2], %s293
          %s296 = ssub.s32 896, 896
          %297 = vsyncadd %s291, %s296
          %s298 = smul.addr %s22, 7
          %s299 = smul.addr %s298, 128
          %s300 = scalar_lea.hbm %s0, %s299
          %s302 = sshll.u32 %s294, 4
          %s303 = int_to_ptr.vmem [resolvable:$true] %s302
          %305 = dma.hbm_to_vmem [thread:$0]  %s300, 896, %s303, %s291
        $region44: #{tpu_custom_call.1} parent=39 // pred_fallthru
          _
      $region40: #{tpu_custom_call.1} parent=5 // pred_fallthru
        _
      %p306 = scmp.le.s32.totalorder 1, %s22
      %p307 = scmp.lt.s32.totalorder %s22, 3
      %p308 = pnand %p306, %p307
      %p309 = pneg %p308
      // Predicated region
      $region45: #{tpu_custom_call.1} parent=5 // pred_check
        _
      $region46: #{tpu_custom_call.1} parent=5 // pred_check_branch
        %311 = sbr.rel (%p308) target = $region48
      $region47: #{tpu_custom_call.1} parent=5 // pred_region
        %s312 = ssub.s32 %s22, 1
        %s313 = sand.u32 %s35, 1
        %s314 = scalar_lea.sflag [#allocation3], %s313
        %s315 = sand.u32 %s35, 1
        %s316 = smul.addr %s315, 56
        %s317 = scalar_lea.vmem [#allocation2], %s316
        // Predicated region
        $region49: #{tpu_custom_call.1} parent=47 // pred_check
          %p318 = pneg %p48
        $region50: #{tpu_custom_call.1} parent=47 // pred_check_branch
          %320 = sbr.rel (%p318) target = $region52
        $region51: #{tpu_custom_call.1} parent=47 // pred_region
          %321 = dma.done %s314, 896
        $region52: #{tpu_custom_call.1} parent=47 // pred_fallthru
          _
        // Predicated region
        $region53: #{tpu_custom_call.1} parent=47 // pred_check
          %p322 = pneg %p69
        $region54: #{tpu_custom_call.1} parent=47 // pred_check_branch
          %324 = sbr.rel (%p322) target = $region56
        $region55: #{tpu_custom_call.1} parent=47 // pred_region
          %325 = dma.done [#allocation6], 224
        $region56: #{tpu_custom_call.1} parent=47 // pred_fallthru
          _
        // Predicated region
        $region57: #{tpu_custom_call.1} parent=47 // pred_check
          %p326 = pneg %p90
        $region58: #{tpu_custom_call.1} parent=47 // pred_check_branch
          %328 = sbr.rel (%p326) target = $region60
        $region59: #{tpu_custom_call.1} parent=47 // pred_region
          %329 = dma.done [#allocation6], 16
        $region60: #{tpu_custom_call.1} parent=47 // pred_fallthru
          _
        // Predicated region
        $region61: #{tpu_custom_call.1} parent=47 // pred_check
          %p330 = pneg %p111
        $region62: #{tpu_custom_call.1} parent=47 // pred_check_branch
          %332 = sbr.rel (%p330) target = $region64
        $region63: #{tpu_custom_call.1} parent=47 // pred_region
          %333 = dma.done [#allocation9], 224
        $region64: #{tpu_custom_call.1} parent=47 // pred_fallthru
          _
        // Predicated region
        $region65: #{tpu_custom_call.1} parent=47 // pred_check
          %p334 = pneg %p132
        $region66: #{tpu_custom_call.1} parent=47 // pred_check_branch
          %336 = sbr.rel (%p334) target = $region68
        $region67: #{tpu_custom_call.1} parent=47 // pred_region
          %337 = dma.done [#allocation9], 112
        $region68: #{tpu_custom_call.1} parent=47 // pred_fallthru
          _
        // Predicated region
        $region69: #{tpu_custom_call.1} parent=47 // pred_check
          %p338 = pneg %p153
        $region70: #{tpu_custom_call.1} parent=47 // pred_check_branch
          %340 = sbr.rel (%p338) target = $region72
        $region71: #{tpu_custom_call.1} parent=47 // pred_region
          %341 = dma.done [#allocation12], 100352
        $region72: #{tpu_custom_call.1} parent=47 // pred_fallthru
          _
        // Predicated region
        $region73: #{tpu_custom_call.1} parent=47 // pred_check
          %p342 = pneg %p174
        $region74: #{tpu_custom_call.1} parent=47 // pred_check_branch
          %344 = sbr.rel (%p342) target = $region76
        $region75: #{tpu_custom_call.1} parent=47 // pred_region
          %345 = dma.done [#allocation12], 112
        $region76: #{tpu_custom_call.1} parent=47 // pred_fallthru
          _
        %s346 = sand.u32 %s35, 1
        %s347 = scalar_lea.sflag [#allocation3], %s346
        %s348 = sand.u32 %s35, 1
        %s349 = smul.addr %s348, 56
        %s350 = scalar_lea.vmem [#allocation2], %s349
        %p351 = pneg %p48
        %p352 = pneg %p45
        %p353 = pneg %p69
        %p354 = pneg %p66
        %p355 = pneg %p90
        %p356 = pneg %p87
        %p357 = pneg %p111
        %p358 = pneg %p108
        %p359 = pneg %p132
        %p360 = pneg %p129
        %p361 = pneg %p153
        %p362 = pneg %p150
        %p363 = pneg %p174
        %p364 = pneg %p171
        %p365 = pneg %p200
        %p366 = pneg %p197
        %s367 = sand.u32 %s187, 1
        %s368 = scalar_lea.sflag [#allocation4], %s367
        %s369 = sand.u32 %s187, 1
        %s370 = smul.addr %s369, 56
        %s371 = scalar_lea.vmem [#allocation14], %s370
        %v372 = vld [vmem:[%s317] sm:$0xff]
        %v373 = vld [vmem:[%s317 + $0x8] sm:$0xff]
        %v374 = vld [vmem:[%s317 + $0x10] sm:$0xff]
        %v375 = vld [vmem:[%s317 + $0x18] sm:$0xff]
        %v376 = vld [vmem:[%s317 + $0x20] sm:$0xff]
        %v377 = vld [vmem:[%s317 + $0x28] sm:$0xff]
        %v378 = vld [vmem:[%s317 + $0x30] sm:$0xff]
        %v379 = vld [vmem:[#allocation5] sm:$0xff]
        %v380 = vld [vmem:[#allocation5 + $0x8] sm:$0x3f]
        %v381 = vld [vmem:[#allocation7] sm:$0x1]
        %v383 = vlaneseq
        %v384 = vshrl.u32 %v383, 7
        %v385 = vsub.s32 0, %v384
        %v386 = vrot.slane %v381, %v385
        %v390 = vcombine.high %v379, %v379
        %v392 = vunpack.c.l.s4 1983009808
        %v393 = vunpack.c.0.s8 %v392
        %v394 = vlaneseq
        %v395 = vshrl.u32 %v394, 7
        %v396 = vsub.s32 %v393, %v395
        %v397 = vrot.slane %v379, %v396
        %v399 = vunpack.c.l.s4 1983009808
        %v400 = vunpack.c.0.s8 %v399
        %v401 = vlaneseq
        %v402 = vshrl.u32 %v401, 7
        %v403 = vsub.s32 %v400, %v402
        %v404 = vrot.slane %v390, %v403
        %v405 = vcombine.high %v397, %v397
        %v406 = vcombine.high %v404, %v404
        %v407 = vcombine.high %v380, %v380
        %v409 = vunpack.c.l.s4 1983009808
        %v410 = vunpack.c.0.s8 %v409
        %v411 = vlaneseq
        %v412 = vshrl.u32 %v411, 7
        %v413 = vsub.s32 %v410, %v412
        %v414 = vrot.slane %v380, %v413
        %v416 = vunpack.c.l.s4 1983009808
        %v417 = vunpack.c.0.s8 %v416
        %v418 = vlaneseq
        %v419 = vshrl.u32 %v418, 7
        %v420 = vsub.s32 %v417, %v419
        %v421 = vrot.slane %v407, %v420
        %v422 = vcombine.high %v414, %v414
        %430 = vmatprep.subr.mxu0 %v405
        %431 = vmatpush1.xpose.msra.mxu0 %v397
        %432 = vmatprep.subr.mxu0 0.0
        %433 = vmatpush1.xpose.msra.mxu0 0.0
        %434 = vmatprep.subr.mxu0 0.0
        %435 = vmatpush1.xpose.msra.mxu0 0.0
        %436 = vmatprep.subr.mxu0 0.0
        %437 = vmatpush1.xpose.msra.mxu0 0.0
        %438 = vmatprep.subr.mxu0 0.0
        %439 = vmatpush1.xpose.msra.mxu0 0.0
        %440 = vmatprep.subr.mxu0 0.0
        %441 = vmatpush1.xpose.msra.mxu0 0.0
        %442 = vmatprep.subr.mxu0 0.0
        %443 = vmatpush1.xpose.msra.mxu0 0.0
        %444 = vmatprep.subr.mxu0 0.0
        %445 = vmatpush1.xpose.msra.mxu0 0.0
        %446 = vmatprep.subr.mxu0 0.0
        %447 = vmatpush1.xpose.msra.mxu0 0.0
        %448 = vmatprep.subr.mxu0 0.0
        %449 = vmatpush1.xpose.msra.mxu0 0.0
        %450 = vmatprep.subr.mxu0 0.0
        %451 = vmatpush1.xpose.msra.mxu0 0.0
        %452 = vmatprep.subr.mxu0 0.0
        %453 = vmatpush1.xpose.msra.mxu0 0.0
        %454 = vmatprep.subr.mxu0 0.0
        %455 = vmatpush1.xpose.msra.mxu0 0.0
        %456 = vmatprep.subr.mxu0 0.0
        %457 = vmatpush1.xpose.msra.mxu0 0.0
        %458 = vmatprep.subr.mxu0 0.0
        %459 = vmatpush1.xpose.msra.mxu0 0.0
        %460 = vmatprep.subr.mxu0 0.0
        %461 = vmatpush1.xpose.msra.mxu0 0.0
        %462 = vmatprep.subr.mxu0 0.0
        %463 = vmatpush1.xpose.msra.mxu0 0.0
        %464 = vmatprep.subr.mxu0 0.0
        %465 = vmatpush1.xpose.msra.mxu0 0.0
        %466 = vmatprep.subr.mxu0 0.0
        %467 = vmatpush1.xpose.msra.mxu0 0.0
        %468 = vmatprep.subr.mxu0 0.0
        %469 = vmatpush1.xpose.msra.mxu0 0.0
        %470 = vmatprep.subr.mxu0 0.0
        %471 = vmatpush1.xpose.msra.mxu0 0.0
        %472 = vmatprep.subr.mxu0 0.0
        %473 = vmatpush1.xpose.msra.mxu0 0.0
        %474 = vmatprep.subr.mxu0 0.0
        %475 = vmatpush1.xpose.msra.mxu0 0.0
        %476 = vmatprep.subr.mxu0 0.0
        %477 = vmatpush1.xpose.msra.mxu0 0.0
        %478 = vmatprep.subr.mxu0 0.0
        %479 = vmatpush1.xpose.msra.mxu0 0.0
        %480 = vmatprep.subr.mxu0 0.0
        %481 = vmatpush1.xpose.msra.mxu0 0.0
        %482 = vmatprep.subr.mxu0 0.0
        %483 = vmatpush1.xpose.msra.mxu0 0.0
        %484 = vmatprep.subr.mxu0 0.0
        %485 = vmatpush1.xpose.msra.mxu0 0.0
        %486 = vmatprep.subr.mxu0 0.0
        %487 = vmatpush1.xpose.msra.mxu0 0.0
        %488 = vmatprep.subr.mxu0 0.0
        %489 = vmatpush1.xpose.msra.mxu0 0.0
        %490 = vmatprep.subr.mxu0 0.0
        %491 = vmatpush1.xpose.msra.mxu0 0.0
        %492 = vmatprep.subr.mxu0 0.0
        %493 = vmatpush1.xpose.msra.mxu0 0.0
        %494 = vmatprep.mubr.f32.mxu0 %v373
        %495 = vmatmul.mubr.f32.gmra.mrb[0].mxu0 %v372
        %v496 = vpop.f32.mrb[0].mxu0
        %v497 = vadd.f32 %v386, %v496
        %v498 = vpop.f32.mrb[0].mxu0
        %499 = vdwg.mxu0
        %500 = vmatprep.subr.mxu0 %v406
        %501 = vmatpush1.xpose.msra.mxu0 %v404
        %502 = vmatprep.subr.mxu0 0.0
        %503 = vmatpush1.xpose.msra.mxu0 0.0
        %504 = vmatprep.subr.mxu0 0.0
        %505 = vmatpush1.xpose.msra.mxu0 0.0
        %506 = vmatprep.subr.mxu0 0.0
        %507 = vmatpush1.xpose.msra.mxu0 0.0
        %508 = vmatprep.subr.mxu0 0.0
        %509 = vmatpush1.xpose.msra.mxu0 0.0
        %510 = vmatprep.subr.mxu0 0.0
        %511 = vmatpush1.xpose.msra.mxu0 0.0
        %512 = vmatprep.subr.mxu0 0.0
        %513 = vmatpush1.xpose.msra.mxu0 0.0
        %514 = vmatprep.subr.mxu0 0.0
        %515 = vmatpush1.xpose.msra.mxu0 0.0
        %516 = vmatprep.subr.mxu0 0.0
        %517 = vmatpush1.xpose.msra.mxu0 0.0
        %518 = vmatprep.subr.mxu0 0.0
        %519 = vmatpush1.xpose.msra.mxu0 0.0
        %520 = vmatprep.subr.mxu0 0.0
        %521 = vmatpush1.xpose.msra.mxu0 0.0
        %522 = vmatprep.subr.mxu0 0.0
        %523 = vmatpush1.xpose.msra.mxu0 0.0
        %524 = vmatprep.subr.mxu0 0.0
        %525 = vmatpush1.xpose.msra.mxu0 0.0
        %526 = vmatprep.subr.mxu0 0.0
        %527 = vmatpush1.xpose.msra.mxu0 0.0
        %528 = vmatprep.subr.mxu0 0.0
        %529 = vmatpush1.xpose.msra.mxu0 0.0
        %530 = vmatprep.subr.mxu0 0.0
        %531 = vmatpush1.xpose.msra.mxu0 0.0
        %532 = vmatprep.subr.mxu0 0.0
        %533 = vmatpush1.xpose.msra.mxu0 0.0
        %534 = vmatprep.subr.mxu0 0.0
        %535 = vmatpush1.xpose.msra.mxu0 0.0
        %536 = vmatprep.subr.mxu0 0.0
        %537 = vmatpush1.xpose.msra.mxu0 0.0
        %538 = vmatprep.subr.mxu0 0.0
        %539 = vmatpush1.xpose.msra.mxu0 0.0
        %540 = vmatprep.subr.mxu0 0.0
        %541 = vmatpush1.xpose.msra.mxu0 0.0
        %542 = vmatprep.subr.mxu0 0.0
        %543 = vmatpush1.xpose.msra.mxu0 0.0
        %544 = vmatprep.subr.mxu0 0.0
        %545 = vmatpush1.xpose.msra.mxu0 0.0
        %546 = vmatprep.subr.mxu0 0.0
        %547 = vmatpush1.xpose.msra.mxu0 0.0
        %548 = vmatprep.subr.mxu0 0.0
        %549 = vmatpush1.xpose.msra.mxu0 0.0
        %550 = vmatprep.subr.mxu0 0.0
        %551 = vmatpush1.xpose.msra.mxu0 0.0
        %552 = vmatprep.subr.mxu0 0.0
        %553 = vmatpush1.xpose.msra.mxu0 0.0
        %554 = vmatprep.subr.mxu0 0.0
        %555 = vmatpush1.xpose.msra.mxu0 0.0
        %556 = vmatprep.subr.mxu0 0.0
        %557 = vmatpush1.xpose.msra.mxu0 0.0
        %558 = vmatprep.subr.mxu0 0.0
        %559 = vmatpush1.xpose.msra.mxu0 0.0
        %560 = vmatprep.subr.mxu0 0.0
        %561 = vmatpush1.xpose.msra.mxu0 0.0
        %562 = vmatprep.subr.mxu0 0.0
        %563 = vmatpush1.xpose.msra.mxu0 0.0
        %564 = vmatprep.mubr.f32.mxu0 %v375
        %565 = vmatmul.mubr.f32.gmra.mrb[0].mxu0 %v374
        %v566 = vpop.f32.mrb[0].mxu0
        %v567 = vadd.f32 %v497, %v566
        %v568 = vpop.f32.mrb[0].mxu0
        %569 = vdwg.mxu0
        %570 = vmatprep.subr.mxu0 %v422
        %571 = vmatpush1.xpose.msra.mxu0 %v414
        %572 = vmatprep.subr.mxu0 0.0
        %573 = vmatpush1.xpose.msra.mxu0 0.0
        %574 = vmatprep.subr.mxu0 0.0
        %575 = vmatpush1.xpose.msra.mxu0 0.0
        %576 = vmatprep.subr.mxu0 0.0
        %577 = vmatpush1.xpose.msra.mxu0 0.0
        %578 = vmatprep.subr.mxu0 0.0
        %579 = vmatpush1.xpose.msra.mxu0 0.0
        %580 = vmatprep.subr.mxu0 0.0
        %581 = vmatpush1.xpose.msra.mxu0 0.0
        %582 = vmatprep.subr.mxu0 0.0
        %583 = vmatpush1.xpose.msra.mxu0 0.0
        %584 = vmatprep.subr.mxu0 0.0
        %585 = vmatpush1.xpose.msra.mxu0 0.0
        %586 = vmatprep.subr.mxu0 0.0
        %587 = vmatpush1.xpose.msra.mxu0 0.0
        %588 = vmatprep.subr.mxu0 0.0
        %589 = vmatpush1.xpose.msra.mxu0 0.0
        %590 = vmatprep.subr.mxu0 0.0
        %591 = vmatpush1.xpose.msra.mxu0 0.0
        %592 = vmatprep.subr.mxu0 0.0
        %593 = vmatpush1.xpose.msra.mxu0 0.0
        %594 = vmatprep.subr.mxu0 0.0
        %595 = vmatpush1.xpose.msra.mxu0 0.0
        %596 = vmatprep.subr.mxu0 0.0
        %597 = vmatpush1.xpose.msra.mxu0 0.0
        %598 = vmatprep.subr.mxu0 0.0
        %599 = vmatpush1.xpose.msra.mxu0 0.0
        %600 = vmatprep.subr.mxu0 0.0
        %601 = vmatpush1.xpose.msra.mxu0 0.0
        %602 = vmatprep.subr.mxu0 0.0
        %603 = vmatpush1.xpose.msra.mxu0 0.0
        %604 = vmatprep.subr.mxu0 0.0
        %605 = vmatpush1.xpose.msra.mxu0 0.0
        %606 = vmatprep.subr.mxu0 0.0
        %607 = vmatpush1.xpose.msra.mxu0 0.0
        %608 = vmatprep.subr.mxu0 0.0
        %609 = vmatpush1.xpose.msra.mxu0 0.0
        %610 = vmatprep.subr.mxu0 0.0
        %611 = vmatpush1.xpose.msra.mxu0 0.0
        %612 = vmatprep.subr.mxu0 0.0
        %613 = vmatpush1.xpose.msra.mxu0 0.0
        %614 = vmatprep.subr.mxu0 0.0
        %615 = vmatpush1.xpose.msra.mxu0 0.0
        %616 = vmatprep.subr.mxu0 0.0
        %617 = vmatpush1.xpose.msra.mxu0 0.0
        %618 = vmatprep.subr.mxu0 0.0
        %619 = vmatpush1.xpose.msra.mxu0 0.0
        %620 = vmatprep.subr.mxu0 0.0
        %621 = vmatpush1.xpose.msra.mxu0 0.0
        %622 = vmatprep.subr.mxu0 0.0
        %623 = vmatpush1.xpose.msra.mxu0 0.0
        %624 = vmatprep.subr.mxu0 0.0
        %625 = vmatpush1.xpose.msra.mxu0 0.0
        %626 = vmatprep.subr.mxu0 0.0
        %627 = vmatpush1.xpose.msra.mxu0 0.0
        %628 = vmatprep.subr.mxu0 0.0
        %629 = vmatpush1.xpose.msra.mxu0 0.0
        %630 = vmatprep.subr.mxu0 0.0
        %631 = vmatpush1.xpose.msra.mxu0 0.0
        %632 = vmatprep.subr.mxu0 0.0
        %633 = vmatpush1.xpose.msra.mxu0 0.0
        %634 = vmatprep.mubr.f32.mxu0 %v377
        %635 = vmatmul.mubr.f32.gmra.mrb[0].mxu0 %v376
        %v636 = vpop.f32.mrb[0].mxu0
        %v637 = vadd.f32 %v567, %v636
        %v638 = vpop.f32.mrb[0].mxu0
        %639 = vdwg.mxu0
        %640 = vmatprep.subr.mxu0 0.0
        %641 = vmatpush1.xpose.msra.mxu0 %v421
        %642 = vmatprep.subr.mxu0 0.0
        %643 = vmatpush1.xpose.msra.mxu0 0.0
        %644 = vmatprep.subr.mxu0 0.0
        %645 = vmatpush1.xpose.msra.mxu0 0.0
        %646 = vmatprep.subr.mxu0 0.0
        %647 = vmatpush1.xpose.msra.mxu0 0.0
        %648 = vmatprep.subr.mxu0 0.0
        %649 = vmatpush1.xpose.msra.mxu0 0.0
        %650 = vmatprep.subr.mxu0 0.0
        %651 = vmatpush1.xpose.msra.mxu0 0.0
        %652 = vmatprep.subr.mxu0 0.0
        %653 = vmatpush1.xpose.msra.mxu0 0.0
        %654 = vmatprep.subr.mxu0 0.0
        %655 = vmatpush1.xpose.msra.mxu0 0.0
        %656 = vmatprep.subr.mxu0 0.0
        %657 = vmatpush1.xpose.msra.mxu0 0.0
        %658 = vmatprep.subr.mxu0 0.0
        %659 = vmatpush1.xpose.msra.mxu0 0.0
        %660 = vmatprep.subr.mxu0 0.0
        %661 = vmatpush1.xpose.msra.mxu0 0.0
        %662 = vmatprep.subr.mxu0 0.0
        %663 = vmatpush1.xpose.msra.mxu0 0.0
        %664 = vmatprep.subr.mxu0 0.0
        %665 = vmatpush1.xpose.msra.mxu0 0.0
        %666 = vmatprep.subr.mxu0 0.0
        %667 = vmatpush1.xpose.msra.mxu0 0.0
        %668 = vmatprep.subr.mxu0 0.0
        %669 = vmatpush1.xpose.msra.mxu0 0.0
        %670 = vmatprep.subr.mxu0 0.0
        %671 = vmatpush1.xpose.msra.mxu0 0.0
        %672 = vmatprep.subr.mxu0 0.0
        %673 = vmatpush1.xpose.msra.mxu0 0.0
        %674 = vmatprep.subr.mxu0 0.0
        %675 = vmatpush1.xpose.msra.mxu0 0.0
        %676 = vmatprep.subr.mxu0 0.0
        %677 = vmatpush1.xpose.msra.mxu0 0.0
        %678 = vmatprep.subr.mxu0 0.0
        %679 = vmatpush1.xpose.msra.mxu0 0.0
        %680 = vmatprep.subr.mxu0 0.0
        %681 = vmatpush1.xpose.msra.mxu0 0.0
        %682 = vmatprep.subr.mxu0 0.0
        %683 = vmatpush1.xpose.msra.mxu0 0.0
        %684 = vmatprep.subr.mxu0 0.0
        %685 = vmatpush1.xpose.msra.mxu0 0.0
        %686 = vmatprep.subr.mxu0 0.0
        %687 = vmatpush1.xpose.msra.mxu0 0.0
        %688 = vmatprep.subr.mxu0 0.0
        %689 = vmatpush1.xpose.msra.mxu0 0.0
        %690 = vmatprep.subr.mxu0 0.0
        %691 = vmatpush1.xpose.msra.mxu0 0.0
        %692 = vmatprep.subr.mxu0 0.0
        %693 = vmatpush1.xpose.msra.mxu0 0.0
        %694 = vmatprep.subr.mxu0 0.0
        %695 = vmatpush1.xpose.msra.mxu0 0.0
        %696 = vmatprep.subr.mxu0 0.0
        %697 = vmatpush1.xpose.msra.mxu0 0.0
        %698 = vmatprep.subr.mxu0 0.0
        %699 = vmatpush1.xpose.msra.mxu0 0.0
        %700 = vmatprep.subr.mxu0 0.0
        %701 = vmatpush1.xpose.msra.mxu0 0.0
        %702 = vmatprep.subr.mxu0 0.0
        %703 = vmatpush1.xpose.msra.mxu0 0.0
        %704 = vmatprep.mubr.f32.mxu0 0.0
        %705 = vmatmul.mubr.f32.gmra.mrb[0].mxu0 %v378
        %v706 = vpop.f32.mrb[0].mxu0
        %v707 = vadd.f32 %v637, %v706
        %v708 = vpop.f32.mrb[0].mxu0
        %709 = vdwg.mxu0
        %v710 = vtanh.pop %v707
        %v711 = vld [vmem:[#allocation8] sm:$0xff]
        %v712 = vld [vmem:[#allocation8 + $0x8] sm:$0x3f]
        %v713 = vld [vmem:[#allocation10] sm:$0xff]
        %v715 = vlaneseq
        %v716 = vshrl.u32 %v715, 7
        %v717 = vsub.s32 0, %v716
        %v718 = vrot.slane %v713, %v717
        %v719 = vlaneseq
        %v720 = vshrl.u32 %v719, 7
        %v721 = vsub.s32 1, %v720
        %v722 = vrot.slane %v713, %v721
        %v723 = vlaneseq
        %v724 = vshrl.u32 %v723, 7
        %v725 = vsub.s32 2, %v724
        %v726 = vrot.slane %v713, %v725
        %v727 = vlaneseq
        %v728 = vshrl.u32 %v727, 7
        %v729 = vsub.s32 3, %v728
        %v730 = vrot.slane %v713, %v729
        %v731 = vlaneseq
        %v732 = vshrl.u32 %v731, 7
        %v733 = vsub.s32 4, %v732
        %v734 = vrot.slane %v713, %v733
        %v735 = vlaneseq
        %v736 = vshrl.u32 %v735, 7
        %v737 = vsub.s32 5, %v736
        %v738 = vrot.slane %v713, %v737
        %v739 = vlaneseq
        %v740 = vshrl.u32 %v739, 7
        %v741 = vsub.s32 6, %v740
        %v742 = vrot.slane %v713, %v741
        %v752 = vcombine.high %v711, %v711
        %v754 = vunpack.c.l.s4 1983009808
        %v755 = vunpack.c.0.s8 %v754
        %v756 = vlaneseq
        %v757 = vshrl.u32 %v756, 7
        %v758 = vsub.s32 %v755, %v757
        %v759 = vrot.slane %v711, %v758
        %v761 = vunpack.c.l.s4 1983009808
        %v762 = vunpack.c.0.s8 %v761
        %v763 = vlaneseq
        %v764 = vshrl.u32 %v763, 7
        %v765 = vsub.s32 %v762, %v764
        %v766 = vrot.slane %v752, %v765
        %v767 = vcombine.high %v759, %v759
        %v768 = vcombine.high %v766, %v766
        %v769 = vcombine.high %v712, %v712
        %v771 = vunpack.c.l.s4 1983009808
        %v772 = vunpack.c.0.s8 %v771
        %v773 = vlaneseq
        %v774 = vshrl.u32 %v773, 7
        %v775 = vsub.s32 %v772, %v774
        %v776 = vrot.slane %v712, %v775
        %v778 = vunpack.c.l.s4 1983009808
        %v779 = vunpack.c.0.s8 %v778
        %v780 = vlaneseq
        %v781 = vshrl.u32 %v780, 7
        %v782 = vsub.s32 %v779, %v781
        %v783 = vrot.slane %v769, %v782
        %v784 = vcombine.high %v776, %v776
        %vm785 = vcmask 15360
        %v787 = vsel %vm785, %v710, 0
        %vm789 = vcmask 1041408
        %v790 = vsel %vm789, %v759, 0
        %v792 = vsel %vm789, %v767, 0
        %v794 = vsel %vm789, %v766, 0
        %v796 = vsel %vm789, %v768, 0
        %v798 = vsel %vm789, %v776, 0
        %v800 = vsel %vm789, %v784, 0
        %v802 = vsel %vm789, %v783, 0
        %804 = vmatprep.subr.mxu0 %v792
        %805 = vmatpush1.msra.mxu0 %v790
        %806 = vmatprep.subr.mxu0 0.0
        %807 = vmatpush1.msra.mxu0 0.0
        %808 = vmatprep.subr.mxu0 0.0
        %809 = vmatpush1.msra.mxu0 0.0
        %810 = vmatprep.subr.mxu0 0.0
        %811 = vmatpush1.msra.mxu0 0.0
        %812 = vmatprep.subr.mxu0 0.0
        %813 = vmatpush1.msra.mxu0 0.0
        %814 = vmatprep.subr.mxu0 0.0
        %815 = vmatpush1.msra.mxu0 0.0
        %816 = vmatprep.subr.mxu0 0.0
        %817 = vmatpush1.msra.mxu0 0.0
        %818 = vmatprep.subr.mxu0 0.0
        %819 = vmatpush1.msra.mxu0 0.0
        %820 = vmatprep.subr.mxu0 0.0
        %821 = vmatpush1.msra.mxu0 0.0
        %822 = vmatprep.subr.mxu0 0.0
        %823 = vmatpush1.msra.mxu0 0.0
        %824 = vmatprep.subr.mxu0 0.0
        %825 = vmatpush1.msra.mxu0 0.0
        %826 = vmatprep.subr.mxu0 0.0
        %827 = vmatpush1.msra.mxu0 0.0
        %828 = vmatprep.subr.mxu0 0.0
        %829 = vmatpush1.msra.mxu0 0.0
        %830 = vmatprep.subr.mxu0 0.0
        %831 = vmatpush1.msra.mxu0 0.0
        %832 = vmatprep.subr.mxu0 0.0
        %833 = vmatpush1.msra.mxu0 0.0
        %834 = vmatprep.subr.mxu0 0.0
        %835 = vmatpush1.msra.mxu0 0.0
        %836 = vmatprep.subr.mxu0 0.0
        %837 = vmatpush1.msra.mxu0 0.0
        %838 = vmatprep.subr.mxu0 0.0
        %839 = vmatpush1.msra.mxu0 0.0
        %840 = vmatprep.subr.mxu0 0.0
        %841 = vmatpush1.msra.mxu0 0.0
        %842 = vmatprep.subr.mxu0 0.0
        %843 = vmatpush1.msra.mxu0 0.0
        %844 = vmatprep.subr.mxu0 0.0
        %845 = vmatpush1.msra.mxu0 0.0
        %846 = vmatprep.subr.mxu0 0.0
        %847 = vmatpush1.msra.mxu0 0.0
        %848 = vmatprep.subr.mxu0 0.0
        %849 = vmatpush1.msra.mxu0 0.0
        %850 = vmatprep.subr.mxu0 0.0
        %851 = vmatpush1.msra.mxu0 0.0
        %852 = vmatprep.subr.mxu0 0.0
        %853 = vmatpush1.msra.mxu0 0.0
        %854 = vmatprep.subr.mxu0 0.0
        %855 = vmatpush1.msra.mxu0 0.0
        %856 = vmatprep.subr.mxu0 0.0
        %857 = vmatpush1.msra.mxu0 0.0
        %858 = vmatprep.subr.mxu0 0.0
        %859 = vmatpush1.msra.mxu0 0.0
        %860 = vmatprep.subr.mxu0 0.0
        %861 = vmatpush1.msra.mxu0 0.0
        %862 = vmatprep.subr.mxu0 0.0
        %863 = vmatpush1.msra.mxu0 0.0
        %864 = vmatprep.subr.mxu0 0.0
        %865 = vmatpush1.msra.mxu0 0.0
        %866 = vmatprep.subr.mxu0 0.0
        %867 = vmatpush1.msra.mxu0 0.0
        %868 = vmatprep.mubr.f32.mxu0 0.0
        %869 = vmatmul.mubr.f32.gmra.mrb[0].mxu0 %v787
        %v870 = vpop.f32.mrb[0].mxu0
        %v871 = vadd.f32 %v718, %v870
        %v872 = vpop.f32.mrb[0].mxu0
        %v873 = vadd.f32 %v722, %v872
        %874 = vdwg.mxu0
        %875 = vmatprep.subr.mxu0 %v796
        %876 = vmatpush1.msra.mxu0 %v794
        %877 = vmatprep.subr.mxu0 0.0
        %878 = vmatpush1.msra.mxu0 0.0
        %879 = vmatprep.subr.mxu0 0.0
        %880 = vmatpush1.msra.mxu0 0.0
        %881 = vmatprep.subr.mxu0 0.0
        %882 = vmatpush1.msra.mxu0 0.0
        %883 = vmatprep.subr.mxu0 0.0
        %884 = vmatpush1.msra.mxu0 0.0
        %885 = vmatprep.subr.mxu0 0.0
        %886 = vmatpush1.msra.mxu0 0.0
        %887 = vmatprep.subr.mxu0 0.0
        %888 = vmatpush1.msra.mxu0 0.0
        %889 = vmatprep.subr.mxu0 0.0
        %890 = vmatpush1.msra.mxu0 0.0
        %891 = vmatprep.subr.mxu0 0.0
        %892 = vmatpush1.msra.mxu0 0.0
        %893 = vmatprep.subr.mxu0 0.0
        %894 = vmatpush1.msra.mxu0 0.0
        %895 = vmatprep.subr.mxu0 0.0
        %896 = vmatpush1.msra.mxu0 0.0
        %897 = vmatprep.subr.mxu0 0.0
        %898 = vmatpush1.msra.mxu0 0.0
        %899 = vmatprep.subr.mxu0 0.0
        %900 = vmatpush1.msra.mxu0 0.0
        %901 = vmatprep.subr.mxu0 0.0
        %902 = vmatpush1.msra.mxu0 0.0
        %903 = vmatprep.subr.mxu0 0.0
        %904 = vmatpush1.msra.mxu0 0.0
        %905 = vmatprep.subr.mxu0 0.0
        %906 = vmatpush1.msra.mxu0 0.0
        %907 = vmatprep.subr.mxu0 0.0
        %908 = vmatpush1.msra.mxu0 0.0
        %909 = vmatprep.subr.mxu0 0.0
        %910 = vmatpush1.msra.mxu0 0.0
        %911 = vmatprep.subr.mxu0 0.0
        %912 = vmatpush1.msra.mxu0 0.0
        %913 = vmatprep.subr.mxu0 0.0
        %914 = vmatpush1.msra.mxu0 0.0
        %915 = vmatprep.subr.mxu0 0.0
        %916 = vmatpush1.msra.mxu0 0.0
        %917 = vmatprep.subr.mxu0 0.0
        %918 = vmatpush1.msra.mxu0 0.0
        %919 = vmatprep.subr.mxu0 0.0
        %920 = vmatpush1.msra.mxu0 0.0
        %921 = vmatprep.subr.mxu0 0.0
        %922 = vmatpush1.msra.mxu0 0.0
        %923 = vmatprep.subr.mxu0 0.0
        %924 = vmatpush1.msra.mxu0 0.0
        %925 = vmatprep.subr.mxu0 0.0
        %926 = vmatpush1.msra.mxu0 0.0
        %927 = vmatprep.subr.mxu0 0.0
        %928 = vmatpush1.msra.mxu0 0.0
        %929 = vmatprep.subr.mxu0 0.0
        %930 = vmatpush1.msra.mxu0 0.0
        %931 = vmatprep.subr.mxu0 0.0
        %932 = vmatpush1.msra.mxu0 0.0
        %933 = vmatprep.subr.mxu0 0.0
        %934 = vmatpush1.msra.mxu0 0.0
        %935 = vmatprep.subr.mxu0 0.0
        %936 = vmatpush1.msra.mxu0 0.0
        %937 = vmatprep.subr.mxu0 0.0
        %938 = vmatpush1.msra.mxu0 0.0
        %939 = vmatprep.mubr.f32.mxu0 0.0
        %940 = vmatmul.mubr.f32.gmra.mrb[0].mxu0 %v787
        %v941 = vpop.f32.mrb[0].mxu0
        %v942 = vadd.f32 %v726, %v941
        %v943 = vpop.f32.mrb[0].mxu0
        %v944 = vadd.f32 %v730, %v943
        %945 = vdwg.mxu0
        %946 = vmatprep.subr.mxu0 %v800
        %947 = vmatpush1.msra.mxu0 %v798
        %948 = vmatprep.subr.mxu0 0.0
        %949 = vmatpush1.msra.mxu0 0.0
        %950 = vmatprep.subr.mxu0 0.0
        %951 = vmatpush1.msra.mxu0 0.0
        %952 = vmatprep.subr.mxu0 0.0
        %953 = vmatpush1.msra.mxu0 0.0
        %954 = vmatprep.subr.mxu0 0.0
        %955 = vmatpush1.msra.mxu0 0.0
        %956 = vmatprep.subr.mxu0 0.0
        %957 = vmatpush1.msra.mxu0 0.0
        %958 = vmatprep.subr.mxu0 0.0
        %959 = vmatpush1.msra.mxu0 0.0
        %960 = vmatprep.subr.mxu0 0.0
        %961 = vmatpush1.msra.mxu0 0.0
        %962 = vmatprep.subr.mxu0 0.0
        %963 = vmatpush1.msra.mxu0 0.0
        %964 = vmatprep.subr.mxu0 0.0
        %965 = vmatpush1.msra.mxu0 0.0
        %966 = vmatprep.subr.mxu0 0.0
        %967 = vmatpush1.msra.mxu0 0.0
        %968 = vmatprep.subr.mxu0 0.0
        %969 = vmatpush1.msra.mxu0 0.0
        %970 = vmatprep.subr.mxu0 0.0
        %971 = vmatpush1.msra.mxu0 0.0
        %972 = vmatprep.subr.mxu0 0.0
        %973 = vmatpush1.msra.mxu0 0.0
        %974 = vmatprep.subr.mxu0 0.0
        %975 = vmatpush1.msra.mxu0 0.0
        %976 = vmatprep.subr.mxu0 0.0
        %977 = vmatpush1.msra.mxu0 0.0
        %978 = vmatprep.subr.mxu0 0.0
        %979 = vmatpush1.msra.mxu0 0.0
        %980 = vmatprep.subr.mxu0 0.0
        %981 = vmatpush1.msra.mxu0 0.0
        %982 = vmatprep.subr.mxu0 0.0
        %983 = vmatpush1.msra.mxu0 0.0
        %984 = vmatprep.subr.mxu0 0.0
        %985 = vmatpush1.msra.mxu0 0.0
        %986 = vmatprep.subr.mxu0 0.0
        %987 = vmatpush1.msra.mxu0 0.0
        %988 = vmatprep.subr.mxu0 0.0
        %989 = vmatpush1.msra.mxu0 0.0
        %990 = vmatprep.subr.mxu0 0.0
        %991 = vmatpush1.msra.mxu0 0.0
        %992 = vmatprep.subr.mxu0 0.0
        %993 = vmatpush1.msra.mxu0 0.0
        %994 = vmatprep.subr.mxu0 0.0
        %995 = vmatpush1.msra.mxu0 0.0
        %996 = vmatprep.subr.mxu0 0.0
        %997 = vmatpush1.msra.mxu0 0.0
        %998 = vmatprep.subr.mxu0 0.0
        %999 = vmatpush1.msra.mxu0 0.0
        %1000 = vmatprep.subr.mxu0 0.0
        %1001 = vmatpush1.msra.mxu0 0.0
        %1002 = vmatprep.subr.mxu0 0.0
        %1003 = vmatpush1.msra.mxu0 0.0
        %1004 = vmatprep.subr.mxu0 0.0
        %1005 = vmatpush1.msra.mxu0 0.0
        %1006 = vmatprep.subr.mxu0 0.0
        %1007 = vmatpush1.msra.mxu0 0.0
        %1008 = vmatprep.subr.mxu0 0.0
        %1009 = vmatpush1.msra.mxu0 0.0
        %1010 = vmatprep.mubr.f32.mxu0 0.0
        %1011 = vmatmul.mubr.f32.gmra.mrb[0].mxu0 %v787
        %v1012 = vpop.f32.mrb[0].mxu0
        %v1013 = vadd.f32 %v734, %v1012
        %v1014 = vpop.f32.mrb[0].mxu0
        %v1015 = vadd.f32 %v738, %v1014
        %1016 = vdwg.mxu0
        %1017 = vmatprep.subr.mxu0 0.0
        %1018 = vmatpush1.msra.mxu0 %v802
        %1019 = vmatprep.subr.mxu0 0.0
        %1020 = vmatpush1.msra.mxu0 0.0
        %1021 = vmatprep.subr.mxu0 0.0
        %1022 = vmatpush1.msra.mxu0 0.0
        %1023 = vmatprep.subr.mxu0 0.0
        %1024 = vmatpush1.msra.mxu0 0.0
        %1025 = vmatprep.subr.mxu0 0.0
        %1026 = vmatpush1.msra.mxu0 0.0
        %1027 = vmatprep.subr.mxu0 0.0
        %1028 = vmatpush1.msra.mxu0 0.0
        %1029 = vmatprep.subr.mxu0 0.0
        %1030 = vmatpush1.msra.mxu0 0.0
        %1031 = vmatprep.subr.mxu0 0.0
        %1032 = vmatpush1.msra.mxu0 0.0
        %1033 = vmatprep.subr.mxu0 0.0
        %1034 = vmatpush1.msra.mxu0 0.0
        %1035 = vmatprep.subr.mxu0 0.0
        %1036 = vmatpush1.msra.mxu0 0.0
        %1037 = vmatprep.subr.mxu0 0.0
        %1038 = vmatpush1.msra.mxu0 0.0
        %1039 = vmatprep.subr.mxu0 0.0
        %1040 = vmatpush1.msra.mxu0 0.0
        %1041 = vmatprep.subr.mxu0 0.0
        %1042 = vmatpush1.msra.mxu0 0.0
        %1043 = vmatprep.subr.mxu0 0.0
        %1044 = vmatpush1.msra.mxu0 0.0
        %1045 = vmatprep.subr.mxu0 0.0
        %1046 = vmatpush1.msra.mxu0 0.0
        %1047 = vmatprep.subr.mxu0 0.0
        %1048 = vmatpush1.msra.mxu0 0.0
        %1049 = vmatprep.subr.mxu0 0.0
        %1050 = vmatpush1.msra.mxu0 0.0
        %1051 = vmatprep.subr.mxu0 0.0
        %1052 = vmatpush1.msra.mxu0 0.0
        %1053 = vmatprep.subr.mxu0 0.0
        %1054 = vmatpush1.msra.mxu0 0.0
        %1055 = vmatprep.subr.mxu0 0.0
        %1056 = vmatpush1.msra.mxu0 0.0
        %1057 = vmatprep.subr.mxu0 0.0
        %1058 = vmatpush1.msra.mxu0 0.0
        %1059 = vmatprep.subr.mxu0 0.0
        %1060 = vmatpush1.msra.mxu0 0.0
        %1061 = vmatprep.subr.mxu0 0.0
        %1062 = vmatpush1.msra.mxu0 0.0
        %1063 = vmatprep.subr.mxu0 0.0
        %1064 = vmatpush1.msra.mxu0 0.0
        %1065 = vmatprep.subr.mxu0 0.0
        %1066 = vmatpush1.msra.mxu0 0.0
        %1067 = vmatprep.subr.mxu0 0.0
        %1068 = vmatpush1.msra.mxu0 0.0
        %1069 = vmatprep.subr.mxu0 0.0
        %1070 = vmatpush1.msra.mxu0 0.0
        %1071 = vmatprep.subr.mxu0 0.0
        %1072 = vmatpush1.msra.mxu0 0.0
        %1073 = vmatprep.subr.mxu0 0.0
        %1074 = vmatpush1.msra.mxu0 0.0
        %1075 = vmatprep.subr.mxu0 0.0
        %1076 = vmatpush1.msra.mxu0 0.0
        %1077 = vmatprep.subr.mxu0 0.0
        %1078 = vmatpush1.msra.mxu0 0.0
        %1079 = vmatprep.subr.mxu0 0.0
        %1080 = vmatpush1.msra.mxu0 0.0
        %1081 = vmatprep.mubr.f32.mxu0 0.0
        %1082 = vmatmul.mubr.f32.gmra.mrb[0].mxu0 %v787
        %v1083 = vpop.f32.mrb[0].mxu0
        %v1084 = vadd.f32 %v742, %v1083
        %v1085 = vpop.f32.mrb[0].mxu0
        %1086 = vdwg.mxu0
        %v1087 = vmax.f32 %v871, 0.0
        %v1088 = vmax.f32 %v873, 0.0
        %v1089 = vmax.f32 %v942, 0.0
        %v1090 = vmax.f32 %v944, 0.0
        %v1091 = vmax.f32 %v1013, 0.0
        %v1092 = vmax.f32 %v1015, 0.0
        %v1093 = vmax.f32 %v1084, 0.0
        %v1094 = vld [vmem:[#allocation11] sm:$0xff]
        %v1095 = vld [vmem:[#allocation11 + $0x8] sm:$0xff]
        %v1096 = vld [vmem:[#allocation11 + $0x10] sm:$0xff]
        %v1097 = vld [vmem:[#allocation11 + $0x18] sm:$0xff]
        %v1098 = vld [vmem:[#allocation11 + $0x20] sm:$0xff]
        %v1099 = vld [vmem:[#allocation11 + $0x28] sm:$0xff]
        %v1100 = vld [vmem:[#allocation11 + $0x30] sm:$0xff]
        %v1101 = vld [vmem:[#allocation11 + $0x38] sm:$0xff]
        %v1102 = vld [vmem:[#allocation11 + $0x40] sm:$0xff]
        %v1103 = vld [vmem:[#allocation11 + $0x48] sm:$0xff]
        %v1104 = vld [vmem:[#allocation11 + $0x50] sm:$0xff]
        %v1105 = vld [vmem:[#allocation11 + $0x58] sm:$0xff]
        %v1106 = vld [vmem:[#allocation11 + $0x60] sm:$0xff]
        %v1107 = vld [vmem:[#allocation11 + $0x68] sm:$0xff]
        %v1108 = vld [vmem:[#allocation11 + $0x70] sm:$0xff]
        %v1109 = vld [vmem:[#allocation11 + $0x78] sm:$0xff]
        %v1110 = vld [vmem:[#allocation11 + $0x80] sm:$0xff]
        %v1111 = vld [vmem:[#allocation11 + $0x88] sm:$0xff]
        %v1112 = vld [vmem:[#allocation11 + $0x90] sm:$0xff]
        %v1113 = vld [vmem:[#allocation11 + $0x98] sm:$0xff]
        %v1114 = vld [vmem:[#allocation11 + $0xa0] sm:$0xff]
        %v1115 = vld [vmem:[#allocation11 + $0xa8] sm:$0xff]
        %v1116 = vld [vmem:[#allocation11 + $0xb0] sm:$0xff]
        %v1117 = vld [vmem:[#allocation11 + $0xb8] sm:$0xff]
        %v1118 = vld [vmem:[#allocation11 + $0xc0] sm:$0xff]
        %v1119 = vld [vmem:[#allocation11 + $0xc8] sm:$0xff]
        %v1120 = vld [vmem:[#allocation11 + $0xd0] sm:$0xff]
        %v1121 = vld [vmem:[#allocation11 + $0xd8] sm:$0xff]
        %v1122 = vld [vmem:[#allocation11 + $0xe0] sm:$0xff]
        %v1123 = vld [vmem:[#allocation11 + $0xe8] sm:$0xff]
        %v1124 = vld [vmem:[#allocation11 + $0xf0] sm:$0xff]
        %v1125 = vld [vmem:[#allocation11 + $0xf8] sm:$0xff]
        %v1126 = vld [vmem:[#allocation11 + $0x100] sm:$0xff]
        %v1127 = vld [vmem:[#allocation11 + $0x108] sm:$0xff]
        %v1128 = vld [vmem:[#allocation11 + $0x110] sm:$0xff]
        %v1129 = vld [vmem:[#allocation11 + $0x118] sm:$0xff]
        %v1130 = vld [vmem:[#allocation11 + $0x120] sm:$0xff]
        %v1131 = vld [vmem:[#allocation11 + $0x128] sm:$0xff]
        %v1132 = vld [vmem:[#allocation11 + $0x130] sm:$0xff]
        %v1133 = vld [vmem:[#allocation11 + $0x138] sm:$0xff]
        %v1134 = vld [vmem:[#allocation11 + $0x140] sm:$0xff]
        %v1135 = vld [vmem:[#allocation11 + $0x148] sm:$0xff]
        %v1136 = vld [vmem:[#allocation11 + $0x150] sm:$0xff]
        %v1137 = vld [vmem:[#allocation11 + $0x158] sm:$0xff]
        %v1138 = vld [vmem:[#allocation11 + $0x160] sm:$0xff]
        %v1139 = vld [vmem:[#allocation11 + $0x168] sm:$0xff]
        %v1140 = vld [vmem:[#allocation11 + $0x170] sm:$0xff]
        %v1141 = vld [vmem:[#allocation11 + $0x178] sm:$0xff]
        %v1142 = vld [vmem:[#allocation11 + $0x180] sm:$0xff]
        %v1143 = vld [vmem:[#allocation11 + $0x188] sm:$0xff]
        %v1144 = vld [vmem:[#allocation11 + $0x190] sm:$0xff]
        %v1145 = vld [vmem:[#allocation11 + $0x198] sm:$0xff]
        %v1146 = vld [vmem:[#allocation11 + $0x1a0] sm:$0xff]
        %v1147 = vld [vmem:[#allocation11 + $0x1a8] sm:$0xff]
        %v1148 = vld [vmem:[#allocation11 + $0x1b0] sm:$0xff]
        %v1149 = vld [vmem:[#allocation11 + $0x1b8] sm:$0xff]
        %v1150 = vld [vmem:[#allocation11 + $0x1c0] sm:$0xff]
        %v1151 = vld [vmem:[#allocation11 + $0x1c8] sm:$0xff]
        %v1152 = vld [vmem:[#allocation11 + $0x1d0] sm:$0xff]
        %v1153 = vld [vmem:[#allocation11 + $0x1d8] sm:$0xff]
        %v1154 = vld [vmem:[#allocation11 + $0x1e0] sm:$0xff]
        %v1155 = vld [vmem:[#allocation11 + $0x1e8] sm:$0xff]
        %v1156 = vld [vmem:[#allocation11 + $0x1f0] sm:$0xff]
        %v1157 = vld [vmem:[#allocation11 + $0x1f8] sm:$0xff]
        %v1158 = vld [vmem:[#allocation11 + $0x200] sm:$0xff]
        %v1159 = vld [vmem:[#allocation11 + $0x208] sm:$0xff]
        %v1160 = vld [vmem:[#allocation11 + $0x210] sm:$0xff]
        %v1161 = vld [vmem:[#allocation11 + $0x218] sm:$0xff]
        %v1162 = vld [vmem:[#allocation11 + $0x220] sm:$0xff]
        %v1163 = vld [vmem:[#allocation11 + $0x228] sm:$0xff]
        %v1164 = vld [vmem:[#allocation11 + $0x230] sm:$0xff]
        %v1165 = vld [vmem:[#allocation11 + $0x238] sm:$0xff]
        %v1166 = vld [vmem:[#allocation11 + $0x240] sm:$0xff]
        %v1167 = vld [vmem:[#allocation11 + $0x248] sm:$0xff]
        %v1168 = vld [vmem:[#allocation11 + $0x250] sm:$0xff]
        %v1169 = vld [vmem:[#allocation11 + $0x258] sm:$0xff]
        %v1170 = vld [vmem:[#allocation11 + $0x260] sm:$0xff]
        %v1171 = vld [vmem:[#allocation11 + $0x268] sm:$0xff]
        %v1172 = vld [vmem:[#allocation11 + $0x270] sm:$0xff]
        %v1173 = vld [vmem:[#allocation11 + $0x278] sm:$0xff]
        %v1174 = vld [vmem:[#allocation11 + $0x280] sm:$0xff]
        %v1175 = vld [vmem:[#allocation11 + $0x288] sm:$0xff]
        %v1176 = vld [vmem:[#allocation11 + $0x290] sm:$0xff]
        %v1177 = vld [vmem:[#allocation11 + $0x298] sm:$0xff]
        %v1178 = vld [vmem:[#allocation11 + $0x2a0] sm:$0xff]
        %v1179 = vld [vmem:[#allocation11 + $0x2a8] sm:$0xff]
        %v1180 = vld [vmem:[#allocation11 + $0x2b0] sm:$0xff]
        %v1181 = vld [vmem:[#allocation11 + $0x2b8] sm:$0xff]
        %v1182 = vld [vmem:[#allocation11 + $0x2c0] sm:$0xff]
        %v1183 = vld [vmem:[#allocation11 + $0x2c8] sm:$0xff]
        %v1184 = vld [vmem:[#allocation11 + $0x2d0] sm:$0xff]
        %v1185 = vld [vmem:[#allocation11 + $0x2d8] sm:$0xff]
        %v1186 = vld [vmem:[#allocation11 + $0x2e0] sm:$0xff]
        %v1187 = vld [vmem:[#allocation11 + $0x2e8] sm:$0xff]
        %v1188 = vld [vmem:[#allocation11 + $0x2f0] sm:$0xff]
        %v1189 = vld [vmem:[#allocation11 + $0x2f8] sm:$0xff]
        %v1190 = vld [vmem:[#allocation11 + $0x300] sm:$0xff]
        %v1191 = vld [vmem:[#allocation11 + $0x308] sm:$0xff]
        %v1192 = vld [vmem:[#allocation11 + $0x310] sm:$0xff]
        %v1193 = vld [vmem:[#allocation11 + $0x318] sm:$0xff]
        %v1194 = vld [vmem:[#allocation11 + $0x320] sm:$0xff]
        %v1195 = vld [vmem:[#allocation11 + $0x328] sm:$0xff]
        %v1196 = vld [vmem:[#allocation11 + $0x330] sm:$0xff]
        %v1197 = vld [vmem:[#allocation11 + $0x338] sm:$0xff]
        %v1198 = vld [vmem:[#allocation11 + $0x340] sm:$0xff]
        %v1199 = vld [vmem:[#allocation11 + $0x348] sm:$0xff]
        %v1200 = vld [vmem:[#allocation11 + $0x350] sm:$0xff]
        %v1201 = vld [vmem:[#allocation11 + $0x358] sm:$0xff]
        %v1202 = vld [vmem:[#allocation11 + $0x360] sm:$0xff]
        %v1203 = vld [vmem:[#allocation11 + $0x368] sm:$0xff]
        %v1204 = vld [vmem:[#allocation11 + $0x370] sm:$0xff]
        %v1205 = vld [vmem:[#allocation11 + $0x378] sm:$0xff]
        %v1206 = vld [vmem:[#allocation11 + $0x380] sm:$0xff]
        %v1207 = vld [vmem:[#allocation11 + $0x388] sm:$0xff]
        %v1208 = vld [vmem:[#allocation11 + $0x390] sm:$0xff]
        %v1209 = vld [vmem:[#allocation11 + $0x398] sm:$0xff]
        %v1210 = vld [vmem:[#allocation11 + $0x3a0] sm:$0xff]
        %v1211 = vld [vmem:[#allocation11 + $0x3a8] sm:$0xff]
        %v1212 = vld [vmem:[#allocation11 + $0x3b0] sm:$0xff]
        %v1213 = vld [vmem:[#allocation11 + $0x3b8] sm:$0xff]
        %v1214 = vld [vmem:[#allocation11 + $0x3c0] sm:$0xff]
        %v1215 = vld [vmem:[#allocation11 + $0x3c8] sm:$0xff]
        %v1216 = vld [vmem:[#allocation11 + $0x3d0] sm:$0xff]
        %v1217 = vld [vmem:[#allocation11 + $0x3d8] sm:$0xff]
        %v1218 = vld [vmem:[#allocation11 + $0x3e0] sm:$0xff]
        %v1219 = vld [vmem:[#allocation11 + $0x3e8] sm:$0xff]
        %v1220 = vld [vmem:[#allocation11 + $0x3f0] sm:$0xff]
        %v1221 = vld [vmem:[#allocation11 + $0x3f8] sm:$0xff]
        %v1222 = vld [vmem:[#allocation11 + $0x400] sm:$0xff]
        %v1223 = vld [vmem:[#allocation11 + $0x408] sm:$0xff]
        %v1224 = vld [vmem:[#allocation11 + $0x410] sm:$0xff]
        %v1225 = vld [vmem:[#allocation11 + $0x418] sm:$0xff]
        %v1226 = vld [vmem:[#allocation11 + $0x420] sm:$0xff]
        %v1227 = vld [vmem:[#allocation11 + $0x428] sm:$0xff]
        %v1228 = vld [vmem:[#allocation11 + $0x430] sm:$0xff]
        %v1229 = vld [vmem:[#allocation11 + $0x438] sm:$0xff]
        %v1230 = vld [vmem:[#allocation11 + $0x440] sm:$0xff]
        %v1231 = vld [vmem:[#allocation11 + $0x448] sm:$0xff]
        %v1232 = vld [vmem:[#allocation11 + $0x450] sm:$0xff]
        %v1233 = vld [vmem:[#allocation11 + $0x458] sm:$0xff]
        %v1234 = vld [vmem:[#allocation11 + $0x460] sm:$0xff]
        %v1235 = vld [vmem:[#allocation11 + $0x468] sm:$0xff]
        %v1236 = vld [vmem:[#allocation11 + $0x470] sm:$0xff]
        %v1237 = vld [vmem:[#allocation11 + $0x478] sm:$0xff]
        %v1238 = vld [vmem:[#allocation11 + $0x480] sm:$0xff]
        %v1239 = vld [vmem:[#allocation11 + $0x488] sm:$0xff]
        %v1240 = vld [vmem:[#allocation11 + $0x490] sm:$0xff]
        %v1241 = vld [vmem:[#allocation11 + $0x498] sm:$0xff]
        %v1242 = vld [vmem:[#allocation11 + $0x4a0] sm:$0xff]
        %v1243 = vld [vmem:[#allocation11 + $0x4a8] sm:$0xff]
        %v1244 = vld [vmem:[#allocation11 + $0x4b0] sm:$0xff]
        %v1245 = vld [vmem:[#allocation11 + $0x4b8] sm:$0xff]
        %v1246 = vld [vmem:[#allocation11 + $0x4c0] sm:$0xff]
        %v1247 = vld [vmem:[#allocation11 + $0x4c8] sm:$0xff]
        %v1248 = vld [vmem:[#allocation11 + $0x4d0] sm:$0xff]
        %v1249 = vld [vmem:[#allocation11 + $0x4d8] sm:$0xff]
        %v1250 = vld [vmem:[#allocation11 + $0x4e0] sm:$0xff]
        %v1251 = vld [vmem:[#allocation11 + $0x4e8] sm:$0xff]
        %v1252 = vld [vmem:[#allocation11 + $0x4f0] sm:$0xff]
        %v1253 = vld [vmem:[#allocation11 + $0x4f8] sm:$0xff]
        %v1254 = vld [vmem:[#allocation11 + $0x500] sm:$0xff]
        %v1255 = vld [vmem:[#allocation11 + $0x508] sm:$0xff]
        %v1256 = vld [vmem:[#allocation11 + $0x510] sm:$0xff]
        %v1257 = vld [vmem:[#allocation11 + $0x518] sm:$0xff]
        %v1258 = vld [vmem:[#allocation11 + $0x520] sm:$0xff]
        %v1259 = vld [vmem:[#allocation11 + $0x528] sm:$0xff]
        %v1260 = vld [vmem:[#allocation11 + $0x530] sm:$0xff]
        %v1261 = vld [vmem:[#allocation11 + $0x538] sm:$0xff]
        %v1262 = vld [vmem:[#allocation11 + $0x540] sm:$0xff]
        %v1263 = vld [vmem:[#allocation11 + $0x548] sm:$0xff]
        %v1264 = vld [vmem:[#allocation11 + $0x550] sm:$0xff]
        %v1265 = vld [vmem:[#allocation11 + $0x558] sm:$0xff]
        %v1266 = vld [vmem:[#allocation11 + $0x560] sm:$0xff]
        %v1267 = vld [vmem:[#allocation11 + $0x568] sm:$0xff]
        %v1268 = vld [vmem:[#allocation11 + $0x570] sm:$0xff]
        %v1269 = vld [vmem:[#allocation11 + $0x578] sm:$0xff]
        %v1270 = vld [vmem:[#allocation11 + $0x580] sm:$0xff]
        %v1271 = vld [vmem:[#allocation11 + $0x588] sm:$0xff]
        %v1272 = vld [vmem:[#allocation11 + $0x590] sm:$0xff]
        %v1273 = vld [vmem:[#allocation11 + $0x598] sm:$0xff]
        %v1274 = vld [vmem:[#allocation11 + $0x5a0] sm:$0xff]
        %v1275 = vld [vmem:[#allocation11 + $0x5a8] sm:$0xff]
        %v1276 = vld [vmem:[#allocation11 + $0x5b0] sm:$0xff]
        %v1277 = vld [vmem:[#allocation11 + $0x5b8] sm:$0xff]
        %v1278 = vld [vmem:[#allocation11 + $0x5c0] sm:$0xff]
        %v1279 = vld [vmem:[#allocation11 + $0x5c8] sm:$0xff]
        %v1280 = vld [vmem:[#allocation11 + $0x5d0] sm:$0xff]
        %v1281 = vld [vmem:[#allocation11 + $0x5d8] sm:$0xff]
        %v1282 = vld [vmem:[#allocation11 + $0x5e0] sm:$0xff]
        %v1283 = vld [vmem:[#allocation11 + $0x5e8] sm:$0xff]
        %v1284 = vld [vmem:[#allocation11 + $0x5f0] sm:$0xff]
        %v1285 = vld [vmem:[#allocation11 + $0x5f8] sm:$0xff]
        %v1286 = vld [vmem:[#allocation11 + $0x600] sm:$0xff]
        %v1287 = vld [vmem:[#allocation11 + $0x608] sm:$0xff]
        %v1288 = vld [vmem:[#allocation11 + $0x610] sm:$0xff]
        %v1289 = vld [vmem:[#allocation11 + $0x618] sm:$0xff]
        %v1290 = vld [vmem:[#allocation11 + $0x620] sm:$0xff]
        %v1291 = vld [vmem:[#allocation11 + $0x628] sm:$0xff]
        %v1292 = vld [vmem:[#allocation11 + $0x630] sm:$0xff]
        %v1293 = vld [vmem:[#allocation11 + $0x638] sm:$0xff]
        %v1294 = vld [vmem:[#allocation11 + $0x640] sm:$0xff]
        %v1295 = vld [vmem:[#allocation11 + $0x648] sm:$0xff]
        %v1296 = vld [vmem:[#allocation11 + $0x650] sm:$0xff]
        %v1297 = vld [vmem:[#allocation11 + $0x658] sm:$0xff]
        %v1298 = vld [vmem:[#allocation11 + $0x660] sm:$0xff]
        %v1299 = vld [vmem:[#allocation11 + $0x668] sm:$0xff]
        %v1300 = vld [vmem:[#allocation11 + $0x670] sm:$0xff]
        %v1301 = vld [vmem:[#allocation11 + $0x678] sm:$0xff]
        %v1302 = vld [vmem:[#allocation11 + $0x680] sm:$0xff]
        %v1303 = vld [vmem:[#allocation11 + $0x688] sm:$0xff]
        %v1304 = vld [vmem:[#allocation11 + $0x690] sm:$0xff]
        %v1305 = vld [vmem:[#allocation11 + $0x698] sm:$0xff]
        %v1306 = vld [vmem:[#allocation11 + $0x6a0] sm:$0xff]
        %v1307 = vld [vmem:[#allocation11 + $0x6a8] sm:$0xff]
        %v1308 = vld [vmem:[#allocation11 + $0x6b0] sm:$0xff]
        %v1309 = vld [vmem:[#allocation11 + $0x6b8] sm:$0xff]
        %v1310 = vld [vmem:[#allocation11 + $0x6c0] sm:$0xff]
        %v1311 = vld [vmem:[#allocation11 + $0x6c8] sm:$0xff]
        %v1312 = vld [vmem:[#allocation11 + $0x6d0] sm:$0xff]
        %v1313 = vld [vmem:[#allocation11 + $0x6d8] sm:$0xff]
        %v1314 = vld [vmem:[#allocation11 + $0x6e0] sm:$0xff]
        %v1315 = vld [vmem:[#allocation11 + $0x6e8] sm:$0xff]
        %v1316 = vld [vmem:[#allocation11 + $0x6f0] sm:$0xff]
        %v1317 = vld [vmem:[#allocation11 + $0x6f8] sm:$0xff]
        %v1318 = vld [vmem:[#allocation11 + $0x700] sm:$0xff]
        %v1319 = vld [vmem:[#allocation11 + $0x708] sm:$0xff]
        %v1320 = vld [vmem:[#allocation11 + $0x710] sm:$0xff]
        %v1321 = vld [vmem:[#allocation11 + $0x718] sm:$0xff]
        %v1322 = vld [vmem:[#allocation11 + $0x720] sm:$0xff]
        %v1323 = vld [vmem:[#allocation11 + $0x728] sm:$0xff]
        %v1324 = vld [vmem:[#allocation11 + $0x730] sm:$0xff]
        %v1325 = vld [vmem:[#allocation11 + $0x738] sm:$0xff]
        %v1326 = vld [vmem:[#allocation11 + $0x740] sm:$0xff]
        %v1327 = vld [vmem:[#allocation11 + $0x748] sm:$0xff]
        %v1328 = vld [vmem:[#allocation11 + $0x750] sm:$0xff]
        %v1329 = vld [vmem:[#allocation11 + $0x758] sm:$0xff]
        %v1330 = vld [vmem:[#allocation11 + $0x760] sm:$0xff]
        %v1331 = vld [vmem:[#allocation11 + $0x768] sm:$0xff]
        %v1332 = vld [vmem:[#allocation11 + $0x770] sm:$0xff]
        %v1333 = vld [vmem:[#allocation11 + $0x778] sm:$0xff]
        %v1334 = vld [vmem:[#allocation11 + $0x780] sm:$0xff]
        %v1335 = vld [vmem:[#allocation11 + $0x788] sm:$0xff]
        %v1336 = vld [vmem:[#allocation11 + $0x790] sm:$0xff]
        %v1337 = vld [vmem:[#allocation11 + $0x798] sm:$0xff]
        %v1338 = vld [vmem:[#allocation11 + $0x7a0] sm:$0xff]
        %v1339 = vld [vmem:[#allocation11 + $0x7a8] sm:$0xff]
        %v1340 = vld [vmem:[#allocation11 + $0x7b0] sm:$0xff]
        %v1341 = vld [vmem:[#allocation11 + $0x7b8] sm:$0xff]
        %v1342 = vld [vmem:[#allocation11 + $0x7c0] sm:$0xff]
        %v1343 = vld [vmem:[#allocation11 + $0x7c8] sm:$0xff]
        %v1344 = vld [vmem:[#allocation11 + $0x7d0] sm:$0xff]
        %v1345 = vld [vmem:[#allocation11 + $0x7d8] sm:$0xff]
        %v1346 = vld [vmem:[#allocation11 + $0x7e0] sm:$0xff]
        %v1347 = vld [vmem:[#allocation11 + $0x7e8] sm:$0xff]
        %v1348 = vld [vmem:[#allocation11 + $0x7f0] sm:$0xff]
        %v1349 = vld [vmem:[#allocation11 + $0x7f8] sm:$0xff]
        %v1350 = vld [vmem:[#allocation11 + $0x800] sm:$0xff]
        %v1351 = vld [vmem:[#allocation11 + $0x808] sm:$0xff]
        %v1352 = vld [vmem:[#allocation11 + $0x810] sm:$0xff]
        %v1353 = vld [vmem:[#allocation11 + $0x818] sm:$0xff]
        %v1354 = vld [vmem:[#allocation11 + $0x820] sm:$0xff]
        %v1355 = vld [vmem:[#allocation11 + $0x828] sm:$0xff]
        %v1356 = vld [vmem:[#allocation11 + $0x830] sm:$0xff]
        %v1357 = vld [vmem:[#allocation11 + $0x838] sm:$0xff]
        %v1358 = vld [vmem:[#allocation11 + $0x840] sm:$0xff]
        %v1359 = vld [vmem:[#allocation11 + $0x848] sm:$0xff]
        %v1360 = vld [vmem:[#allocation11 + $0x850] sm:$0xff]
        %v1361 = vld [vmem:[#allocation11 + $0x858] sm:$0xff]
        %v1362 = vld [vmem:[#allocation11 + $0x860] sm:$0xff]
        %v1363 = vld [vmem:[#allocation11 + $0x868] sm:$0xff]
        %v1364 = vld [vmem:[#allocation11 + $0x870] sm:$0xff]
        %v1365 = vld [vmem:[#allocation11 + $0x878] sm:$0xff]
        %v1366 = vld [vmem:[#allocation11 + $0x880] sm:$0xff]
        %v1367 = vld [vmem:[#allocation11 + $0x888] sm:$0xff]
        %v1368 = vld [vmem:[#allocation11 + $0x890] sm:$0xff]
        %v1369 = vld [vmem:[#allocation11 + $0x898] sm:$0xff]
        %v1370 = vld [vmem:[#allocation11 + $0x8a0] sm:$0xff]
        %v1371 = vld [vmem:[#allocation11 + $0x8a8] sm:$0xff]
        %v1372 = vld [vmem:[#allocation11 + $0x8b0] sm:$0xff]
        %v1373 = vld [vmem:[#allocation11 + $0x8b8] sm:$0xff]
        %v1374 = vld [vmem:[#allocation11 + $0x8c0] sm:$0xff]
        %v1375 = vld [vmem:[#allocation11 + $0x8c8] sm:$0xff]
        %v1376 = vld [vmem:[#allocation11 + $0x8d0] sm:$0xff]
        %v1377 = vld [vmem:[#allocation11 + $0x8d8] sm:$0xff]
        %v1378 = vld [vmem:[#allocation11 + $0x8e0] sm:$0xff]
        %v1379 = vld [vmem:[#allocation11 + $0x8e8] sm:$0xff]
        %v1380 = vld [vmem:[#allocation11 + $0x8f0] sm:$0xff]
        %v1381 = vld [vmem:[#allocation11 + $0x8f8] sm:$0xff]
        %v1382 = vld [vmem:[#allocation11 + $0x900] sm:$0xff]
        %v1383 = vld [vmem:[#allocation11 + $0x908] sm:$0xff]
        %v1384 = vld [vmem:[#allocation11 + $0x910] sm:$0xff]
        %v1385 = vld [vmem:[#allocation11 + $0x918] sm:$0xff]
        %v1386 = vld [vmem:[#allocation11 + $0x920] sm:$0xff]
        %v1387 = vld [vmem:[#allocation11 + $0x928] sm:$0xff]
        %v1388 = vld [vmem:[#allocation11 + $0x930] sm:$0xff]
        %v1389 = vld [vmem:[#allocation11 + $0x938] sm:$0xff]
        %v1390 = vld [vmem:[#allocation11 + $0x940] sm:$0xff]
        %v1391 = vld [vmem:[#allocation11 + $0x948] sm:$0xff]
        %v1392 = vld [vmem:[#allocation11 + $0x950] sm:$0xff]
        %v1393 = vld [vmem:[#allocation11 + $0x958] sm:$0xff]
        %v1394 = vld [vmem:[#allocation11 + $0x960] sm:$0xff]
        %v1395 = vld [vmem:[#allocation11 + $0x968] sm:$0xff]
        %v1396 = vld [vmem:[#allocation11 + $0x970] sm:$0xff]
        %v1397 = vld [vmem:[#allocation11 + $0x978] sm:$0xff]
        %v1398 = vld [vmem:[#allocation11 + $0x980] sm:$0xff]
        %v1399 = vld [vmem:[#allocation11 + $0x988] sm:$0xff]
        %v1400 = vld [vmem:[#allocation11 + $0x990] sm:$0xff]
        %v1401 = vld [vmem:[#allocation11 + $0x998] sm:$0xff]
        %v1402 = vld [vmem:[#allocation11 + $0x9a0] sm:$0xff]
        %v1403 = vld [vmem:[#allocation11 + $0x9a8] sm:$0xff]
        %v1404 = vld [vmem:[#allocation11 + $0x9b0] sm:$0xff]
        %v1405 = vld [vmem:[#allocation11 + $0x9b8] sm:$0xff]
        %v1406 = vld [vmem:[#allocation11 + $0x9c0] sm:$0xff]
        %v1407 = vld [vmem:[#allocation11 + $0x9c8] sm:$0xff]
        %v1408 = vld [vmem:[#allocation11 + $0x9d0] sm:$0xff]
        %v1409 = vld [vmem:[#allocation11 + $0x9d8] sm:$0xff]
        %v1410 = vld [vmem:[#allocation11 + $0x9e0] sm:$0xff]
        %v1411 = vld [vmem:[#allocation11 + $0x9e8] sm:$0xff]
        %v1412 = vld [vmem:[#allocation11 + $0x9f0] sm:$0xff]
        %v1413 = vld [vmem:[#allocation11 + $0x9f8] sm:$0xff]
        %v1414 = vld [vmem:[#allocation11 + $0xa00] sm:$0xff]
        %v1415 = vld [vmem:[#allocation11 + $0xa08] sm:$0xff]
        %v1416 = vld [vmem:[#allocation11 + $0xa10] sm:$0xff]
        %v1417 = vld [vmem:[#allocation11 + $0xa18] sm:$0xff]
        %v1418 = vld [vmem:[#allocation11 + $0xa20] sm:$0xff]
        %v1419 = vld [vmem:[#allocation11 + $0xa28] sm:$0xff]
        %v1420 = vld [vmem:[#allocation11 + $0xa30] sm:$0xff]
        %v1421 = vld [vmem:[#allocation11 + $0xa38] sm:$0xff]
        %v1422 = vld [vmem:[#allocation11 + $0xa40] sm:$0xff]
        %v1423 = vld [vmem:[#allocation11 + $0xa48] sm:$0xff]
        %v1424 = vld [vmem:[#allocation11 + $0xa50] sm:$0xff]
        %v1425 = vld [vmem:[#allocation11 + $0xa58] sm:$0xff]
        %v1426 = vld [vmem:[#allocation11 + $0xa60] sm:$0xff]
        %v1427 = vld [vmem:[#allocation11 + $0xa68] sm:$0xff]
        %v1428 = vld [vmem:[#allocation11 + $0xa70] sm:$0xff]
        %v1429 = vld [vmem:[#allocation11 + $0xa78] sm:$0xff]
        %v1430 = vld [vmem:[#allocation11 + $0xa80] sm:$0xff]
        %v1431 = vld [vmem:[#allocation11 + $0xa88] sm:$0xff]
        %v1432 = vld [vmem:[#allocation11 + $0xa90] sm:$0xff]
        %v1433 = vld [vmem:[#allocation11 + $0xa98] sm:$0xff]
        %v1434 = vld [vmem:[#allocation11 + $0xaa0] sm:$0xff]
        %v1435 = vld [vmem:[#allocation11 + $0xaa8] sm:$0xff]
        %v1436 = vld [vmem:[#allocation11 + $0xab0] sm:$0xff]
        %v1437 = vld [vmem:[#allocation11 + $0xab8] sm:$0xff]
        %v1438 = vld [vmem:[#allocation11 + $0xac0] sm:$0xff]
        %v1439 = vld [vmem:[#allocation11 + $0xac8] sm:$0xff]
        %v1440 = vld [vmem:[#allocation11 + $0xad0] sm:$0xff]
        %v1441 = vld [vmem:[#allocation11 + $0xad8] sm:$0xff]
        %v1442 = vld [vmem:[#allocation11 + $0xae0] sm:$0xff]
        %v1443 = vld [vmem:[#allocation11 + $0xae8] sm:$0xff]
        %v1444 = vld [vmem:[#allocation11 + $0xaf0] sm:$0xff]
        %v1445 = vld [vmem:[#allocation11 + $0xaf8] sm:$0xff]
        %v1446 = vld [vmem:[#allocation11 + $0xb00] sm:$0xff]
        %v1447 = vld [vmem:[#allocation11 + $0xb08] sm:$0xff]
        %v1448 = vld [vmem:[#allocation11 + $0xb10] sm:$0xff]
        %v1449 = vld [vmem:[#allocation11 + $0xb18] sm:$0xff]
        %v1450 = vld [vmem:[#allocation11 + $0xb20] sm:$0xff]
        %v1451 = vld [vmem:[#allocation11 + $0xb28] sm:$0xff]
        %v1452 = vld [vmem:[#allocation11 + $0xb30] sm:$0xff]
        %v1453 = vld [vmem:[#allocation11 + $0xb38] sm:$0xff]
        %v1454 = vld [vmem:[#allocation11 + $0xb40] sm:$0xff]
        %v1455 = vld [vmem:[#allocation11 + $0xb48] sm:$0xff]
        %v1456 = vld [vmem:[#allocation11 + $0xb50] sm:$0xff]
        %v1457 = vld [vmem:[#allocation11 + $0xb58] sm:$0xff]
        %v1458 = vld [vmem:[#allocation11 + $0xb60] sm:$0xff]
        %v1459 = vld [vmem:[#allocation11 + $0xb68] sm:$0xff]
        %v1460 = vld [vmem:[#allocation11 + $0xb70] sm:$0xff]
        %v1461 = vld [vmem:[#allocation11 + $0xb78] sm:$0xff]
        %v1462 = vld [vmem:[#allocation11 + $0xb80] sm:$0xff]
        %v1463 = vld [vmem:[#allocation11 + $0xb88] sm:$0xff]
        %v1464 = vld [vmem:[#allocation11 + $0xb90] sm:$0xff]
        %v1465 = vld [vmem:[#allocation11 + $0xb98] sm:$0xff]
        %v1466 = vld [vmem:[#allocation11 + $0xba0] sm:$0xff]
        %v1467 = vld [vmem:[#allocation11 + $0xba8] sm:$0xff]
        %v1468 = vld [vmem:[#allocation11 + $0xbb0] sm:$0xff]
        %v1469 = vld [vmem:[#allocation11 + $0xbb8] sm:$0xff]
        %v1470 = vld [vmem:[#allocation11 + $0xbc0] sm:$0xff]
        %v1471 = vld [vmem:[#allocation11 + $0xbc8] sm:$0xff]
        %v1472 = vld [vmem:[#allocation11 + $0xbd0] sm:$0xff]
        %v1473 = vld [vmem:[#allocation11 + $0xbd8] sm:$0xff]
        %v1474 = vld [vmem:[#allocation11 + $0xbe0] sm:$0xff]
        %v1475 = vld [vmem:[#allocation11 + $0xbe8] sm:$0xff]
        %v1476 = vld [vmem:[#allocation11 + $0xbf0] sm:$0xff]
        %v1477 = vld [vmem:[#allocation11 + $0xbf8] sm:$0xff]
        %v1478 = vld [vmem:[#allocation11 + $0xc00] sm:$0xff]
        %v1479 = vld [vmem:[#allocation11 + $0xc08] sm:$0xff]
        %v1480 = vld [vmem:[#allocation11 + $0xc10] sm:$0xff]
        %v1481 = vld [vmem:[#allocation11 + $0xc18] sm:$0xff]
        %v1482 = vld [vmem:[#allocation11 + $0xc20] sm:$0xff]
        %v1483 = vld [vmem:[#allocation11 + $0xc28] sm:$0xff]
        %v1484 = vld [vmem:[#allocation11 + $0xc30] sm:$0xff]
        %v1485 = vld [vmem:[#allocation11 + $0xc38] sm:$0xff]
        %v1486 = vld [vmem:[#allocation11 + $0xc40] sm:$0xff]
        %v1487 = vld [vmem:[#allocation11 + $0xc48] sm:$0xff]
        %v1488 = vld [vmem:[#allocation11 + $0xc50] sm:$0xff]
        %v1489 = vld [vmem:[#allocation11 + $0xc58] sm:$0xff]
        %v1490 = vld [vmem:[#allocation11 + $0xc60] sm:$0xff]
        %v1491 = vld [vmem:[#allocation11 + $0xc68] sm:$0xff]
        %v1492 = vld [vmem:[#allocation11 + $0xc70] sm:$0xff]
        %v1493 = vld [vmem:[#allocation11 + $0xc78] sm:$0xff]
        %v1494 = vld [vmem:[#allocation11 + $0xc80] sm:$0xff]
        %v1495 = vld [vmem:[#allocation11 + $0xc88] sm:$0xff]
        %v1496 = vld [vmem:[#allocation11 + $0xc90] sm:$0xff]
        %v1497 = vld [vmem:[#allocation11 + $0xc98] sm:$0xff]
        %v1498 = vld [vmem:[#allocation11 + $0xca0] sm:$0xff]
        %v1499 = vld [vmem:[#allocation11 + $0xca8] sm:$0xff]
        %v1500 = vld [vmem:[#allocation11 + $0xcb0] sm:$0xff]
        %v1501 = vld [vmem:[#allocation11 + $0xcb8] sm:$0xff]
        %v1502 = vld [vmem:[#allocation11 + $0xcc0] sm:$0xff]
        %v1503 = vld [vmem:[#allocation11 + $0xcc8] sm:$0xff]
        %v1504 = vld [vmem:[#allocation11 + $0xcd0] sm:$0xff]
        %v1505 = vld [vmem:[#allocation11 + $0xcd8] sm:$0xff]
        %v1506 = vld [vmem:[#allocation11 + $0xce0] sm:$0xff]
        %v1507 = vld [vmem:[#allocation11 + $0xce8] sm:$0xff]
        %v1508 = vld [vmem:[#allocation11 + $0xcf0] sm:$0xff]
        %v1509 = vld [vmem:[#allocation11 + $0xcf8] sm:$0xff]
        %v1510 = vld [vmem:[#allocation11 + $0xd00] sm:$0xff]
        %v1511 = vld [vmem:[#allocation11 + $0xd08] sm:$0xff]
        %v1512 = vld [vmem:[#allocation11 + $0xd10] sm:$0xff]
        %v1513 = vld [vmem:[#allocation11 + $0xd18] sm:$0xff]
        %v1514 = vld [vmem:[#allocation11 + $0xd20] sm:$0xff]
        %v1515 = vld [vmem:[#allocation11 + $0xd28] sm:$0xff]
        %v1516 = vld [vmem:[#allocation11 + $0xd30] sm:$0xff]
        %v1517 = vld [vmem:[#allocation11 + $0xd38] sm:$0xff]
        %v1518 = vld [vmem:[#allocation11 + $0xd40] sm:$0xff]
        %v1519 = vld [vmem:[#allocation11 + $0xd48] sm:$0xff]
        %v1520 = vld [vmem:[#allocation11 + $0xd50] sm:$0xff]
        %v1521 = vld [vmem:[#allocation11 + $0xd58] sm:$0xff]
        %v1522 = vld [vmem:[#allocation11 + $0xd60] sm:$0xff]
        %v1523 = vld [vmem:[#allocation11 + $0xd68] sm:$0xff]
        %v1524 = vld [vmem:[#allocation11 + $0xd70] sm:$0xff]
        %v1525 = vld [vmem:[#allocation11 + $0xd78] sm:$0xff]
        %v1526 = vld [vmem:[#allocation11 + $0xd80] sm:$0xff]
        %v1527 = vld [vmem:[#allocation11 + $0xd88] sm:$0xff]
        %v1528 = vld [vmem:[#allocation11 + $0xd90] sm:$0xff]
        %v1529 = vld [vmem:[#allocation11 + $0xd98] sm:$0xff]
        %v1530 = vld [vmem:[#allocation11 + $0xda0] sm:$0xff]
        %v1531 = vld [vmem:[#allocation11 + $0xda8] sm:$0xff]
        %v1532 = vld [vmem:[#allocation11 + $0xdb0] sm:$0xff]
        %v1533 = vld [vmem:[#allocation11 + $0xdb8] sm:$0xff]
        %v1534 = vld [vmem:[#allocation11 + $0xdc0] sm:$0xff]
        %v1535 = vld [vmem:[#allocation11 + $0xdc8] sm:$0xff]
        %v1536 = vld [vmem:[#allocation11 + $0xdd0] sm:$0xff]
        %v1537 = vld [vmem:[#allocation11 + $0xdd8] sm:$0xff]
        %v1538 = vld [vmem:[#allocation11 + $0xde0] sm:$0xff]
        %v1539 = vld [vmem:[#allocation11 + $0xde8] sm:$0xff]
        %v1540 = vld [vmem:[#allocation11 + $0xdf0] sm:$0xff]
        %v1541 = vld [vmem:[#allocation11 + $0xdf8] sm:$0xff]
        %v1542 = vld [vmem:[#allocation11 + $0xe00] sm:$0xff]
        %v1543 = vld [vmem:[#allocation11 + $0xe08] sm:$0xff]
        %v1544 = vld [vmem:[#allocation11 + $0xe10] sm:$0xff]
        %v1545 = vld [vmem:[#allocation11 + $0xe18] sm:$0xff]
        %v1546 = vld [vmem:[#allocation11 + $0xe20] sm:$0xff]
        %v1547 = vld [vmem:[#allocation11 + $0xe28] sm:$0xff]
        %v1548 = vld [vmem:[#allocation11 + $0xe30] sm:$0xff]
        %v1549 = vld [vmem:[#allocation11 + $0xe38] sm:$0xff]
        %v1550 = vld [vmem:[#allocation11 + $0xe40] sm:$0xff]
        %v1551 = vld [vmem:[#allocation11 + $0xe48] sm:$0xff]
        %v1552 = vld [vmem:[#allocation11 + $0xe50] sm:$0xff]
        %v1553 = vld [vmem:[#allocation11 + $0xe58] sm:$0xff]
        %v1554 = vld [vmem:[#allocation11 + $0xe60] sm:$0xff]
        %v1555 = vld [vmem:[#allocation11 + $0xe68] sm:$0xff]
        %v1556 = vld [vmem:[#allocation11 + $0xe70] sm:$0xff]
        %v1557 = vld [vmem:[#allocation11 + $0xe78] sm:$0xff]
        %v1558 = vld [vmem:[#allocation11 + $0xe80] sm:$0xff]
        %v1559 = vld [vmem:[#allocation11 + $0xe88] sm:$0xff]
        %v1560 = vld [vmem:[#allocation11 + $0xe90] sm:$0xff]
        %v1561 = vld [vmem:[#allocation11 + $0xe98] sm:$0xff]
        %v1562 = vld [vmem:[#allocation11 + $0xea0] sm:$0xff]
        %v1563 = vld [vmem:[#allocation11 + $0xea8] sm:$0xff]
        %v1564 = vld [vmem:[#allocation11 + $0xeb0] sm:$0xff]
        %v1565 = vld [vmem:[#allocation11 + $0xeb8] sm:$0xff]
        %v1566 = vld [vmem:[#allocation11 + $0xec0] sm:$0xff]
        %v1567 = vld [vmem:[#allocation11 + $0xec8] sm:$0xff]
        %v1568 = vld [vmem:[#allocation11 + $0xed0] sm:$0xff]
        %v1569 = vld [vmem:[#allocation11 + $0xed8] sm:$0xff]
        %v1570 = vld [vmem:[#allocation11 + $0xee0] sm:$0xff]
        %v1571 = vld [vmem:[#allocation11 + $0xee8] sm:$0xff]
        %v1572 = vld [vmem:[#allocation11 + $0xef0] sm:$0xff]
        %v1573 = vld [vmem:[#allocation11 + $0xef8] sm:$0xff]
        %v1574 = vld [vmem:[#allocation11 + $0xf00] sm:$0xff]
        %v1575 = vld [vmem:[#allocation11 + $0xf08] sm:$0xff]
        %v1576 = vld [vmem:[#allocation11 + $0xf10] sm:$0xff]
        %v1577 = vld [vmem:[#allocation11 + $0xf18] sm:$0xff]
        %v1578 = vld [vmem:[#allocation11 + $0xf20] sm:$0xff]
        %v1579 = vld [vmem:[#allocation11 + $0xf28] sm:$0xff]
        %v1580 = vld [vmem:[#allocation11 + $0xf30] sm:$0xff]
        %v1581 = vld [vmem:[#allocation11 + $0xf38] sm:$0xff]
        %v1582 = vld [vmem:[#allocation11 + $0xf40] sm:$0xff]
        %v1583 = vld [vmem:[#allocation11 + $0xf48] sm:$0xff]
        %v1584 = vld [vmem:[#allocation11 + $0xf50] sm:$0xff]
        %v1585 = vld [vmem:[#allocation11 + $0xf58] sm:$0xff]
        %v1586 = vld [vmem:[#allocation11 + $0xf60] sm:$0xff]
        %v1587 = vld [vmem:[#allocation11 + $0xf68] sm:$0xff]
        %v1588 = vld [vmem:[#allocation11 + $0xf70] sm:$0xff]
        %v1589 = vld [vmem:[#allocation11 + $0xf78] sm:$0xff]
        %v1590 = vld [vmem:[#allocation11 + $0xf80] sm:$0xff]
        %v1591 = vld [vmem:[#allocation11 + $0xf88] sm:$0xff]
        %v1592 = vld [vmem:[#allocation11 + $0xf90] sm:$0xff]
        %v1593 = vld [vmem:[#allocation11 + $0xf98] sm:$0xff]
        %v1594 = vld [vmem:[#allocation11 + $0xfa0] sm:$0xff]
        %v1595 = vld [vmem:[#allocation11 + $0xfa8] sm:$0xff]
        %v1596 = vld [vmem:[#allocation11 + $0xfb0] sm:$0xff]
        %v1597 = vld [vmem:[#allocation11 + $0xfb8] sm:$0xff]
        %v1598 = vld [vmem:[#allocation11 + $0xfc0] sm:$0xff]
        %v1599 = vld [vmem:[#allocation11 + $0xfc8] sm:$0xff]
        %v1600 = vld [vmem:[#allocation11 + $0xfd0] sm:$0xff]
        %v1601 = vld [vmem:[#allocation11 + $0xfd8] sm:$0xff]
        %v1602 = vld [vmem:[#allocation11 + $0xfe0] sm:$0xff]
        %v1603 = vld [vmem:[#allocation11 + $0xfe8] sm:$0xff]
        %v1604 = vld [vmem:[#allocation11 + $0xff0] sm:$0xff]
        %v1605 = vld [vmem:[#allocation11 + $0xff8] sm:$0xff]
        %v1606 = vld [vmem:[#allocation11 + $0x1000] sm:$0xff]
        %v1607 = vld [vmem:[#allocation11 + $0x1008] sm:$0xff]
        %v1608 = vld [vmem:[#allocation11 + $0x1010] sm:$0xff]
        %v1609 = vld [vmem:[#allocation11 + $0x1018] sm:$0xff]
        %v1610 = vld [vmem:[#allocation11 + $0x1020] sm:$0xff]
        %v1611 = vld [vmem:[#allocation11 + $0x1028] sm:$0xff]
        %v1612 = vld [vmem:[#allocation11 + $0x1030] sm:$0xff]
        %v1613 = vld [vmem:[#allocation11 + $0x1038] sm:$0xff]
        %v1614 = vld [vmem:[#allocation11 + $0x1040] sm:$0xff]
        %v1615 = vld [vmem:[#allocation11 + $0x1048] sm:$0xff]
        %v1616 = vld [vmem:[#allocation11 + $0x1050] sm:$0xff]
        %v1617 = vld [vmem:[#allocation11 + $0x1058] sm:$0xff]
        %v1618 = vld [vmem:[#allocation11 + $0x1060] sm:$0xff]
        %v1619 = vld [vmem:[#allocation11 + $0x1068] sm:$0xff]
        %v1620 = vld [vmem:[#allocation11 + $0x1070] sm:$0xff]
        %v1621 = vld [vmem:[#allocation11 + $0x1078] sm:$0xff]
        %v1622 = vld [vmem:[#allocation11 + $0x1080] sm:$0xff]
        %v1623 = vld [vmem:[#allocation11 + $0x1088] sm:$0xff]
        %v1624 = vld [vmem:[#allocation11 + $0x1090] sm:$0xff]
        %v1625 = vld [vmem:[#allocation11 + $0x1098] sm:$0xff]
        %v1626 = vld [vmem:[#allocation11 + $0x10a0] sm:$0xff]
        %v1627 = vld [vmem:[#allocation11 + $0x10a8] sm:$0xff]
        %v1628 = vld [vmem:[#allocation11 + $0x10b0] sm:$0xff]
        %v1629 = vld [vmem:[#allocation11 + $0x10b8] sm:$0xff]
        %v1630 = vld [vmem:[#allocation11 + $0x10c0] sm:$0xff]
        %v1631 = vld [vmem:[#allocation11 + $0x10c8] sm:$0xff]
        %v1632 = vld [vmem:[#allocation11 + $0x10d0] sm:$0xff]
        %v1633 = vld [vmem:[#allocation11 + $0x10d8] sm:$0xff]
        %v1634 = vld [vmem:[#allocation11 + $0x10e0] sm:$0xff]
        %v1635 = vld [vmem:[#allocation11 + $0x10e8] sm:$0xff]
        %v1636 = vld [vmem:[#allocation11 + $0x10f0] sm:$0xff]
        %v1637 = vld [vmem:[#allocation11 + $0x10f8] sm:$0xff]
        %v1638 = vld [vmem:[#allocation11 + $0x1100] sm:$0xff]
        %v1639 = vld [vmem:[#allocation11 + $0x1108] sm:$0xff]
        %v1640 = vld [vmem:[#allocation11 + $0x1110] sm:$0xff]
        %v1641 = vld [vmem:[#allocation11 + $0x1118] sm:$0xff]
        %v1642 = vld [vmem:[#allocation11 + $0x1120] sm:$0xff]
        %v1643 = vld [vmem:[#allocation11 + $0x1128] sm:$0xff]
        %v1644 = vld [vmem:[#allocation11 + $0x1130] sm:$0xff]
        %v1645 = vld [vmem:[#allocation11 + $0x1138] sm:$0xff]
        %v1646 = vld [vmem:[#allocation11 + $0x1140] sm:$0xff]
        %v1647 = vld [vmem:[#allocation11 + $0x1148] sm:$0xff]
        %v1648 = vld [vmem:[#allocation11 + $0x1150] sm:$0xff]
        %v1649 = vld [vmem:[#allocation11 + $0x1158] sm:$0xff]
        %v1650 = vld [vmem:[#allocation11 + $0x1160] sm:$0xff]
        %v1651 = vld [vmem:[#allocation11 + $0x1168] sm:$0xff]
        %v1652 = vld [vmem:[#allocation11 + $0x1170] sm:$0xff]
        %v1653 = vld [vmem:[#allocation11 + $0x1178] sm:$0xff]
        %v1654 = vld [vmem:[#allocation11 + $0x1180] sm:$0xff]
        %v1655 = vld [vmem:[#allocation11 + $0x1188] sm:$0xff]
        %v1656 = vld [vmem:[#allocation11 + $0x1190] sm:$0xff]
        %v1657 = vld [vmem:[#allocation11 + $0x1198] sm:$0xff]
        %v1658 = vld [vmem:[#allocation11 + $0x11a0] sm:$0xff]
        %v1659 = vld [vmem:[#allocation11 + $0x11a8] sm:$0xff]
        %v1660 = vld [vmem:[#allocation11 + $0x11b0] sm:$0xff]
        %v1661 = vld [vmem:[#allocation11 + $0x11b8] sm:$0xff]
        %v1662 = vld [vmem:[#allocation11 + $0x11c0] sm:$0xff]
        %v1663 = vld [vmem:[#allocation11 + $0x11c8] sm:$0xff]
        %v1664 = vld [vmem:[#allocation11 + $0x11d0] sm:$0xff]
        %v1665 = vld [vmem:[#allocation11 + $0x11d8] sm:$0xff]
        %v1666 = vld [vmem:[#allocation11 + $0x11e0] sm:$0xff]
        %v1667 = vld [vmem:[#allocation11 + $0x11e8] sm:$0xff]
        %v1668 = vld [vmem:[#allocation11 + $0x11f0] sm:$0xff]
        %v1669 = vld [vmem:[#allocation11 + $0x11f8] sm:$0xff]
        %v1670 = vld [vmem:[#allocation11 + $0x1200] sm:$0xff]
        %v1671 = vld [vmem:[#allocation11 + $0x1208] sm:$0xff]
        %v1672 = vld [vmem:[#allocation11 + $0x1210] sm:$0xff]
        %v1673 = vld [vmem:[#allocation11 + $0x1218] sm:$0xff]
        %v1674 = vld [vmem:[#allocation11 + $0x1220] sm:$0xff]
        %v1675 = vld [vmem:[#allocation11 + $0x1228] sm:$0xff]
        %v1676 = vld [vmem:[#allocation11 + $0x1230] sm:$0xff]
        %v1677 = vld [vmem:[#allocation11 + $0x1238] sm:$0xff]
        %v1678 = vld [vmem:[#allocation11 + $0x1240] sm:$0xff]
        %v1679 = vld [vmem:[#allocation11 + $0x1248] sm:$0xff]
        %v1680 = vld [vmem:[#allocation11 + $0x1250] sm:$0xff]
        %v1681 = vld [vmem:[#allocation11 + $0x1258] sm:$0xff]
        %v1682 = vld [vmem:[#allocation11 + $0x1260] sm:$0xff]
        %v1683 = vld [vmem:[#allocation11 + $0x1268] sm:$0xff]
        %v1684 = vld [vmem:[#allocation11 + $0x1270] sm:$0xff]
        %v1685 = vld [vmem:[#allocation11 + $0x1278] sm:$0xff]
        %v1686 = vld [vmem:[#allocation11 + $0x1280] sm:$0xff]
        %v1687 = vld [vmem:[#allocation11 + $0x1288] sm:$0xff]
        %v1688 = vld [vmem:[#allocation11 + $0x1290] sm:$0xff]
        %v1689 = vld [vmem:[#allocation11 + $0x1298] sm:$0xff]
        %v1690 = vld [vmem:[#allocation11 + $0x12a0] sm:$0xff]
        %v1691 = vld [vmem:[#allocation11 + $0x12a8] sm:$0xff]
        %v1692 = vld [vmem:[#allocation11 + $0x12b0] sm:$0xff]
        %v1693 = vld [vmem:[#allocation11 + $0x12b8] sm:$0xff]
        %v1694 = vld [vmem:[#allocation11 + $0x12c0] sm:$0xff]
        %v1695 = vld [vmem:[#allocation11 + $0x12c8] sm:$0xff]
        %v1696 = vld [vmem:[#allocation11 + $0x12d0] sm:$0xff]
        %v1697 = vld [vmem:[#allocation11 + $0x12d8] sm:$0xff]
        %v1698 = vld [vmem:[#allocation11 + $0x12e0] sm:$0xff]
        %v1699 = vld [vmem:[#allocation11 + $0x12e8] sm:$0xff]
        %v1700 = vld [vmem:[#allocation11 + $0x12f0] sm:$0xff]
        %v1701 = vld [vmem:[#allocation11 + $0x12f8] sm:$0xff]
        %v1702 = vld [vmem:[#allocation11 + $0x1300] sm:$0xff]
        %v1703 = vld [vmem:[#allocation11 + $0x1308] sm:$0xff]
        %v1704 = vld [vmem:[#allocation11 + $0x1310] sm:$0xff]
        %v1705 = vld [vmem:[#allocation11 + $0x1318] sm:$0xff]
        %v1706 = vld [vmem:[#allocation11 + $0x1320] sm:$0xff]
        %v1707 = vld [vmem:[#allocation11 + $0x1328] sm:$0xff]
        %v1708 = vld [vmem:[#allocation11 + $0x1330] sm:$0xff]
        %v1709 = vld [vmem:[#allocation11 + $0x1338] sm:$0xff]
        %v1710 = vld [vmem:[#allocation11 + $0x1340] sm:$0xff]
        %v1711 = vld [vmem:[#allocation11 + $0x1348] sm:$0xff]
        %v1712 = vld [vmem:[#allocation11 + $0x1350] sm:$0xff]
        %v1713 = vld [vmem:[#allocation11 + $0x1358] sm:$0xff]
        %v1714 = vld [vmem:[#allocation11 + $0x1360] sm:$0xff]
        %v1715 = vld [vmem:[#allocation11 + $0x1368] sm:$0xff]
        %v1716 = vld [vmem:[#allocation11 + $0x1370] sm:$0xff]
        %v1717 = vld [vmem:[#allocation11 + $0x1378] sm:$0xff]
        %v1718 = vld [vmem:[#allocation11 + $0x1380] sm:$0xff]
        %v1719 = vld [vmem:[#allocation11 + $0x1388] sm:$0xff]
        %v1720 = vld [vmem:[#allocation11 + $0x1390] sm:$0xff]
        %v1721 = vld [vmem:[#allocation11 + $0x1398] sm:$0xff]
        %v1722 = vld [vmem:[#allocation11 + $0x13a0] sm:$0xff]
        %v1723 = vld [vmem:[#allocation11 + $0x13a8] sm:$0xff]
        %v1724 = vld [vmem:[#allocation11 + $0x13b0] sm:$0xff]
        %v1725 = vld [vmem:[#allocation11 + $0x13b8] sm:$0xff]
        %v1726 = vld [vmem:[#allocation11 + $0x13c0] sm:$0xff]
        %v1727 = vld [vmem:[#allocation11 + $0x13c8] sm:$0xff]
        %v1728 = vld [vmem:[#allocation11 + $0x13d0] sm:$0xff]
        %v1729 = vld [vmem:[#allocation11 + $0x13d8] sm:$0xff]
        %v1730 = vld [vmem:[#allocation11 + $0x13e0] sm:$0xff]
        %v1731 = vld [vmem:[#allocation11 + $0x13e8] sm:$0xff]
        %v1732 = vld [vmem:[#allocation11 + $0x13f0] sm:$0xff]
        %v1733 = vld [vmem:[#allocation11 + $0x13f8] sm:$0xff]
        %v1734 = vld [vmem:[#allocation11 + $0x1400] sm:$0xff]
        %v1735 = vld [vmem:[#allocation11 + $0x1408] sm:$0xff]
        %v1736 = vld [vmem:[#allocation11 + $0x1410] sm:$0xff]
        %v1737 = vld [vmem:[#allocation11 + $0x1418] sm:$0xff]
        %v1738 = vld [vmem:[#allocation11 + $0x1420] sm:$0xff]
        %v1739 = vld [vmem:[#allocation11 + $0x1428] sm:$0xff]
        %v1740 = vld [vmem:[#allocation11 + $0x1430] sm:$0xff]
        %v1741 = vld [vmem:[#allocation11 + $0x1438] sm:$0xff]
        %v1742 = vld [vmem:[#allocation11 + $0x1440] sm:$0xff]
        %v1743 = vld [vmem:[#allocation11 + $0x1448] sm:$0xff]
        %v1744 = vld [vmem:[#allocation11 + $0x1450] sm:$0xff]
        %v1745 = vld [vmem:[#allocation11 + $0x1458] sm:$0xff]
        %v1746 = vld [vmem:[#allocation11 + $0x1460] sm:$0xff]
        %v1747 = vld [vmem:[#allocation11 + $0x1468] sm:$0xff]
        %v1748 = vld [vmem:[#allocation11 + $0x1470] sm:$0xff]
        %v1749 = vld [vmem:[#allocation11 + $0x1478] sm:$0xff]
        %v1750 = vld [vmem:[#allocation11 + $0x1480] sm:$0xff]
        %v1751 = vld [vmem:[#allocation11 + $0x1488] sm:$0xff]
        %v1752 = vld [vmem:[#allocation11 + $0x1490] sm:$0xff]
        %v1753 = vld [vmem:[#allocation11 + $0x1498] sm:$0xff]
        %v1754 = vld [vmem:[#allocation11 + $0x14a0] sm:$0xff]
        %v1755 = vld [vmem:[#allocation11 + $0x14a8] sm:$0xff]
        %v1756 = vld [vmem:[#allocation11 + $0x14b0] sm:$0xff]
        %v1757 = vld [vmem:[#allocation11 + $0x14b8] sm:$0xff]
        %v1758 = vld [vmem:[#allocation11 + $0x14c0] sm:$0xff]
        %v1759 = vld [vmem:[#allocation11 + $0x14c8] sm:$0xff]
        %v1760 = vld [vmem:[#allocation11 + $0x14d0] sm:$0xff]
        %v1761 = vld [vmem:[#allocation11 + $0x14d8] sm:$0xff]
        %v1762 = vld [vmem:[#allocation11 + $0x14e0] sm:$0xff]
        %v1763 = vld [vmem:[#allocation11 + $0x14e8] sm:$0xff]
        %v1764 = vld [vmem:[#allocation11 + $0x14f0] sm:$0xff]
        %v1765 = vld [vmem:[#allocation11 + $0x14f8] sm:$0xff]
        %v1766 = vld [vmem:[#allocation11 + $0x1500] sm:$0xff]
        %v1767 = vld [vmem:[#allocation11 + $0x1508] sm:$0xff]
        %v1768 = vld [vmem:[#allocation11 + $0x1510] sm:$0xff]
        %v1769 = vld [vmem:[#allocation11 + $0x1518] sm:$0xff]
        %v1770 = vld [vmem:[#allocation11 + $0x1520] sm:$0xff]
        %v1771 = vld [vmem:[#allocation11 + $0x1528] sm:$0xff]
        %v1772 = vld [vmem:[#allocation11 + $0x1530] sm:$0xff]
        %v1773 = vld [vmem:[#allocation11 + $0x1538] sm:$0xff]
        %v1774 = vld [vmem:[#allocation11 + $0x1540] sm:$0xff]
        %v1775 = vld [vmem:[#allocation11 + $0x1548] sm:$0xff]
        %v1776 = vld [vmem:[#allocation11 + $0x1550] sm:$0xff]
        %v1777 = vld [vmem:[#allocation11 + $0x1558] sm:$0xff]
        %v1778 = vld [vmem:[#allocation11 + $0x1560] sm:$0xff]
        %v1779 = vld [vmem:[#allocation11 + $0x1568] sm:$0xff]
        %v1780 = vld [vmem:[#allocation11 + $0x1570] sm:$0xff]
        %v1781 = vld [vmem:[#allocation11 + $0x1578] sm:$0xff]
        %v1782 = vld [vmem:[#allocation11 + $0x1580] sm:$0xff]
        %v1783 = vld [vmem:[#allocation11 + $0x1588] sm:$0xff]
        %v1784 = vld [vmem:[#allocation11 + $0x1590] sm:$0xff]
        %v1785 = vld [vmem:[#allocation11 + $0x1598] sm:$0xff]
        %v1786 = vld [vmem:[#allocation11 + $0x15a0] sm:$0xff]
        %v1787 = vld [vmem:[#allocation11 + $0x15a8] sm:$0xff]
        %v1788 = vld [vmem:[#allocation11 + $0x15b0] sm:$0xff]
        %v1789 = vld [vmem:[#allocation11 + $0x15b8] sm:$0xff]
        %v1790 = vld [vmem:[#allocation11 + $0x15c0] sm:$0xff]
        %v1791 = vld [vmem:[#allocation11 + $0x15c8] sm:$0xff]
        %v1792 = vld [vmem:[#allocation11 + $0x15d0] sm:$0xff]
        %v1793 = vld [vmem:[#allocation11 + $0x15d8] sm:$0xff]
        %v1794 = vld [vmem:[#allocation11 + $0x15e0] sm:$0xff]
        %v1795 = vld [vmem:[#allocation11 + $0x15e8] sm:$0xff]
        %v1796 = vld [vmem:[#allocation11 + $0x15f0] sm:$0xff]
        %v1797 = vld [vmem:[#allocation11 + $0x15f8] sm:$0xff]
        %v1798 = vld [vmem:[#allocation11 + $0x1600] sm:$0xff]
        %v1799 = vld [vmem:[#allocation11 + $0x1608] sm:$0xff]
        %v1800 = vld [vmem:[#allocation11 + $0x1610] sm:$0xff]
        %v1801 = vld [vmem:[#allocation11 + $0x1618] sm:$0xff]
        %v1802 = vld [vmem:[#allocation11 + $0x1620] sm:$0xff]
        %v1803 = vld [vmem:[#allocation11 + $0x1628] sm:$0xff]
        %v1804 = vld [vmem:[#allocation11 + $0x1630] sm:$0xff]
        %v1805 = vld [vmem:[#allocation11 + $0x1638] sm:$0xff]
        %v1806 = vld [vmem:[#allocation11 + $0x1640] sm:$0xff]
        %v1807 = vld [vmem:[#allocation11 + $0x1648] sm:$0xff]
        %v1808 = vld [vmem:[#allocation11 + $0x1650] sm:$0xff]
        %v1809 = vld [vmem:[#allocation11 + $0x1658] sm:$0xff]
        %v1810 = vld [vmem:[#allocation11 + $0x1660] sm:$0xff]
        %v1811 = vld [vmem:[#allocation11 + $0x1668] sm:$0xff]
        %v1812 = vld [vmem:[#allocation11 + $0x1670] sm:$0xff]
        %v1813 = vld [vmem:[#allocation11 + $0x1678] sm:$0xff]
        %v1814 = vld [vmem:[#allocation11 + $0x1680] sm:$0xff]
        %v1815 = vld [vmem:[#allocation11 + $0x1688] sm:$0xff]
        %v1816 = vld [vmem:[#allocation11 + $0x1690] sm:$0xff]
        %v1817 = vld [vmem:[#allocation11 + $0x1698] sm:$0xff]
        %v1818 = vld [vmem:[#allocation11 + $0x16a0] sm:$0xff]
        %v1819 = vld [vmem:[#allocation11 + $0x16a8] sm:$0xff]
        %v1820 = vld [vmem:[#allocation11 + $0x16b0] sm:$0xff]
        %v1821 = vld [vmem:[#allocation11 + $0x16b8] sm:$0xff]
        %v1822 = vld [vmem:[#allocation11 + $0x16c0] sm:$0xff]
        %v1823 = vld [vmem:[#allocation11 + $0x16c8] sm:$0xff]
        %v1824 = vld [vmem:[#allocation11 + $0x16d0] sm:$0xff]
        %v1825 = vld [vmem:[#allocation11 + $0x16d8] sm:$0xff]
        %v1826 = vld [vmem:[#allocation11 + $0x16e0] sm:$0xff]
        %v1827 = vld [vmem:[#allocation11 + $0x16e8] sm:$0xff]
        %v1828 = vld [vmem:[#allocation11 + $0x16f0] sm:$0xff]
        %v1829 = vld [vmem:[#allocation11 + $0x16f8] sm:$0xff]
        %v1830 = vld [vmem:[#allocation11 + $0x1700] sm:$0xff]
        %v1831 = vld [vmem:[#allocation11 + $0x1708] sm:$0xff]
        %v1832 = vld [vmem:[#allocation11 + $0x1710] sm:$0xff]
        %v1833 = vld [vmem:[#allocation11 + $0x1718] sm:$0xff]
        %v1834 = vld [vmem:[#allocation11 + $0x1720] sm:$0xff]
        %v1835 = vld [vmem:[#allocation11 + $0x1728] sm:$0xff]
        %v1836 = vld [vmem:[#allocation11 + $0x1730] sm:$0xff]
        %v1837 = vld [vmem:[#allocation11 + $0x1738] sm:$0xff]
        %v1838 = vld [vmem:[#allocation11 + $0x1740] sm:$0xff]
        %v1839 = vld [vmem:[#allocation11 + $0x1748] sm:$0xff]
        %v1840 = vld [vmem:[#allocation11 + $0x1750] sm:$0xff]
        %v1841 = vld [vmem:[#allocation11 + $0x1758] sm:$0xff]
        %v1842 = vld [vmem:[#allocation11 + $0x1760] sm:$0xff]
        %v1843 = vld [vmem:[#allocation11 + $0x1768] sm:$0xff]
        %v1844 = vld [vmem:[#allocation11 + $0x1770] sm:$0xff]
        %v1845 = vld [vmem:[#allocation11 + $0x1778] sm:$0xff]
        %v1846 = vld [vmem:[#allocation11 + $0x1780] sm:$0xff]
        %v1847 = vld [vmem:[#allocation11 + $0x1788] sm:$0xff]
        %v1848 = vld [vmem:[#allocation11 + $0x1790] sm:$0xff]
        %v1849 = vld [vmem:[#allocation11 + $0x1798] sm:$0xff]
        %v1850 = vld [vmem:[#allocation11 + $0x17a0] sm:$0xff]
        %v1851 = vld [vmem:[#allocation11 + $0x17a8] sm:$0xff]
        %v1852 = vld [vmem:[#allocation11 + $0x17b0] sm:$0xff]
        %v1853 = vld [vmem:[#allocation11 + $0x17b8] sm:$0xff]
        %v1854 = vld [vmem:[#allocation11 + $0x17c0] sm:$0xff]
        %v1855 = vld [vmem:[#allocation11 + $0x17c8] sm:$0xff]
        %v1856 = vld [vmem:[#allocation11 + $0x17d0] sm:$0xff]
        %v1857 = vld [vmem:[#allocation11 + $0x17d8] sm:$0xff]
        %v1858 = vld [vmem:[#allocation11 + $0x17e0] sm:$0xff]
        %v1859 = vld [vmem:[#allocation11 + $0x17e8] sm:$0xff]
        %v1860 = vld [vmem:[#allocation11 + $0x17f0] sm:$0xff]
        %v1861 = vld [vmem:[#allocation11 + $0x17f8] sm:$0xff]
        %v1862 = vld [vmem:[#allocation11 + $0x1800] sm:$0xff]
        %v1863 = vld [vmem:[#allocation11 + $0x1808] sm:$0xff]
        %v1864 = vld [vmem:[#allocation11 + $0x1810] sm:$0xff]
        %v1865 = vld [vmem:[#allocation11 + $0x1818] sm:$0xff]
        %v1866 = vld [vmem:[#allocation11 + $0x1820] sm:$0xff]
        %v1867 = vld [vmem:[#allocation11 + $0x1828] sm:$0xff]
        %v1868 = vld [vmem:[#allocation11 + $0x1830] sm:$0xff]
        %v1869 = vld [vmem:[#allocation11 + $0x1838] sm:$0xff]
        %v1870 = vld [vmem:[#allocation11 + $0x1840] sm:$0xff]
        %v1871 = vld [vmem:[#allocation11 + $0x1848] sm:$0xff]
        %v1872 = vld [vmem:[#allocation11 + $0x1850] sm:$0xff]
        %v1873 = vld [vmem:[#allocation11 + $0x1858] sm:$0xff]
        %v1874 = vld [vmem:[#allocation11 + $0x1860] sm:$0xff]
        %v1875 = vld [vmem:[#allocation11 + $0x1868] sm:$0xff]
        %v1876 = vld [vmem:[#allocation11 + $0x1870] sm:$0xff]
        %v1877 = vld [vmem:[#allocation11 + $0x1878] sm:$0xff]
        %v1878 = vld [vmem:[#allocation13] sm:$0xff]
        %v1880 = vlaneseq
        %v1881 = vshrl.u32 %v1880, 7
        %v1882 = vsub.s32 0, %v1881
        %v1883 = vrot.slane %v1878, %v1882
        %v1884 = vlaneseq
        %v1885 = vshrl.u32 %v1884, 7
        %v1886 = vsub.s32 1, %v1885
        %v1887 = vrot.slane %v1878, %v1886
        %v1888 = vlaneseq
        %v1889 = vshrl.u32 %v1888, 7
        %v1890 = vsub.s32 2, %v1889
        %v1891 = vrot.slane %v1878, %v1890
        %v1892 = vlaneseq
        %v1893 = vshrl.u32 %v1892, 7
        %v1894 = vsub.s32 3, %v1893
        %v1895 = vrot.slane %v1878, %v1894
        %v1896 = vlaneseq
        %v1897 = vshrl.u32 %v1896, 7
        %v1898 = vsub.s32 4, %v1897
        %v1899 = vrot.slane %v1878, %v1898
        %v1900 = vlaneseq
        %v1901 = vshrl.u32 %v1900, 7
        %v1902 = vsub.s32 5, %v1901
        %v1903 = vrot.slane %v1878, %v1902
        %v1904 = vlaneseq
        %v1905 = vshrl.u32 %v1904, 7
        %v1906 = vsub.s32 6, %v1905
        %v1907 = vrot.slane %v1878, %v1906
        %1915 = vmatprep.subr.mxu0 %v1095
        %1916 = vmatpush1.msra.mxu0 %v1094
        %1917 = vmatprep.subr.mxu0 %v1102
        %1918 = vmatpush1.msra.mxu0 %v1101
        %1919 = vmatprep.subr.mxu0 %v1109
        %1920 = vmatpush1.msra.mxu0 %v1108
        %1921 = vmatprep.subr.mxu0 %v1116
        %1922 = vmatpush1.msra.mxu0 %v1115
        %1923 = vmatprep.subr.mxu0 %v1123
        %1924 = vmatpush1.msra.mxu0 %v1122
        %1925 = vmatprep.subr.mxu0 %v1130
        %1926 = vmatpush1.msra.mxu0 %v1129
        %1927 = vmatprep.subr.mxu0 %v1137
        %1928 = vmatpush1.msra.mxu0 %v1136
        %1929 = vmatprep.subr.mxu0 %v1144
        %1930 = vmatpush1.msra.mxu0 %v1143
        %1931 = vmatprep.subr.mxu0 %v1151
        %1932 = vmatpush1.msra.mxu0 %v1150
        %1933 = vmatprep.subr.mxu0 %v1158
        %1934 = vmatpush1.msra.mxu0 %v1157
        %1935 = vmatprep.subr.mxu0 %v1165
        %1936 = vmatpush1.msra.mxu0 %v1164
        %1937 = vmatprep.subr.mxu0 %v1172
        %1938 = vmatpush1.msra.mxu0 %v1171
        %1939 = vmatprep.subr.mxu0 %v1179
        %1940 = vmatpush1.msra.mxu0 %v1178
        %1941 = vmatprep.subr.mxu0 %v1186
        %1942 = vmatpush1.msra.mxu0 %v1185
        %1943 = vmatprep.subr.mxu0 %v1193
        %1944 = vmatpush1.msra.mxu0 %v1192
        %1945 = vmatprep.subr.mxu0 %v1200
        %1946 = vmatpush1.msra.mxu0 %v1199
        %1947 = vmatprep.subr.mxu0 %v1207
        %1948 = vmatpush1.msra.mxu0 %v1206
        %1949 = vmatprep.subr.mxu0 %v1214
        %1950 = vmatpush1.msra.mxu0 %v1213
        %1951 = vmatprep.subr.mxu0 %v1221
        %1952 = vmatpush1.msra.mxu0 %v1220
        %1953 = vmatprep.subr.mxu0 %v1228
        %1954 = vmatpush1.msra.mxu0 %v1227
        %1955 = vmatprep.subr.mxu0 %v1235
        %1956 = vmatpush1.msra.mxu0 %v1234
        %1957 = vmatprep.subr.mxu0 %v1242
        %1958 = vmatpush1.msra.mxu0 %v1241
        %1959 = vmatprep.subr.mxu0 %v1249
        %1960 = vmatpush1.msra.mxu0 %v1248
        %1961 = vmatprep.subr.mxu0 %v1256
        %1962 = vmatpush1.msra.mxu0 %v1255
        %1963 = vmatprep.subr.mxu0 %v1263
        %1964 = vmatpush1.msra.mxu0 %v1262
        %1965 = vmatprep.subr.mxu0 %v1270
        %1966 = vmatpush1.msra.mxu0 %v1269
        %1967 = vmatprep.subr.mxu0 %v1277
        %1968 = vmatpush1.msra.mxu0 %v1276
        %1969 = vmatprep.subr.mxu0 %v1284
        %1970 = vmatpush1.msra.mxu0 %v1283
        %1971 = vmatprep.subr.mxu0 %v1291
        %1972 = vmatpush1.msra.mxu0 %v1290
        %1973 = vmatprep.subr.mxu0 %v1298
        %1974 = vmatpush1.msra.mxu0 %v1297
        %1975 = vmatprep.subr.mxu0 %v1305
        %1976 = vmatpush1.msra.mxu0 %v1304
        %1977 = vmatprep.subr.mxu0 %v1312
        %1978 = vmatpush1.msra.mxu0 %v1311
        %1979 = vmatprep.mubr.f32.mxu0 %v1088
        %1980 = vmatmul.mubr.f32.gmra.mrb[0].mxu0 %v1087
        %v1981 = vpop.f32.mrb[0].mxu0
        %v1982 = vadd.f32 %v1883, %v1981
        %v1983 = vpop.f32.mrb[0].mxu0
        %v1984 = vadd.f32 %v1887, %v1983
        %1985 = vdwg.mxu0
        %1986 = vmatprep.subr.mxu0 %v1319
        %1987 = vmatpush1.msra.mxu0 %v1318
        %1988 = vmatprep.subr.mxu0 %v1326
        %1989 = vmatpush1.msra.mxu0 %v1325
        %1990 = vmatprep.subr.mxu0 %v1333
        %1991 = vmatpush1.msra.mxu0 %v1332
        %1992 = vmatprep.subr.mxu0 %v1340
        %1993 = vmatpush1.msra.mxu0 %v1339
        %1994 = vmatprep.subr.mxu0 %v1347
        %1995 = vmatpush1.msra.mxu0 %v1346
        %1996 = vmatprep.subr.mxu0 %v1354
        %1997 = vmatpush1.msra.mxu0 %v1353
        %1998 = vmatprep.subr.mxu0 %v1361
        %1999 = vmatpush1.msra.mxu0 %v1360
        %2000 = vmatprep.subr.mxu0 %v1368
        %2001 = vmatpush1.msra.mxu0 %v1367
        %2002 = vmatprep.subr.mxu0 %v1375
        %2003 = vmatpush1.msra.mxu0 %v1374
        %2004 = vmatprep.subr.mxu0 %v1382
        %2005 = vmatpush1.msra.mxu0 %v1381
        %2006 = vmatprep.subr.mxu0 %v1389
        %2007 = vmatpush1.msra.mxu0 %v1388
        %2008 = vmatprep.subr.mxu0 %v1396
        %2009 = vmatpush1.msra.mxu0 %v1395
        %2010 = vmatprep.subr.mxu0 %v1403
        %2011 = vmatpush1.msra.mxu0 %v1402
        %2012 = vmatprep.subr.mxu0 %v1410
        %2013 = vmatpush1.msra.mxu0 %v1409
        %2014 = vmatprep.subr.mxu0 %v1417
        %2015 = vmatpush1.msra.mxu0 %v1416
        %2016 = vmatprep.subr.mxu0 %v1424
        %2017 = vmatpush1.msra.mxu0 %v1423
        %2018 = vmatprep.subr.mxu0 %v1431
        %2019 = vmatpush1.msra.mxu0 %v1430
        %2020 = vmatprep.subr.mxu0 %v1438
        %2021 = vmatpush1.msra.mxu0 %v1437
        %2022 = vmatprep.subr.mxu0 %v1445
        %2023 = vmatpush1.msra.mxu0 %v1444
        %2024 = vmatprep.subr.mxu0 %v1452
        %2025 = vmatpush1.msra.mxu0 %v1451
        %2026 = vmatprep.subr.mxu0 %v1459
        %2027 = vmatpush1.msra.mxu0 %v1458
        %2028 = vmatprep.subr.mxu0 %v1466
        %2029 = vmatpush1.msra.mxu0 %v1465
        %2030 = vmatprep.subr.mxu0 %v1473
        %2031 = vmatpush1.msra.mxu0 %v1472
        %2032 = vmatprep.subr.mxu0 %v1480
        %2033 = vmatpush1.msra.mxu0 %v1479
        %2034 = vmatprep.subr.mxu0 %v1487
        %2035 = vmatpush1.msra.mxu0 %v1486
        %2036 = vmatprep.subr.mxu0 %v1494
        %2037 = vmatpush1.msra.mxu0 %v1493
        %2038 = vmatprep.subr.mxu0 %v1501
        %2039 = vmatpush1.msra.mxu0 %v1500
        %2040 = vmatprep.subr.mxu0 %v1508
        %2041 = vmatpush1.msra.mxu0 %v1507
        %2042 = vmatprep.subr.mxu0 %v1515
        %2043 = vmatpush1.msra.mxu0 %v1514
        %2044 = vmatprep.subr.mxu0 %v1522
        %2045 = vmatpush1.msra.mxu0 %v1521
        %2046 = vmatprep.subr.mxu0 %v1529
        %2047 = vmatpush1.msra.mxu0 %v1528
        %2048 = vmatprep.subr.mxu0 %v1536
        %2049 = vmatpush1.msra.mxu0 %v1535
        %2050 = vmatprep.mubr.f32.mxu0 %v1090
        %2051 = vmatmul.mubr.f32.gmra.mrb[0].mxu0 %v1089
        %v2052 = vpop.f32.mrb[0].mxu0
        %v2053 = vadd.f32 %v1982, %v2052
        %v2054 = vpop.f32.mrb[0].mxu0
        %v2055 = vadd.f32 %v1984, %v2054
        %2056 = vdwg.mxu0
        %2057 = vmatprep.subr.mxu0 %v1543
        %2058 = vmatpush1.msra.mxu0 %v1542
        %2059 = vmatprep.subr.mxu0 %v1550
        %2060 = vmatpush1.msra.mxu0 %v1549
        %2061 = vmatprep.subr.mxu0 %v1557
        %2062 = vmatpush1.msra.mxu0 %v1556
        %2063 = vmatprep.subr.mxu0 %v1564
        %2064 = vmatpush1.msra.mxu0 %v1563
        %2065 = vmatprep.subr.mxu0 %v1571
        %2066 = vmatpush1.msra.mxu0 %v1570
        %2067 = vmatprep.subr.mxu0 %v1578
        %2068 = vmatpush1.msra.mxu0 %v1577
        %2069 = vmatprep.subr.mxu0 %v1585
        %2070 = vmatpush1.msra.mxu0 %v1584
        %2071 = vmatprep.subr.mxu0 %v1592
        %2072 = vmatpush1.msra.mxu0 %v1591
        %2073 = vmatprep.subr.mxu0 %v1599
        %2074 = vmatpush1.msra.mxu0 %v1598
        %2075 = vmatprep.subr.mxu0 %v1606
        %2076 = vmatpush1.msra.mxu0 %v1605
        %2077 = vmatprep.subr.mxu0 %v1613
        %2078 = vmatpush1.msra.mxu0 %v1612
        %2079 = vmatprep.subr.mxu0 %v1620
        %2080 = vmatpush1.msra.mxu0 %v1619
        %2081 = vmatprep.subr.mxu0 %v1627
        %2082 = vmatpush1.msra.mxu0 %v1626
        %2083 = vmatprep.subr.mxu0 %v1634
        %2084 = vmatpush1.msra.mxu0 %v1633
        %2085 = vmatprep.subr.mxu0 %v1641
        %2086 = vmatpush1.msra.mxu0 %v1640
        %2087 = vmatprep.subr.mxu0 %v1648
        %2088 = vmatpush1.msra.mxu0 %v1647
        %2089 = vmatprep.subr.mxu0 %v1655
        %2090 = vmatpush1.msra.mxu0 %v1654
        %2091 = vmatprep.subr.mxu0 %v1662
        %2092 = vmatpush1.msra.mxu0 %v1661
        %2093 = vmatprep.subr.mxu0 %v1669
        %2094 = vmatpush1.msra.mxu0 %v1668
        %2095 = vmatprep.subr.mxu0 %v1676
        %2096 = vmatpush1.msra.mxu0 %v1675
        %2097 = vmatprep.subr.mxu0 %v1683
        %2098 = vmatpush1.msra.mxu0 %v1682
        %2099 = vmatprep.subr.mxu0 %v1690
        %2100 = vmatpush1.msra.mxu0 %v1689
        %2101 = vmatprep.subr.mxu0 %v1697
        %2102 = vmatpush1.msra.mxu0 %v1696
        %2103 = vmatprep.subr.mxu0 %v1704
        %2104 = vmatpush1.msra.mxu0 %v1703
        %2105 = vmatprep.subr.mxu0 %v1711
        %2106 = vmatpush1.msra.mxu0 %v1710
        %2107 = vmatprep.subr.mxu0 %v1718
        %2108 = vmatpush1.msra.mxu0 %v1717
        %2109 = vmatprep.subr.mxu0 %v1725
        %2110 = vmatpush1.msra.mxu0 %v1724
        %2111 = vmatprep.subr.mxu0 %v1732
        %2112 = vmatpush1.msra.mxu0 %v1731
        %2113 = vmatprep.subr.mxu0 %v1739
        %2114 = vmatpush1.msra.mxu0 %v1738
        %2115 = vmatprep.subr.mxu0 %v1746
        %2116 = vmatpush1.msra.mxu0 %v1745
        %2117 = vmatprep.subr.mxu0 %v1753
        %2118 = vmatpush1.msra.mxu0 %v1752
        %2119 = vmatprep.subr.mxu0 %v1760
        %2120 = vmatpush1.msra.mxu0 %v1759
        %2121 = vmatprep.mubr.f32.mxu0 %v1092
        %2122 = vmatmul.mubr.f32.gmra.mrb[0].mxu0 %v1091
        %v2123 = vpop.f32.mrb[0].mxu0
        %v2124 = vadd.f32 %v2053, %v2123
        %v2125 = vpop.f32.mrb[0].mxu0
        %v2126 = vadd.f32 %v2055, %v2125
        %2127 = vdwg.mxu0
        %2128 = vmatprep.subr.mxu0 %v1767
        %2129 = vmatpush1.msra.mxu0 %v1766
        %2130 = vmatprep.subr.mxu0 %v1774
        %2131 = vmatpush1.msra.mxu0 %v1773
        %2132 = vmatprep.subr.mxu0 %v1781
        %2133 = vmatpush1.msra.mxu0 %v1780
        %2134 = vmatprep.subr.mxu0 %v1788
        %2135 = vmatpush1.msra.mxu0 %v1787
        %2136 = vmatprep.subr.mxu0 %v1795
        %2137 = vmatpush1.msra.mxu0 %v1794
        %2138 = vmatprep.subr.mxu0 %v1802
        %2139 = vmatpush1.msra.mxu0 %v1801
        %2140 = vmatprep.subr.mxu0 %v1809
        %2141 = vmatpush1.msra.mxu0 %v1808
        %2142 = vmatprep.subr.mxu0 %v1816
        %2143 = vmatpush1.msra.mxu0 %v1815
        %2144 = vmatprep.subr.mxu0 %v1823
        %2145 = vmatpush1.msra.mxu0 %v1822
        %2146 = vmatprep.subr.mxu0 %v1830
        %2147 = vmatpush1.msra.mxu0 %v1829
        %2148 = vmatprep.subr.mxu0 %v1837
        %2149 = vmatpush1.msra.mxu0 %v1836
        %2150 = vmatprep.subr.mxu0 %v1844
        %2151 = vmatpush1.msra.mxu0 %v1843
        %2152 = vmatprep.subr.mxu0 %v1851
        %2153 = vmatpush1.msra.mxu0 %v1850
        %2154 = vmatprep.subr.mxu0 %v1858
        %2155 = vmatpush1.msra.mxu0 %v1857
        %2156 = vmatprep.subr.mxu0 %v1865
        %2157 = vmatpush1.msra.mxu0 %v1864
        %2158 = vmatprep.subr.mxu0 %v1872
        %2159 = vmatpush1.msra.mxu0 %v1871
        %2160 = vmatprep.subr.mxu0 0.0
        %2161 = vmatpush1.msra.mxu0 0.0
        %2162 = vmatprep.subr.mxu0 0.0
        %2163 = vmatpush1.msra.mxu0 0.0
        %2164 = vmatprep.subr.mxu0 0.0
        %2165 = vmatpush1.msra.mxu0 0.0
        %2166 = vmatprep.subr.mxu0 0.0
        %2167 = vmatpush1.msra.mxu0 0.0
        %2168 = vmatprep.subr.mxu0 0.0
        %2169 = vmatpush1.msra.mxu0 0.0
        %2170 = vmatprep.subr.mxu0 0.0
        %2171 = vmatpush1.msra.mxu0 0.0
        %2172 = vmatprep.subr.mxu0 0.0
        %2173 = vmatpush1.msra.mxu0 0.0
        %2174 = vmatprep.subr.mxu0 0.0
        %2175 = vmatpush1.msra.mxu0 0.0
        %2176 = vmatprep.subr.mxu0 0.0
        %2177 = vmatpush1.msra.mxu0 0.0
        %2178 = vmatprep.subr.mxu0 0.0
        %2179 = vmatpush1.msra.mxu0 0.0
        %2180 = vmatprep.subr.mxu0 0.0
        %2181 = vmatpush1.msra.mxu0 0.0
        %2182 = vmatprep.subr.mxu0 0.0
        %2183 = vmatpush1.msra.mxu0 0.0
        %2184 = vmatprep.subr.mxu0 0.0
        %2185 = vmatpush1.msra.mxu0 0.0
        %2186 = vmatprep.subr.mxu0 0.0
        %2187 = vmatpush1.msra.mxu0 0.0
        %2188 = vmatprep.subr.mxu0 0.0
        %2189 = vmatpush1.msra.mxu0 0.0
        %2190 = vmatprep.subr.mxu0 0.0
        %2191 = vmatpush1.msra.mxu0 0.0
        %2192 = vmatprep.mubr.f32.mxu0 0.0
        %2193 = vmatmul.mubr.f32.gmra.mrb[0].mxu0 %v1093
        %v2194 = vpop.f32.mrb[0].mxu0
        %v2195 = vadd.f32 %v2124, %v2194
        %v2196 = vpop.f32.mrb[0].mxu0
        %v2197 = vadd.f32 %v2126, %v2196
        %2198 = vdwg.mxu0
        %2199 = vmatprep.subr.mxu0 %v1097
        %2200 = vmatpush1.msra.mxu0 %v1096
        %2201 = vmatprep.subr.mxu0 %v1104
        %2202 = vmatpush1.msra.mxu0 %v1103
        %2203 = vmatprep.subr.mxu0 %v1111
        %2204 = vmatpush1.msra.mxu0 %v1110
        %2205 = vmatprep.subr.mxu0 %v1118
        %2206 = vmatpush1.msra.mxu0 %v1117
        %2207 = vmatprep.subr.mxu0 %v1125
        %2208 = vmatpush1.msra.mxu0 %v1124
        %2209 = vmatprep.subr.mxu0 %v1132
        %2210 = vmatpush1.msra.mxu0 %v1131
        %2211 = vmatprep.subr.mxu0 %v1139
        %2212 = vmatpush1.msra.mxu0 %v1138
        %2213 = vmatprep.subr.mxu0 %v1146
        %2214 = vmatpush1.msra.mxu0 %v1145
        %2215 = vmatprep.subr.mxu0 %v1153
        %2216 = vmatpush1.msra.mxu0 %v1152
        %2217 = vmatprep.subr.mxu0 %v1160
        %2218 = vmatpush1.msra.mxu0 %v1159
        %2219 = vmatprep.subr.mxu0 %v1167
        %2220 = vmatpush1.msra.mxu0 %v1166
        %2221 = vmatprep.subr.mxu0 %v1174
        %2222 = vmatpush1.msra.mxu0 %v1173
        %2223 = vmatprep.subr.mxu0 %v1181
        %2224 = vmatpush1.msra.mxu0 %v1180
        %2225 = vmatprep.subr.mxu0 %v1188
        %2226 = vmatpush1.msra.mxu0 %v1187
        %2227 = vmatprep.subr.mxu0 %v1195
        %2228 = vmatpush1.msra.mxu0 %v1194
        %2229 = vmatprep.subr.mxu0 %v1202
        %2230 = vmatpush1.msra.mxu0 %v1201
        %2231 = vmatprep.subr.mxu0 %v1209
        %2232 = vmatpush1.msra.mxu0 %v1208
        %2233 = vmatprep.subr.mxu0 %v1216
        %2234 = vmatpush1.msra.mxu0 %v1215
        %2235 = vmatprep.subr.mxu0 %v1223
        %2236 = vmatpush1.msra.mxu0 %v1222
        %2237 = vmatprep.subr.mxu0 %v1230
        %2238 = vmatpush1.msra.mxu0 %v1229
        %2239 = vmatprep.subr.mxu0 %v1237
        %2240 = vmatpush1.msra.mxu0 %v1236
        %2241 = vmatprep.subr.mxu0 %v1244
        %2242 = vmatpush1.msra.mxu0 %v1243
        %2243 = vmatprep.subr.mxu0 %v1251
        %2244 = vmatpush1.msra.mxu0 %v1250
        %2245 = vmatprep.subr.mxu0 %v1258
        %2246 = vmatpush1.msra.mxu0 %v1257
        %2247 = vmatprep.subr.mxu0 %v1265
        %2248 = vmatpush1.msra.mxu0 %v1264
        %2249 = vmatprep.subr.mxu0 %v1272
        %2250 = vmatpush1.msra.mxu0 %v1271
        %2251 = vmatprep.subr.mxu0 %v1279
        %2252 = vmatpush1.msra.mxu0 %v1278
        %2253 = vmatprep.subr.mxu0 %v1286
        %2254 = vmatpush1.msra.mxu0 %v1285
        %2255 = vmatprep.subr.mxu0 %v1293
        %2256 = vmatpush1.msra.mxu0 %v1292
        %2257 = vmatprep.subr.mxu0 %v1300
        %2258 = vmatpush1.msra.mxu0 %v1299
        %2259 = vmatprep.subr.mxu0 %v1307
        %2260 = vmatpush1.msra.mxu0 %v1306
        %2261 = vmatprep.subr.mxu0 %v1314
        %2262 = vmatpush1.msra.mxu0 %v1313
        %2263 = vmatprep.mubr.f32.mxu0 %v1088
        %2264 = vmatmul.mubr.f32.gmra.mrb[0].mxu0 %v1087
        %v2265 = vpop.f32.mrb[0].mxu0
        %v2266 = vadd.f32 %v1891, %v2265
        %v2267 = vpop.f32.mrb[0].mxu0
        %v2268 = vadd.f32 %v1895, %v2267
        %2269 = vdwg.mxu0
        %2270 = vmatprep.subr.mxu0 %v1321
        %2271 = vmatpush1.msra.mxu0 %v1320
        %2272 = vmatprep.subr.mxu0 %v1328
        %2273 = vmatpush1.msra.mxu0 %v1327
        %2274 = vmatprep.subr.mxu0 %v1335
        %2275 = vmatpush1.msra.mxu0 %v1334
        %2276 = vmatprep.subr.mxu0 %v1342
        %2277 = vmatpush1.msra.mxu0 %v1341
        %2278 = vmatprep.subr.mxu0 %v1349
        %2279 = vmatpush1.msra.mxu0 %v1348
        %2280 = vmatprep.subr.mxu0 %v1356
        %2281 = vmatpush1.msra.mxu0 %v1355
        %2282 = vmatprep.subr.mxu0 %v1363
        %2283 = vmatpush1.msra.mxu0 %v1362
        %2284 = vmatprep.subr.mxu0 %v1370
        %2285 = vmatpush1.msra.mxu0 %v1369
        %2286 = vmatprep.subr.mxu0 %v1377
        %2287 = vmatpush1.msra.mxu0 %v1376
        %2288 = vmatprep.subr.mxu0 %v1384
        %2289 = vmatpush1.msra.mxu0 %v1383
        %2290 = vmatprep.subr.mxu0 %v1391
        %2291 = vmatpush1.msra.mxu0 %v1390
        %2292 = vmatprep.subr.mxu0 %v1398
        %2293 = vmatpush1.msra.mxu0 %v1397
        %2294 = vmatprep.subr.mxu0 %v1405
        %2295 = vmatpush1.msra.mxu0 %v1404
        %2296 = vmatprep.subr.mxu0 %v1412
        %2297 = vmatpush1.msra.mxu0 %v1411
        %2298 = vmatprep.subr.mxu0 %v1419
        %2299 = vmatpush1.msra.mxu0 %v1418
        %2300 = vmatprep.subr.mxu0 %v1426
        %2301 = vmatpush1.msra.mxu0 %v1425
        %2302 = vmatprep.subr.mxu0 %v1433
        %2303 = vmatpush1.msra.mxu0 %v1432
        %2304 = vmatprep.subr.mxu0 %v1440
        %2305 = vmatpush1.msra.mxu0 %v1439
        %2306 = vmatprep.subr.mxu0 %v1447
        %2307 = vmatpush1.msra.mxu0 %v1446
        %2308 = vmatprep.subr.mxu0 %v1454
        %2309 = vmatpush1.msra.mxu0 %v1453
        %2310 = vmatprep.subr.mxu0 %v1461
        %2311 = vmatpush1.msra.mxu0 %v1460
        %2312 = vmatprep.subr.mxu0 %v1468
        %2313 = vmatpush1.msra.mxu0 %v1467
        %2314 = vmatprep.subr.mxu0 %v1475
        %2315 = vmatpush1.msra.mxu0 %v1474
        %2316 = vmatprep.subr.mxu0 %v1482
        %2317 = vmatpush1.msra.mxu0 %v1481
        %2318 = vmatprep.subr.mxu0 %v1489
        %2319 = vmatpush1.msra.mxu0 %v1488
        %2320 = vmatprep.subr.mxu0 %v1496
        %2321 = vmatpush1.msra.mxu0 %v1495
        %2322 = vmatprep.subr.mxu0 %v1503
        %2323 = vmatpush1.msra.mxu0 %v1502
        %2324 = vmatprep.subr.mxu0 %v1510
        %2325 = vmatpush1.msra.mxu0 %v1509
        %2326 = vmatprep.subr.mxu0 %v1517
        %2327 = vmatpush1.msra.mxu0 %v1516
        %2328 = vmatprep.subr.mxu0 %v1524
        %2329 = vmatpush1.msra.mxu0 %v1523
        %2330 = vmatprep.subr.mxu0 %v1531
        %2331 = vmatpush1.msra.mxu0 %v1530
        %2332 = vmatprep.subr.mxu0 %v1538
        %2333 = vmatpush1.msra.mxu0 %v1537
        %2334 = vmatprep.mubr.f32.mxu0 %v1090
        %2335 = vmatmul.mubr.f32.gmra.mrb[0].mxu0 %v1089
        %v2336 = vpop.f32.mrb[0].mxu0
        %v2337 = vadd.f32 %v2266, %v2336
        %v2338 = vpop.f32.mrb[0].mxu0
        %v2339 = vadd.f32 %v2268, %v2338
        %2340 = vdwg.mxu0
        %2341 = vmatprep.subr.mxu0 %v1545
        %2342 = vmatpush1.msra.mxu0 %v1544
        %2343 = vmatprep.subr.mxu0 %v1552
        %2344 = vmatpush1.msra.mxu0 %v1551
        %2345 = vmatprep.subr.mxu0 %v1559
        %2346 = vmatpush1.msra.mxu0 %v1558
        %2347 = vmatprep.subr.mxu0 %v1566
        %2348 = vmatpush1.msra.mxu0 %v1565
        %2349 = vmatprep.subr.mxu0 %v1573
        %2350 = vmatpush1.msra.mxu0 %v1572
        %2351 = vmatprep.subr.mxu0 %v1580
        %2352 = vmatpush1.msra.mxu0 %v1579
        %2353 = vmatprep.subr.mxu0 %v1587
        %2354 = vmatpush1.msra.mxu0 %v1586
        %2355 = vmatprep.subr.mxu0 %v1594
        %2356 = vmatpush1.msra.mxu0 %v1593
        %2357 = vmatprep.subr.mxu0 %v1601
        %2358 = vmatpush1.msra.mxu0 %v1600
        %2359 = vmatprep.subr.mxu0 %v1608
        %2360 = vmatpush1.msra.mxu0 %v1607
        %2361 = vmatprep.subr.mxu0 %v1615
        %2362 = vmatpush1.msra.mxu0 %v1614
        %2363 = vmatprep.subr.mxu0 %v1622
        %2364 = vmatpush1.msra.mxu0 %v1621
        %2365 = vmatprep.subr.mxu0 %v1629
        %2366 = vmatpush1.msra.mxu0 %v1628
        %2367 = vmatprep.subr.mxu0 %v1636
        %2368 = vmatpush1.msra.mxu0 %v1635
        %2369 = vmatprep.subr.mxu0 %v1643
        %2370 = vmatpush1.msra.mxu0 %v1642
        %2371 = vmatprep.subr.mxu0 %v1650
        %2372 = vmatpush1.msra.mxu0 %v1649
        %2373 = vmatprep.subr.mxu0 %v1657
        %2374 = vmatpush1.msra.mxu0 %v1656
        %2375 = vmatprep.subr.mxu0 %v1664
        %2376 = vmatpush1.msra.mxu0 %v1663
        %2377 = vmatprep.subr.mxu0 %v1671
        %2378 = vmatpush1.msra.mxu0 %v1670
        %2379 = vmatprep.subr.mxu0 %v1678
        %2380 = vmatpush1.msra.mxu0 %v1677
        %2381 = vmatprep.subr.mxu0 %v1685
        %2382 = vmatpush1.msra.mxu0 %v1684
        %2383 = vmatprep.subr.mxu0 %v1692
        %2384 = vmatpush1.msra.mxu0 %v1691
        %2385 = vmatprep.subr.mxu0 %v1699
        %2386 = vmatpush1.msra.mxu0 %v1698
        %2387 = vmatprep.subr.mxu0 %v1706
        %2388 = vmatpush1.msra.mxu0 %v1705
        %2389 = vmatprep.subr.mxu0 %v1713
        %2390 = vmatpush1.msra.mxu0 %v1712
        %2391 = vmatprep.subr.mxu0 %v1720
        %2392 = vmatpush1.msra.mxu0 %v1719
        %2393 = vmatprep.subr.mxu0 %v1727
        %2394 = vmatpush1.msra.mxu0 %v1726
        %2395 = vmatprep.subr.mxu0 %v1734
        %2396 = vmatpush1.msra.mxu0 %v1733
        %2397 = vmatprep.subr.mxu0 %v1741
        %2398 = vmatpush1.msra.mxu0 %v1740
        %2399 = vmatprep.subr.mxu0 %v1748
        %2400 = vmatpush1.msra.mxu0 %v1747
        %2401 = vmatprep.subr.mxu0 %v1755
        %2402 = vmatpush1.msra.mxu0 %v1754
        %2403 = vmatprep.subr.mxu0 %v1762
        %2404 = vmatpush1.msra.mxu0 %v1761
        %2405 = vmatprep.mubr.f32.mxu0 %v1092
        %2406 = vmatmul.mubr.f32.gmra.mrb[0].mxu0 %v1091
        %v2407 = vpop.f32.mrb[0].mxu0
        %v2408 = vadd.f32 %v2337, %v2407
        %v2409 = vpop.f32.mrb[0].mxu0
        %v2410 = vadd.f32 %v2339, %v2409
        %2411 = vdwg.mxu0
        %2412 = vmatprep.subr.mxu0 %v1769
        %2413 = vmatpush1.msra.mxu0 %v1768
        %2414 = vmatprep.subr.mxu0 %v1776
        %2415 = vmatpush1.msra.mxu0 %v1775
        %2416 = vmatprep.subr.mxu0 %v1783
        %2417 = vmatpush1.msra.mxu0 %v1782
        %2418 = vmatprep.subr.mxu0 %v1790
        %2419 = vmatpush1.msra.mxu0 %v1789
        %2420 = vmatprep.subr.mxu0 %v1797
        %2421 = vmatpush1.msra.mxu0 %v1796
        %2422 = vmatprep.subr.mxu0 %v1804
        %2423 = vmatpush1.msra.mxu0 %v1803
        %2424 = vmatprep.subr.mxu0 %v1811
        %2425 = vmatpush1.msra.mxu0 %v1810
        %2426 = vmatprep.subr.mxu0 %v1818
        %2427 = vmatpush1.msra.mxu0 %v1817
        %2428 = vmatprep.subr.mxu0 %v1825
        %2429 = vmatpush1.msra.mxu0 %v1824
        %2430 = vmatprep.subr.mxu0 %v1832
        %2431 = vmatpush1.msra.mxu0 %v1831
        %2432 = vmatprep.subr.mxu0 %v1839
        %2433 = vmatpush1.msra.mxu0 %v1838
        %2434 = vmatprep.subr.mxu0 %v1846
        %2435 = vmatpush1.msra.mxu0 %v1845
        %2436 = vmatprep.subr.mxu0 %v1853
        %2437 = vmatpush1.msra.mxu0 %v1852
        %2438 = vmatprep.subr.mxu0 %v1860
        %2439 = vmatpush1.msra.mxu0 %v1859
        %2440 = vmatprep.subr.mxu0 %v1867
        %2441 = vmatpush1.msra.mxu0 %v1866
        %2442 = vmatprep.subr.mxu0 %v1874
        %2443 = vmatpush1.msra.mxu0 %v1873
        %2444 = vmatprep.subr.mxu0 0.0
        %2445 = vmatpush1.msra.mxu0 0.0
        %2446 = vmatprep.subr.mxu0 0.0
        %2447 = vmatpush1.msra.mxu0 0.0
        %2448 = vmatprep.subr.mxu0 0.0
        %2449 = vmatpush1.msra.mxu0 0.0
        %2450 = vmatprep.subr.mxu0 0.0
        %2451 = vmatpush1.msra.mxu0 0.0
        %2452 = vmatprep.subr.mxu0 0.0
        %2453 = vmatpush1.msra.mxu0 0.0
        %2454 = vmatprep.subr.mxu0 0.0
        %2455 = vmatpush1.msra.mxu0 0.0
        %2456 = vmatprep.subr.mxu0 0.0
        %2457 = vmatpush1.msra.mxu0 0.0
        %2458 = vmatprep.subr.mxu0 0.0
        %2459 = vmatpush1.msra.mxu0 0.0
        %2460 = vmatprep.subr.mxu0 0.0
        %2461 = vmatpush1.msra.mxu0 0.0
        %2462 = vmatprep.subr.mxu0 0.0
        %2463 = vmatpush1.msra.mxu0 0.0
        %2464 = vmatprep.subr.mxu0 0.0
        %2465 = vmatpush1.msra.mxu0 0.0
        %2466 = vmatprep.subr.mxu0 0.0
        %2467 = vmatpush1.msra.mxu0 0.0
        %2468 = vmatprep.subr.mxu0 0.0
        %2469 = vmatpush1.msra.mxu0 0.0
        %2470 = vmatprep.subr.mxu0 0.0
        %2471 = vmatpush1.msra.mxu0 0.0
        %2472 = vmatprep.subr.mxu0 0.0
        %2473 = vmatpush1.msra.mxu0 0.0
        %2474 = vmatprep.subr.mxu0 0.0
        %2475 = vmatpush1.msra.mxu0 0.0
        %2476 = vmatprep.mubr.f32.mxu0 0.0
        %2477 = vmatmul.mubr.f32.gmra.mrb[0].mxu0 %v1093
        %v2478 = vpop.f32.mrb[0].mxu0
        %v2479 = vadd.f32 %v2408, %v2478
        %v2480 = vpop.f32.mrb[0].mxu0
        %v2481 = vadd.f32 %v2410, %v2480
        %2482 = vdwg.mxu0
        %2483 = vmatprep.subr.mxu0 %v1099
        %2484 = vmatpush1.msra.mxu0 %v1098
        %2485 = vmatprep.subr.mxu0 %v1106
        %2486 = vmatpush1.msra.mxu0 %v1105
        %2487 = vmatprep.subr.mxu0 %v1113
        %2488 = vmatpush1.msra.mxu0 %v1112
        %2489 = vmatprep.subr.mxu0 %v1120
        %2490 = vmatpush1.msra.mxu0 %v1119
        %2491 = vmatprep.subr.mxu0 %v1127
        %2492 = vmatpush1.msra.mxu0 %v1126
        %2493 = vmatprep.subr.mxu0 %v1134
        %2494 = vmatpush1.msra.mxu0 %v1133
        %2495 = vmatprep.subr.mxu0 %v1141
        %2496 = vmatpush1.msra.mxu0 %v1140
        %2497 = vmatprep.subr.mxu0 %v1148
        %2498 = vmatpush1.msra.mxu0 %v1147
        %2499 = vmatprep.subr.mxu0 %v1155
        %2500 = vmatpush1.msra.mxu0 %v1154
        %2501 = vmatprep.subr.mxu0 %v1162
        %2502 = vmatpush1.msra.mxu0 %v1161
        %2503 = vmatprep.subr.mxu0 %v1169
        %2504 = vmatpush1.msra.mxu0 %v1168
        %2505 = vmatprep.subr.mxu0 %v1176
        %2506 = vmatpush1.msra.mxu0 %v1175
        %2507 = vmatprep.subr.mxu0 %v1183
        %2508 = vmatpush1.msra.mxu0 %v1182
        %2509 = vmatprep.subr.mxu0 %v1190
        %2510 = vmatpush1.msra.mxu0 %v1189
        %2511 = vmatprep.subr.mxu0 %v1197
        %2512 = vmatpush1.msra.mxu0 %v1196
        %2513 = vmatprep.subr.mxu0 %v1204
        %2514 = vmatpush1.msra.mxu0 %v1203
        %2515 = vmatprep.subr.mxu0 %v1211
        %2516 = vmatpush1.msra.mxu0 %v1210
        %2517 = vmatprep.subr.mxu0 %v1218
        %2518 = vmatpush1.msra.mxu0 %v1217
        %2519 = vmatprep.subr.mxu0 %v1225
        %2520 = vmatpush1.msra.mxu0 %v1224
        %2521 = vmatprep.subr.mxu0 %v1232
        %2522 = vmatpush1.msra.mxu0 %v1231
        %2523 = vmatprep.subr.mxu0 %v1239
        %2524 = vmatpush1.msra.mxu0 %v1238
        %2525 = vmatprep.subr.mxu0 %v1246
        %2526 = vmatpush1.msra.mxu0 %v1245
        %2527 = vmatprep.subr.mxu0 %v1253
        %2528 = vmatpush1.msra.mxu0 %v1252
        %2529 = vmatprep.subr.mxu0 %v1260
        %2530 = vmatpush1.msra.mxu0 %v1259
        %2531 = vmatprep.subr.mxu0 %v1267
        %2532 = vmatpush1.msra.mxu0 %v1266
        %2533 = vmatprep.subr.mxu0 %v1274
        %2534 = vmatpush1.msra.mxu0 %v1273
        %2535 = vmatprep.subr.mxu0 %v1281
        %2536 = vmatpush1.msra.mxu0 %v1280
        %2537 = vmatprep.subr.mxu0 %v1288
        %2538 = vmatpush1.msra.mxu0 %v1287
        %2539 = vmatprep.subr.mxu0 %v1295
        %2540 = vmatpush1.msra.mxu0 %v1294
        %2541 = vmatprep.subr.mxu0 %v1302
        %2542 = vmatpush1.msra.mxu0 %v1301
        %2543 = vmatprep.subr.mxu0 %v1309
        %2544 = vmatpush1.msra.mxu0 %v1308
        %2545 = vmatprep.subr.mxu0 %v1316
        %2546 = vmatpush1.msra.mxu0 %v1315
        %2547 = vmatprep.mubr.f32.mxu0 %v1088
        %2548 = vmatmul.mubr.f32.gmra.mrb[0].mxu0 %v1087
        %v2549 = vpop.f32.mrb[0].mxu0
        %v2550 = vadd.f32 %v1899, %v2549
        %v2551 = vpop.f32.mrb[0].mxu0
        %v2552 = vadd.f32 %v1903, %v2551
        %2553 = vdwg.mxu0
        %2554 = vmatprep.subr.mxu0 %v1323
        %2555 = vmatpush1.msra.mxu0 %v1322
        %2556 = vmatprep.subr.mxu0 %v1330
        %2557 = vmatpush1.msra.mxu0 %v1329
        %2558 = vmatprep.subr.mxu0 %v1337
        %2559 = vmatpush1.msra.mxu0 %v1336
        %2560 = vmatprep.subr.mxu0 %v1344
        %2561 = vmatpush1.msra.mxu0 %v1343
        %2562 = vmatprep.subr.mxu0 %v1351
        %2563 = vmatpush1.msra.mxu0 %v1350
        %2564 = vmatprep.subr.mxu0 %v1358
        %2565 = vmatpush1.msra.mxu0 %v1357
        %2566 = vmatprep.subr.mxu0 %v1365
        %2567 = vmatpush1.msra.mxu0 %v1364
        %2568 = vmatprep.subr.mxu0 %v1372
        %2569 = vmatpush1.msra.mxu0 %v1371
        %2570 = vmatprep.subr.mxu0 %v1379
        %2571 = vmatpush1.msra.mxu0 %v1378
        %2572 = vmatprep.subr.mxu0 %v1386
        %2573 = vmatpush1.msra.mxu0 %v1385
        %2574 = vmatprep.subr.mxu0 %v1393
        %2575 = vmatpush1.msra.mxu0 %v1392
        %2576 = vmatprep.subr.mxu0 %v1400
        %2577 = vmatpush1.msra.mxu0 %v1399
        %2578 = vmatprep.subr.mxu0 %v1407
        %2579 = vmatpush1.msra.mxu0 %v1406
        %2580 = vmatprep.subr.mxu0 %v1414
        %2581 = vmatpush1.msra.mxu0 %v1413
        %2582 = vmatprep.subr.mxu0 %v1421
        %2583 = vmatpush1.msra.mxu0 %v1420
        %2584 = vmatprep.subr.mxu0 %v1428
        %2585 = vmatpush1.msra.mxu0 %v1427
        %2586 = vmatprep.subr.mxu0 %v1435
        %2587 = vmatpush1.msra.mxu0 %v1434
        %2588 = vmatprep.subr.mxu0 %v1442
        %2589 = vmatpush1.msra.mxu0 %v1441
        %2590 = vmatprep.subr.mxu0 %v1449
        %2591 = vmatpush1.msra.mxu0 %v1448
        %2592 = vmatprep.subr.mxu0 %v1456
        %2593 = vmatpush1.msra.mxu0 %v1455
        %2594 = vmatprep.subr.mxu0 %v1463
        %2595 = vmatpush1.msra.mxu0 %v1462
        %2596 = vmatprep.subr.mxu0 %v1470
        %2597 = vmatpush1.msra.mxu0 %v1469
        %2598 = vmatprep.subr.mxu0 %v1477
        %2599 = vmatpush1.msra.mxu0 %v1476
        %2600 = vmatprep.subr.mxu0 %v1484
        %2601 = vmatpush1.msra.mxu0 %v1483
        %2602 = vmatprep.subr.mxu0 %v1491
        %2603 = vmatpush1.msra.mxu0 %v1490
        %2604 = vmatprep.subr.mxu0 %v1498
        %2605 = vmatpush1.msra.mxu0 %v1497
        %2606 = vmatprep.subr.mxu0 %v1505
        %2607 = vmatpush1.msra.mxu0 %v1504
        %2608 = vmatprep.subr.mxu0 %v1512
        %2609 = vmatpush1.msra.mxu0 %v1511
        %2610 = vmatprep.subr.mxu0 %v1519
        %2611 = vmatpush1.msra.mxu0 %v1518
        %2612 = vmatprep.subr.mxu0 %v1526
        %2613 = vmatpush1.msra.mxu0 %v1525
        %2614 = vmatprep.subr.mxu0 %v1533
        %2615 = vmatpush1.msra.mxu0 %v1532
        %2616 = vmatprep.subr.mxu0 %v1540
        %2617 = vmatpush1.msra.mxu0 %v1539
        %2618 = vmatprep.mubr.f32.mxu0 %v1090
        %2619 = vmatmul.mubr.f32.gmra.mrb[0].mxu0 %v1089
        %v2620 = vpop.f32.mrb[0].mxu0
        %v2621 = vadd.f32 %v2550, %v2620
        %v2622 = vpop.f32.mrb[0].mxu0
        %v2623 = vadd.f32 %v2552, %v2622
        %2624 = vdwg.mxu0
        %2625 = vmatprep.subr.mxu0 %v1547
        %2626 = vmatpush1.msra.mxu0 %v1546
        %2627 = vmatprep.subr.mxu0 %v1554
        %2628 = vmatpush1.msra.mxu0 %v1553
        %2629 = vmatprep.subr.mxu0 %v1561
        %2630 = vmatpush1.msra.mxu0 %v1560
        %2631 = vmatprep.subr.mxu0 %v1568
        %2632 = vmatpush1.msra.mxu0 %v1567
        %2633 = vmatprep.subr.mxu0 %v1575
        %2634 = vmatpush1.msra.mxu0 %v1574
        %2635 = vmatprep.subr.mxu0 %v1582
        %2636 = vmatpush1.msra.mxu0 %v1581
        %2637 = vmatprep.subr.mxu0 %v1589
        %2638 = vmatpush1.msra.mxu0 %v1588
        %2639 = vmatprep.subr.mxu0 %v1596
        %2640 = vmatpush1.msra.mxu0 %v1595
        %2641 = vmatprep.subr.mxu0 %v1603
        %2642 = vmatpush1.msra.mxu0 %v1602
        %2643 = vmatprep.subr.mxu0 %v1610
        %2644 = vmatpush1.msra.mxu0 %v1609
        %2645 = vmatprep.subr.mxu0 %v1617
        %2646 = vmatpush1.msra.mxu0 %v1616
        %2647 = vmatprep.subr.mxu0 %v1624
        %2648 = vmatpush1.msra.mxu0 %v1623
        %2649 = vmatprep.subr.mxu0 %v1631
        %2650 = vmatpush1.msra.mxu0 %v1630
        %2651 = vmatprep.subr.mxu0 %v1638
        %2652 = vmatpush1.msra.mxu0 %v1637
        %2653 = vmatprep.subr.mxu0 %v1645
        %2654 = vmatpush1.msra.mxu0 %v1644
        %2655 = vmatprep.subr.mxu0 %v1652
        %2656 = vmatpush1.msra.mxu0 %v1651
        %2657 = vmatprep.subr.mxu0 %v1659
        %2658 = vmatpush1.msra.mxu0 %v1658
        %2659 = vmatprep.subr.mxu0 %v1666
        %2660 = vmatpush1.msra.mxu0 %v1665
        %2661 = vmatprep.subr.mxu0 %v1673
        %2662 = vmatpush1.msra.mxu0 %v1672
        %2663 = vmatprep.subr.mxu0 %v1680
        %2664 = vmatpush1.msra.mxu0 %v1679
        %2665 = vmatprep.subr.mxu0 %v1687
        %2666 = vmatpush1.msra.mxu0 %v1686
        %2667 = vmatprep.subr.mxu0 %v1694
        %2668 = vmatpush1.msra.mxu0 %v1693
        %2669 = vmatprep.subr.mxu0 %v1701
        %2670 = vmatpush1.msra.mxu0 %v1700
        %2671 = vmatprep.subr.mxu0 %v1708
        %2672 = vmatpush1.msra.mxu0 %v1707
        %2673 = vmatprep.subr.mxu0 %v1715
        %2674 = vmatpush1.msra.mxu0 %v1714
        %2675 = vmatprep.subr.mxu0 %v1722
        %2676 = vmatpush1.msra.mxu0 %v1721
        %2677 = vmatprep.subr.mxu0 %v1729
        %2678 = vmatpush1.msra.mxu0 %v1728
        %2679 = vmatprep.subr.mxu0 %v1736
        %2680 = vmatpush1.msra.mxu0 %v1735
        %2681 = vmatprep.subr.mxu0 %v1743
        %2682 = vmatpush1.msra.mxu0 %v1742
        %2683 = vmatprep.subr.mxu0 %v1750
        %2684 = vmatpush1.msra.mxu0 %v1749
        %2685 = vmatprep.subr.mxu0 %v1757
        %2686 = vmatpush1.msra.mxu0 %v1756
        %2687 = vmatprep.subr.mxu0 %v1764
        %2688 = vmatpush1.msra.mxu0 %v1763
        %2689 = vmatprep.mubr.f32.mxu0 %v1092
        %2690 = vmatmul.mubr.f32.gmra.mrb[0].mxu0 %v1091
        %v2691 = vpop.f32.mrb[0].mxu0
        %v2692 = vadd.f32 %v2621, %v2691
        %v2693 = vpop.f32.mrb[0].mxu0
        %v2694 = vadd.f32 %v2623, %v2693
        %2695 = vdwg.mxu0
        %2696 = vmatprep.subr.mxu0 %v1771
        %2697 = vmatpush1.msra.mxu0 %v1770
        %2698 = vmatprep.subr.mxu0 %v1778
        %2699 = vmatpush1.msra.mxu0 %v1777
        %2700 = vmatprep.subr.mxu0 %v1785
        %2701 = vmatpush1.msra.mxu0 %v1784
        %2702 = vmatprep.subr.mxu0 %v1792
        %2703 = vmatpush1.msra.mxu0 %v1791
        %2704 = vmatprep.subr.mxu0 %v1799
        %2705 = vmatpush1.msra.mxu0 %v1798
        %2706 = vmatprep.subr.mxu0 %v1806
        %2707 = vmatpush1.msra.mxu0 %v1805
        %2708 = vmatprep.subr.mxu0 %v1813
        %2709 = vmatpush1.msra.mxu0 %v1812
        %2710 = vmatprep.subr.mxu0 %v1820
        %2711 = vmatpush1.msra.mxu0 %v1819
        %2712 = vmatprep.subr.mxu0 %v1827
        %2713 = vmatpush1.msra.mxu0 %v1826
        %2714 = vmatprep.subr.mxu0 %v1834
        %2715 = vmatpush1.msra.mxu0 %v1833
        %2716 = vmatprep.subr.mxu0 %v1841
        %2717 = vmatpush1.msra.mxu0 %v1840
        %2718 = vmatprep.subr.mxu0 %v1848
        %2719 = vmatpush1.msra.mxu0 %v1847
        %2720 = vmatprep.subr.mxu0 %v1855
        %2721 = vmatpush1.msra.mxu0 %v1854
        %2722 = vmatprep.subr.mxu0 %v1862
        %2723 = vmatpush1.msra.mxu0 %v1861
        %2724 = vmatprep.subr.mxu0 %v1869
        %2725 = vmatpush1.msra.mxu0 %v1868
        %2726 = vmatprep.subr.mxu0 %v1876
        %2727 = vmatpush1.msra.mxu0 %v1875
        %2728 = vmatprep.subr.mxu0 0.0
        %2729 = vmatpush1.msra.mxu0 0.0
        %2730 = vmatprep.subr.mxu0 0.0
        %2731 = vmatpush1.msra.mxu0 0.0
        %2732 = vmatprep.subr.mxu0 0.0
        %2733 = vmatpush1.msra.mxu0 0.0
        %2734 = vmatprep.subr.mxu0 0.0
        %2735 = vmatpush1.msra.mxu0 0.0
        %2736 = vmatprep.subr.mxu0 0.0
        %2737 = vmatpush1.msra.mxu0 0.0
        %2738 = vmatprep.subr.mxu0 0.0
        %2739 = vmatpush1.msra.mxu0 0.0
        %2740 = vmatprep.subr.mxu0 0.0
        %2741 = vmatpush1.msra.mxu0 0.0
        %2742 = vmatprep.subr.mxu0 0.0
        %2743 = vmatpush1.msra.mxu0 0.0
        %2744 = vmatprep.subr.mxu0 0.0
        %2745 = vmatpush1.msra.mxu0 0.0
        %2746 = vmatprep.subr.mxu0 0.0
        %2747 = vmatpush1.msra.mxu0 0.0
        %2748 = vmatprep.subr.mxu0 0.0
        %2749 = vmatpush1.msra.mxu0 0.0
        %2750 = vmatprep.subr.mxu0 0.0
        %2751 = vmatpush1.msra.mxu0 0.0
        %2752 = vmatprep.subr.mxu0 0.0
        %2753 = vmatpush1.msra.mxu0 0.0
        %2754 = vmatprep.subr.mxu0 0.0
        %2755 = vmatpush1.msra.mxu0 0.0
        %2756 = vmatprep.subr.mxu0 0.0
        %2757 = vmatpush1.msra.mxu0 0.0
        %2758 = vmatprep.subr.mxu0 0.0
        %2759 = vmatpush1.msra.mxu0 0.0
        %2760 = vmatprep.mubr.f32.mxu0 0.0
        %2761 = vmatmul.mubr.f32.gmra.mrb[0].mxu0 %v1093
        %v2762 = vpop.f32.mrb[0].mxu0
        %v2763 = vadd.f32 %v2692, %v2762
        %v2764 = vpop.f32.mrb[0].mxu0
        %v2765 = vadd.f32 %v2694, %v2764
        %2766 = vdwg.mxu0
        %2767 = vmatprep.subr.mxu0 0.0
        %2768 = vmatpush1.msra.mxu0 %v1100
        %2769 = vmatprep.subr.mxu0 0.0
        %2770 = vmatpush1.msra.mxu0 %v1107
        %2771 = vmatprep.subr.mxu0 0.0
        %2772 = vmatpush1.msra.mxu0 %v1114
        %2773 = vmatprep.subr.mxu0 0.0
        %2774 = vmatpush1.msra.mxu0 %v1121
        %2775 = vmatprep.subr.mxu0 0.0
        %2776 = vmatpush1.msra.mxu0 %v1128
        %2777 = vmatprep.subr.mxu0 0.0
        %2778 = vmatpush1.msra.mxu0 %v1135
        %2779 = vmatprep.subr.mxu0 0.0
        %2780 = vmatpush1.msra.mxu0 %v1142
        %2781 = vmatprep.subr.mxu0 0.0
        %2782 = vmatpush1.msra.mxu0 %v1149
        %2783 = vmatprep.subr.mxu0 0.0
        %2784 = vmatpush1.msra.mxu0 %v1156
        %2785 = vmatprep.subr.mxu0 0.0
        %2786 = vmatpush1.msra.mxu0 %v1163
        %2787 = vmatprep.subr.mxu0 0.0
        %2788 = vmatpush1.msra.mxu0 %v1170
        %2789 = vmatprep.subr.mxu0 0.0
        %2790 = vmatpush1.msra.mxu0 %v1177
        %2791 = vmatprep.subr.mxu0 0.0
        %2792 = vmatpush1.msra.mxu0 %v1184
        %2793 = vmatprep.subr.mxu0 0.0
        %2794 = vmatpush1.msra.mxu0 %v1191
        %2795 = vmatprep.subr.mxu0 0.0
        %2796 = vmatpush1.msra.mxu0 %v1198
        %2797 = vmatprep.subr.mxu0 0.0
        %2798 = vmatpush1.msra.mxu0 %v1205
        %2799 = vmatprep.subr.mxu0 0.0
        %2800 = vmatpush1.msra.mxu0 %v1212
        %2801 = vmatprep.subr.mxu0 0.0
        %2802 = vmatpush1.msra.mxu0 %v1219
        %2803 = vmatprep.subr.mxu0 0.0
        %2804 = vmatpush1.msra.mxu0 %v1226
        %2805 = vmatprep.subr.mxu0 0.0
        %2806 = vmatpush1.msra.mxu0 %v1233
        %2807 = vmatprep.subr.mxu0 0.0
        %2808 = vmatpush1.msra.mxu0 %v1240
        %2809 = vmatprep.subr.mxu0 0.0
        %2810 = vmatpush1.msra.mxu0 %v1247
        %2811 = vmatprep.subr.mxu0 0.0
        %2812 = vmatpush1.msra.mxu0 %v1254
        %2813 = vmatprep.subr.mxu0 0.0
        %2814 = vmatpush1.msra.mxu0 %v1261
        %2815 = vmatprep.subr.mxu0 0.0
        %2816 = vmatpush1.msra.mxu0 %v1268
        %2817 = vmatprep.subr.mxu0 0.0
        %2818 = vmatpush1.msra.mxu0 %v1275
        %2819 = vmatprep.subr.mxu0 0.0
        %2820 = vmatpush1.msra.mxu0 %v1282
        %2821 = vmatprep.subr.mxu0 0.0
        %2822 = vmatpush1.msra.mxu0 %v1289
        %2823 = vmatprep.subr.mxu0 0.0
        %2824 = vmatpush1.msra.mxu0 %v1296
        %2825 = vmatprep.subr.mxu0 0.0
        %2826 = vmatpush1.msra.mxu0 %v1303
        %2827 = vmatprep.subr.mxu0 0.0
        %2828 = vmatpush1.msra.mxu0 %v1310
        %2829 = vmatprep.subr.mxu0 0.0
        %2830 = vmatpush1.msra.mxu0 %v1317
        %2831 = vmatprep.mubr.f32.mxu0 %v1088
        %2832 = vmatmul.mubr.f32.gmra.mrb[0].mxu0 %v1087
        %v2833 = vpop.f32.mrb[0].mxu0
        %v2834 = vadd.f32 %v1907, %v2833
        %v2835 = vpop.f32.mrb[0].mxu0
        %2836 = vdwg.mxu0
        %2837 = vmatprep.subr.mxu0 0.0
        %2838 = vmatpush1.msra.mxu0 %v1324
        %2839 = vmatprep.subr.mxu0 0.0
        %2840 = vmatpush1.msra.mxu0 %v1331
        %2841 = vmatprep.subr.mxu0 0.0
        %2842 = vmatpush1.msra.mxu0 %v1338
        %2843 = vmatprep.subr.mxu0 0.0
        %2844 = vmatpush1.msra.mxu0 %v1345
        %2845 = vmatprep.subr.mxu0 0.0
        %2846 = vmatpush1.msra.mxu0 %v1352
        %2847 = vmatprep.subr.mxu0 0.0
        %2848 = vmatpush1.msra.mxu0 %v1359
        %2849 = vmatprep.subr.mxu0 0.0
        %2850 = vmatpush1.msra.mxu0 %v1366
        %2851 = vmatprep.subr.mxu0 0.0
        %2852 = vmatpush1.msra.mxu0 %v1373
        %2853 = vmatprep.subr.mxu0 0.0
        %2854 = vmatpush1.msra.mxu0 %v1380
        %2855 = vmatprep.subr.mxu0 0.0
        %2856 = vmatpush1.msra.mxu0 %v1387
        %2857 = vmatprep.subr.mxu0 0.0
        %2858 = vmatpush1.msra.mxu0 %v1394
        %2859 = vmatprep.subr.mxu0 0.0
        %2860 = vmatpush1.msra.mxu0 %v1401
        %2861 = vmatprep.subr.mxu0 0.0
        %2862 = vmatpush1.msra.mxu0 %v1408
        %2863 = vmatprep.subr.mxu0 0.0
        %2864 = vmatpush1.msra.mxu0 %v1415
        %2865 = vmatprep.subr.mxu0 0.0
        %2866 = vmatpush1.msra.mxu0 %v1422
        %2867 = vmatprep.subr.mxu0 0.0
        %2868 = vmatpush1.msra.mxu0 %v1429
        %2869 = vmatprep.subr.mxu0 0.0
        %2870 = vmatpush1.msra.mxu0 %v1436
        %2871 = vmatprep.subr.mxu0 0.0
        %2872 = vmatpush1.msra.mxu0 %v1443
        %2873 = vmatprep.subr.mxu0 0.0
        %2874 = vmatpush1.msra.mxu0 %v1450
        %2875 = vmatprep.subr.mxu0 0.0
        %2876 = vmatpush1.msra.mxu0 %v1457
        %2877 = vmatprep.subr.mxu0 0.0
        %2878 = vmatpush1.msra.mxu0 %v1464
        %2879 = vmatprep.subr.mxu0 0.0
        %2880 = vmatpush1.msra.mxu0 %v1471
        %2881 = vmatprep.subr.mxu0 0.0
        %2882 = vmatpush1.msra.mxu0 %v1478
        %2883 = vmatprep.subr.mxu0 0.0
        %2884 = vmatpush1.msra.mxu0 %v1485
        %2885 = vmatprep.subr.mxu0 0.0
        %2886 = vmatpush1.msra.mxu0 %v1492
        %2887 = vmatprep.subr.mxu0 0.0
        %2888 = vmatpush1.msra.mxu0 %v1499
        %2889 = vmatprep.subr.mxu0 0.0
        %2890 = vmatpush1.msra.mxu0 %v1506
        %2891 = vmatprep.subr.mxu0 0.0
        %2892 = vmatpush1.msra.mxu0 %v1513
        %2893 = vmatprep.subr.mxu0 0.0
        %2894 = vmatpush1.msra.mxu0 %v1520
        %2895 = vmatprep.subr.mxu0 0.0
        %2896 = vmatpush1.msra.mxu0 %v1527
        %2897 = vmatprep.subr.mxu0 0.0
        %2898 = vmatpush1.msra.mxu0 %v1534
        %2899 = vmatprep.subr.mxu0 0.0
        %2900 = vmatpush1.msra.mxu0 %v1541
        %2901 = vmatprep.mubr.f32.mxu0 %v1090
        %2902 = vmatmul.mubr.f32.gmra.mrb[0].mxu0 %v1089
        %v2903 = vpop.f32.mrb[0].mxu0
        %v2904 = vadd.f32 %v2834, %v2903
        %v2905 = vpop.f32.mrb[0].mxu0
        %2906 = vdwg.mxu0
        %2907 = vmatprep.subr.mxu0 0.0
        %2908 = vmatpush1.msra.mxu0 %v1548
        %2909 = vmatprep.subr.mxu0 0.0
        %2910 = vmatpush1.msra.mxu0 %v1555
        %2911 = vmatprep.subr.mxu0 0.0
        %2912 = vmatpush1.msra.mxu0 %v1562
        %2913 = vmatprep.subr.mxu0 0.0
        %2914 = vmatpush1.msra.mxu0 %v1569
        %2915 = vmatprep.subr.mxu0 0.0
        %2916 = vmatpush1.msra.mxu0 %v1576
        %2917 = vmatprep.subr.mxu0 0.0
        %2918 = vmatpush1.msra.mxu0 %v1583
        %2919 = vmatprep.subr.mxu0 0.0
        %2920 = vmatpush1.msra.mxu0 %v1590
        %2921 = vmatprep.subr.mxu0 0.0
        %2922 = vmatpush1.msra.mxu0 %v1597
        %2923 = vmatprep.subr.mxu0 0.0
        %2924 = vmatpush1.msra.mxu0 %v1604
        %2925 = vmatprep.subr.mxu0 0.0
        %2926 = vmatpush1.msra.mxu0 %v1611
        %2927 = vmatprep.subr.mxu0 0.0
        %2928 = vmatpush1.msra.mxu0 %v1618
        %2929 = vmatprep.subr.mxu0 0.0
        %2930 = vmatpush1.msra.mxu0 %v1625
        %2931 = vmatprep.subr.mxu0 0.0
        %2932 = vmatpush1.msra.mxu0 %v1632
        %2933 = vmatprep.subr.mxu0 0.0
        %2934 = vmatpush1.msra.mxu0 %v1639
        %2935 = vmatprep.subr.mxu0 0.0
        %2936 = vmatpush1.msra.mxu0 %v1646
        %2937 = vmatprep.subr.mxu0 0.0
        %2938 = vmatpush1.msra.mxu0 %v1653
        %2939 = vmatprep.subr.mxu0 0.0
        %2940 = vmatpush1.msra.mxu0 %v1660
        %2941 = vmatprep.subr.mxu0 0.0
        %2942 = vmatpush1.msra.mxu0 %v1667
        %2943 = vmatprep.subr.mxu0 0.0
        %2944 = vmatpush1.msra.mxu0 %v1674
        %2945 = vmatprep.subr.mxu0 0.0
        %2946 = vmatpush1.msra.mxu0 %v1681
        %2947 = vmatprep.subr.mxu0 0.0
        %2948 = vmatpush1.msra.mxu0 %v1688
        %2949 = vmatprep.subr.mxu0 0.0
        %2950 = vmatpush1.msra.mxu0 %v1695
        %2951 = vmatprep.subr.mxu0 0.0
        %2952 = vmatpush1.msra.mxu0 %v1702
        %2953 = vmatprep.subr.mxu0 0.0
        %2954 = vmatpush1.msra.mxu0 %v1709
        %2955 = vmatprep.subr.mxu0 0.0
        %2956 = vmatpush1.msra.mxu0 %v1716
        %2957 = vmatprep.subr.mxu0 0.0
        %2958 = vmatpush1.msra.mxu0 %v1723
        %2959 = vmatprep.subr.mxu0 0.0
        %2960 = vmatpush1.msra.mxu0 %v1730
        %2961 = vmatprep.subr.mxu0 0.0
        %2962 = vmatpush1.msra.mxu0 %v1737
        %2963 = vmatprep.subr.mxu0 0.0
        %2964 = vmatpush1.msra.mxu0 %v1744
        %2965 = vmatprep.subr.mxu0 0.0
        %2966 = vmatpush1.msra.mxu0 %v1751
        %2967 = vmatprep.subr.mxu0 0.0
        %2968 = vmatpush1.msra.mxu0 %v1758
        %2969 = vmatprep.subr.mxu0 0.0
        %2970 = vmatpush1.msra.mxu0 %v1765
        %2971 = vmatprep.mubr.f32.mxu0 %v1092
        %2972 = vmatmul.mubr.f32.gmra.mrb[0].mxu0 %v1091
        %v2973 = vpop.f32.mrb[0].mxu0
        %v2974 = vadd.f32 %v2904, %v2973
        %v2975 = vpop.f32.mrb[0].mxu0
        %2976 = vdwg.mxu0
        %2977 = vmatprep.subr.mxu0 0.0
        %2978 = vmatpush1.msra.mxu0 %v1772
        %2979 = vmatprep.subr.mxu0 0.0
        %2980 = vmatpush1.msra.mxu0 %v1779
        %2981 = vmatprep.subr.mxu0 0.0
        %2982 = vmatpush1.msra.mxu0 %v1786
        %2983 = vmatprep.subr.mxu0 0.0
        %2984 = vmatpush1.msra.mxu0 %v1793
        %2985 = vmatprep.subr.mxu0 0.0
        %2986 = vmatpush1.msra.mxu0 %v1800
        %2987 = vmatprep.subr.mxu0 0.0
        %2988 = vmatpush1.msra.mxu0 %v1807
        %2989 = vmatprep.subr.mxu0 0.0
        %2990 = vmatpush1.msra.mxu0 %v1814
        %2991 = vmatprep.subr.mxu0 0.0
        %2992 = vmatpush1.msra.mxu0 %v1821
        %2993 = vmatprep.subr.mxu0 0.0
        %2994 = vmatpush1.msra.mxu0 %v1828
        %2995 = vmatprep.subr.mxu0 0.0
        %2996 = vmatpush1.msra.mxu0 %v1835
        %2997 = vmatprep.subr.mxu0 0.0
        %2998 = vmatpush1.msra.mxu0 %v1842
        %2999 = vmatprep.subr.mxu0 0.0
        %3000 = vmatpush1.msra.mxu0 %v1849
        %3001 = vmatprep.subr.mxu0 0.0
        %3002 = vmatpush1.msra.mxu0 %v1856
        %3003 = vmatprep.subr.mxu0 0.0
        %3004 = vmatpush1.msra.mxu0 %v1863
        %3005 = vmatprep.subr.mxu0 0.0
        %3006 = vmatpush1.msra.mxu0 %v1870
        %3007 = vmatprep.subr.mxu0 0.0
        %3008 = vmatpush1.msra.mxu0 %v1877
        %3009 = vmatprep.subr.mxu0 0.0
        %3010 = vmatpush1.msra.mxu0 0.0
        %3011 = vmatprep.subr.mxu0 0.0
        %3012 = vmatpush1.msra.mxu0 0.0
        %3013 = vmatprep.subr.mxu0 0.0
        %3014 = vmatpush1.msra.mxu0 0.0
        %3015 = vmatprep.subr.mxu0 0.0
        %3016 = vmatpush1.msra.mxu0 0.0
        %3017 = vmatprep.subr.mxu0 0.0
        %3018 = vmatpush1.msra.mxu0 0.0
        %3019 = vmatprep.subr.mxu0 0.0
        %3020 = vmatpush1.msra.mxu0 0.0
        %3021 = vmatprep.subr.mxu0 0.0
        %3022 = vmatpush1.msra.mxu0 0.0
        %3023 = vmatprep.subr.mxu0 0.0
        %3024 = vmatpush1.msra.mxu0 0.0
        %3025 = vmatprep.subr.mxu0 0.0
        %3026 = vmatpush1.msra.mxu0 0.0
        %3027 = vmatprep.subr.mxu0 0.0
        %3028 = vmatpush1.msra.mxu0 0.0
        %3029 = vmatprep.subr.mxu0 0.0
        %3030 = vmatpush1.msra.mxu0 0.0
        %3031 = vmatprep.subr.mxu0 0.0
        %3032 = vmatpush1.msra.mxu0 0.0
        %3033 = vmatprep.subr.mxu0 0.0
        %3034 = vmatpush1.msra.mxu0 0.0
        %3035 = vmatprep.subr.mxu0 0.0
        %3036 = vmatpush1.msra.mxu0 0.0
        %3037 = vmatprep.subr.mxu0 0.0
        %3038 = vmatpush1.msra.mxu0 0.0
        %3039 = vmatprep.subr.mxu0 0.0
        %3040 = vmatpush1.msra.mxu0 0.0
        %3041 = vmatprep.mubr.f32.mxu0 0.0
        %3042 = vmatmul.mubr.f32.gmra.mrb[0].mxu0 %v1093
        %v3043 = vpop.f32.mrb[0].mxu0
        %v3044 = vadd.f32 %v2974, %v3043
        %v3045 = vpop.f32.mrb[0].mxu0
        %3046 = vdwg.mxu0
        %v3047 = vmax.f32 %v2195, 0.0
        %v3048 = vmax.f32 %v2197, 0.0
        %v3049 = vmax.f32 %v2479, 0.0
        %v3050 = vmax.f32 %v2481, 0.0
        %v3051 = vmax.f32 %v2763, 0.0
        %v3052 = vmax.f32 %v2765, 0.0
        %v3053 = vmax.f32 %v3044, 0.0
        %3054 = vst [vmem:[%s371] sm:$0xff] %v3047
        %3055 = vst [vmem:[%s371 + $0x8] sm:$0xff] %v3048
        %3056 = vst [vmem:[%s371 + $0x10] sm:$0xff] %v3049
        %3057 = vst [vmem:[%s371 + $0x18] sm:$0xff] %v3050
        %3058 = vst [vmem:[%s371 + $0x20] sm:$0xff] %v3051
        %3059 = vst [vmem:[%s371 + $0x28] sm:$0xff] %v3052
        %3060 = vst [vmem:[%s371 + $0x30] sm:$0xff] %v3053
        %s3061 = sand.u32 %s187, 1
        %s3062 = scalar_lea.sflag [#allocation4], %s3061
        %s3063 = sand.u32 %s187, 1
        %s3064 = smul.addr %s3063, 56
        %s3065 = scalar_lea.vmem [#allocation14], %s3064
        // Predicated region
        $region77: #{tpu_custom_call.1} parent=47 // pred_check
          %p3066 = pneg %p197
        $region78: #{tpu_custom_call.1} parent=47 // pred_check_branch
          %3068 = sbr.rel (%p3066) target = $region80
        $region79: #{tpu_custom_call.1} parent=47 // pred_region
          %s3070 = ssub.s32 896, 896
          %3071 = vsyncadd %s3062, %s3070
          %s3072 = smul.addr %s27, 7
          %s3073 = smul.addr %s3072, 128
          %s3074 = scalar_lea.hbm %s7, %s3073
          %s3076 = sshll.u32 %s3065, 4
          %s3077 = int_to_ptr.vmem [resolvable:$true] %s3076
          %3079 = dma.vmem_to_hbm [thread:$0]  %s3077, 896, %s3074, %s3062
        $region80: #{tpu_custom_call.1} parent=47 // pred_fallthru
          _
      $region48: #{tpu_custom_call.1} parent=5 // pred_fallthru
        _
      %p3080 = scmp.le.s32.totalorder 2, %s22
      // Predicated region
      $region81: #{tpu_custom_call.1} parent=5 // pred_check
        %p3081 = pneg %p3080
      $region82: #{tpu_custom_call.1} parent=5 // pred_check_branch
        %3083 = sbr.rel (%p3081) target = $region84
      $region83: #{tpu_custom_call.1} parent=5 // pred_region
        %s3084 = ssub.s32 %s22, 2
        // Predicated region
        $region85: #{tpu_custom_call.1} parent=83 // pred_check
          %p3085 = pneg %p203
        $region86: #{tpu_custom_call.1} parent=83 // pred_check_branch
          %3087 = sbr.rel (%p3085) target = $region88
        $region87: #{tpu_custom_call.1} parent=83 // pred_region
          %s3088 = sand.u32 %s188, 1
          %s3089 = scalar_lea.sflag [#allocation4], %s3088
          %s3090 = sand.u32 %s188, 1
          %s3091 = smul.addr %s3090, 56
          %s3092 = scalar_lea.vmem [#allocation14], %s3091
          %3093 = dma.done %s3089, 896
        $region88: #{tpu_custom_call.1} parent=83 // pred_fallthru
          _
      $region84: #{tpu_custom_call.1} parent=5 // pred_fallthru
        _
    $region6: #{tpu_custom_call.1} parent=1 // loop_footer
      %s26 = sadd.s32 1, %s22
    $region7: #{tpu_custom_call.1} parent=1 // loop_footer_branch
      %21 = sbr.rel target = $region3
    $region8: #{tpu_custom_call.1} parent=1 // loop_exit
      _
    %3094 = vsyncpa [#allocation3], 1
    %s3095 = scalar_lea.sflag [#allocation3], 1
    %3096 = vsyncpa %s3095, 1
    %3097 = vsyncpa [#allocation6], 1
    %3098 = vsyncpa [#allocation9], 1
    %3099 = vsyncpa [#allocation12], 1
    %3100 = vsyncpa [#allocation4], 1
    %s3101 = scalar_lea.sflag [#allocation4], 1
    %3102 = vsyncpa %s3101, 1

</llo_original>
